<compile_context>
chip_gen: v7x
topology: tpu7x:2x2x1
jax: 0.10.0
libtpu: 0.0.40
codegen_flags: <defaults>
</compile_context>

<pallas_src>
import functools

import jax
import jax.numpy as jnp
from jax import lax
from jax.experimental import pallas as pl
from jax.experimental.pallas import tpu as pltpu

LEAKY_SLOPE = 0.01  # PyTorch nn.LeakyReLU default negative_slope
LANE = 128


def _round_up(x, m):
    return (x + m - 1) // m * m


def _leaky(y):
    return jnp.where(y > 0, y, LEAKY_SLOPE * y)


# ----------------------------------------------------------------------------
# Kernel 1: conv1 as an M-tiled im2col matmul (bias + LeakyReLU fused)
# ----------------------------------------------------------------------------
def _conv1_kernel(p_ref, w_ref, b_ref, o_ref):
    y = jnp.dot(p_ref[...], w_ref[...], preferred_element_type=jnp.float32)
    y = _leaky(y + b_ref[...])          # b_ref is (1, 128) f32; broadcasts over rows
    o_ref[...] = y.astype(o_ref.dtype)  # bf16, 128-lane dense store


def conv1_matmul(patches, w, b, *, tm):
    """patches: (M, K) bf16, w: (K, 128) bf16, b: (1, 128) f32 -> (M, 128) bf16."""
    M, K = patches.shape
    _, N = w.shape
    return pl.pallas_call(
        _conv1_kernel,
        out_shape=jax.ShapeDtypeStruct((M, N), jnp.bfloat16),
        grid=(M // tm,),
        in_specs=[
            pl.BlockSpec((tm, K), lambda i: (i, 0)),
            pl.BlockSpec((K, N), lambda i: (0, 0)),
            pl.BlockSpec((1, N), lambda i: (0, 0)),
        ],
        out_specs=pl.BlockSpec((tm, N), lambda i: (i, 0)),
        compiler_params=pltpu.CompilerParams(
            dimension_semantics=("parallel",)),   # lets v7x split rows across its 2 TCs
    )(patches, w, b)


# ----------------------------------------------------------------------------
# Kernel 2: fused tail = conv2 + conv3 + fc1 + fc2 in a single pallas_call
#   - conv2 consumes pre-gathered im2col rows ordered (tap, batch) so that
#     conv3 (whose spatial output is 1x1 here) reduces to 9 aligned
#     (bpad, 128) x (128, 128) MXU dots accumulated in f32.
# ----------------------------------------------------------------------------
def _tail_kernel(p2_ref, w2_ref, b2_ref, w3_ref, b3_ref, w4_ref, b4_ref,
                 w5_ref, b5_ref, o_ref, *, bpad, taps3):
    # conv2: (taps3*bpad, 2048) x (2048, 128) + bias + LeakyReLU
    a2 = jnp.dot(p2_ref[...], w2_ref[...], preferred_element_type=jnp.float32)
    a2 = _leaky(a2 + b2_ref[...]).astype(jnp.bfloat16)

    # conv3 (1x1 spatial output): sum over the 3x3 = taps3 taps.
    # Rows of a2 are grouped tap-major, so each slice is an aligned 8-row slab.
    acc3 = jnp.zeros((bpad, LANE), jnp.float32)
    for t in range(taps3):
        lhs = a2[t * bpad:(t + 1) * bpad, :]
        rhs = w3_ref[t * LANE:(t + 1) * LANE, :]
        acc3 = acc3 + jnp.dot(lhs, rhs, preferred_element_type=jnp.float32)
    a3 = _leaky(acc3 + b3_ref[...]).astype(jnp.bfloat16)

    # fc1 + LeakyReLU
    h = jnp.dot(a3, w4_ref[...], preferred_element_type=jnp.float32)
    h = _leaky(h + b4_ref[...]).astype(jnp.bfloat16)

    # fc2 (no activation); output slab is (bpad, 128) f32 -> lane-dense store
    y = jnp.dot(h, w5_ref[...], preferred_element_type=jnp.float32)
    o_ref[...] = (y + b5_ref[...]).astype(o_ref.dtype)


def tail_forward(p2, w2, b2, w3, b3, w4, b4, w5, b5, *, bpad):
    taps3 = w3.shape[0] // LANE
    kernel = functools.partial(_tail_kernel, bpad=bpad, taps3=taps3)

    def full(a):  # whole-array block (everything fits comfortably in VMEM)
        return pl.BlockSpec(a.shape, lambda i: (0, 0))

    return pl.pallas_call(
        kernel,
        out_shape=jax.ShapeDtypeStruct((bpad, LANE), jnp.float32),
        grid=(1,),
        in_specs=[full(p2), full(w2), full(b2), full(w3), full(b3),
                  full(w4), full(b4), full(w5), full(b5)],
        out_specs=pl.BlockSpec((bpad, LANE), lambda i: (0, 0)),
        compiler_params=pltpu.CompilerParams(
            dimension_semantics=("arbitrary",)),
    )(p2, w2, b2, w3, b3, w4, b4, w5, b5)


# ----------------------------------------------------------------------------
# Glue: NHWC im2col (static slicing only, stays in NHWC/flat layout)
# ----------------------------------------------------------------------------
def _im2col_nhwc(x, k, s):
    """x: (B, H, W, C) -> (B, Ho, Wo, k*k, C), Ho, Wo. Patch col order = (kh, kw, C)."""
    B, H, W, C = x.shape
    Ho = (H - k) // s + 1
    Wo = (W - k) // s + 1
    cols = []
    for i in range(k):
        for j in range(k):
            cols.append(x[:, i:i + s * Ho:s, j:j + s * Wo:s, :])
    return jnp.stack(cols, axis=3), Ho, Wo


# ----------------------------------------------------------------------------
# Parameters: torch-layout init + one-time layout/dtype preparation
# ----------------------------------------------------------------------------
def init_params(key, input_shape, n_actions):
    """Synthetic parameters in the PyTorch layout (Conv2d: OIHW, Linear: (out, in))."""
    C, H, W = input_shape
    ks = jax.random.split(key, 10)

    def u(k, shape, fan_in):
        bound = 1.0 / jnp.sqrt(fan_in)
        return jax.random.uniform(k, shape, jnp.float32, -bound, bound)

    h1, w1 = (H - 8) // 4 + 1, (W - 8) // 4 + 1
    h2, w2 = (h1 - 4) // 2 + 1, (w1 - 4) // 2 + 1
    h3, w3 = h2 - 2, w2 - 2
    conv_out = 64 * h3 * w3

    p = {}
    p["c1_w"] = u(ks[0], (32, C, 8, 8), C * 64)
    p["c1_b"] = u(ks[1], (32,), C * 64)
    p["c2_w"] = u(ks[2], (64, 32, 4, 4), 32 * 16)
    p["c2_b"] = u(ks[3], (64,), 32 * 16)
    p["c3_w"] = u(ks[4], (64, 64, 3, 3), 64 * 9)
    p["c3_b"] = u(ks[5], (64,), 64 * 9)
    p["fc1_w"] = u(ks[6], (512, conv_out), conv_out)
    p["fc1_b"] = u(ks[7], (512,), conv_out)
    p["fc2_w"] = u(ks[8], (n_actions, 512), 512)
    p["fc2_b"] = u(ks[9], (n_actions,), 512)
    return p


def prepare_params(p, input_shape, n_actions):
    """One-time prep: conv weights -> (kh*kw*Cin_pad, Cout_pad) matmul layout,
    FC weights pre-transposed, all channel dims zero-padded to 128 lanes,
    matmul operands cast to bf16 (biases stay f32)."""
    C, H, W = input_shape
    h1, w1 = (H - 8) // 4 + 1, (W - 8) // 4 + 1
    h2, w2 = (h1 - 4) // 2 + 1, (w1 - 4) // 2 + 1
    h3, w3 = h2 - 2, w2 - 2
    assert h3 == 1 and w3 == 1, "fused tail kernel assumes conv3 output is 1x1"
    # TODO(synk): generalize the fused tail to h3*w3 > 1 (e.g. 84x84 inputs) by
    #             tiling conv3 spatially the same way conv2 is handled.

    def pad_lanes(a):
        padn = _round_up(a.shape[-1], LANE) - a.shape[-1]
        return jnp.pad(a, ((0, 0),) * (a.ndim - 1) + ((0, padn),))

    q = {}
    # conv1: (32, C, 8, 8) -> (8*8*C, 128)
    w1m = jnp.transpose(p["c1_w"], (2, 3, 1, 0)).reshape(8 * 8 * C, 32)
    q["w1"] = pad_lanes(w1m).astype(jnp.bfloat16)
    q["b1"] = pad_lanes(p["c1_b"][None, :]).astype(jnp.float32)

    # conv2: (64, 32, 4, 4) -> (4*4*128, 128), Cin zero-padded 32->128
    w2m = jnp.transpose(p["c2_w"], (2, 3, 1, 0))                 # (4,4,32,64)
    w2m = jnp.pad(w2m, ((0, 0), (0, 0), (0, LANE - 32), (0, 0)))
    q["w2"] = pad_lanes(w2m).reshape(4 * 4 * LANE, LANE).astype(jnp.bfloat16)
    q["b2"] = pad_lanes(p["c2_b"][None, :]).astype(jnp.float32)

    # conv3: (64, 64, 3, 3) -> (3*3*128, 128), Cin zero-padded 64->128
    w3m = jnp.transpose(p["c3_w"], (2, 3, 1, 0))                 # (3,3,64,64)
    w3m = jnp.pad(w3m, ((0, 0), (0, 0), (0, LANE - 64), (0, 0)))
    q["w3"] = pad_lanes(w3m).reshape(3 * 3 * LANE, LANE).astype(jnp.bfloat16)
    q["b3"] = pad_lanes(p["c3_b"][None, :]).astype(jnp.float32)

    # fc1: torch (512, 64) -> (128, 512), input dim zero-padded 64->128
    w4m = jnp.pad(p["fc1_w"].T, ((0, LANE - 64), (0, 0)))
    q["w4"] = w4m.astype(jnp.bfloat16)
    q["b4"] = p["fc1_b"][None, :].astype(jnp.float32)            # (1, 512)

    # fc2: torch (n_actions, 512) -> (512, 128), output dim zero-padded
    q["w5"] = pad_lanes(p["fc2_w"].T).astype(jnp.bfloat16)
    q["b5"] = pad_lanes(p["fc2_b"][None, :]).astype(jnp.float32)
    return q


# ----------------------------------------------------------------------------
# Forward pass (2 Pallas kernels + minimal XLA glue)
# ----------------------------------------------------------------------------
def dqn_forward(params, x, *, n_actions):
    """x: (B, C, H, W) float32 -> (B, n_actions) float32."""
    B, C = x.shape[0], x.shape[1]
    x_nhwc = jnp.transpose(x, (0, 2, 3, 1))          # single boundary transpose

    # conv1: im2col (glue) + Pallas tiled matmul, output kept NHWC-flat bf16
    p1, H1, W1 = _im2col_nhwc(x_nhwc, k=8, s=4)      # (B, H1, W1, 64, C)
    M1 = B * H1 * W1
    p1 = p1.reshape(M1, 64 * C).astype(jnp.bfloat16)
    tm = min(512, _round_up(M1, 128))                # fits VMEM on v5e/v6e/v7x
    M1p = _round_up(M1, tm)
    if M1p != M1:
        p1 = jnp.pad(p1, ((0, M1p - M1), (0, 0)))
    a1 = conv1_matmul(p1, params["w1"], params["b1"], tm=tm)     # (M1p, 128) bf16
    a1 = a1[:M1].reshape(B, H1, W1, LANE)

    # conv2 im2col (glue), rows ordered (tap, batch) with batch padded to 8
    p2, H2, W2 = _im2col_nhwc(a1, k=4, s=2)          # (B, H2, W2, 16, 128)
    assert H2 * W2 * LANE == params["w3"].shape[0], "conv3 tap count mismatch"
    bpad = _round_up(B, 8)
    p2 = jnp.transpose(p2, (1, 2, 0, 3, 4))          # (H2, W2, B, 16, 128)
    if bpad != B:
        p2 = jnp.pad(p2, ((0, 0), (0, 0), (0, bpad - B), (0, 0), (0, 0)))
    p2 = p2.reshape(H2 * W2 * bpad, 16 * LANE)       # bf16

    # fused tail: conv2 + conv3 + fc1 + fc2 in a single Pallas kernel
    out = tail_forward(p2, params["w2"], params["b2"], params["w3"],
                       params["b3"], params["w4"], params["b4"],
                       params["w5"], params["b5"], bpad=bpad)
    return out[:B, :n_actions]


# ----------------------------------------------------------------------------
# Pure-JAX f32 reference (PyTorch semantics) for a tolerance check
# ----------------------------------------------------------------------------
def reference_forward(p, x):
    def conv(h, w, b, s):
        y = lax.conv_general_dilated(
            h, w, window_strides=(s, s), padding="VALID",
            dimension_numbers=("NCHW", "OIHW", "NCHW"))
        return _leaky(y + b[None, :, None, None])

    h = conv(x, p["c1_w"], p["c1_b"], 4)
    h = conv(h, p["c2_w"], p["c2_b"], 2)
    h = conv(h, p["c3_w"], p["c3_b"], 1)
    h = h.reshape(x.shape[0], -1)
    h = _leaky(h @ p["fc1_w"].T + p["fc1_b"])
    return h @ p["fc2_w"].T + p["fc2_b"]


if __name__ == "__main__":
    # Smallest spatial size compatible with the conv stack (8/4, 4/2, 3/1) is 36.
    input_shape = (4, 36, 36)   # (C, H, W) — 4 stacked frames, as in the Mario agent
    n_actions = 5
    batch = 2

    key = jax.random.PRNGKey(0)
    pkey, xkey = jax.random.split(key)
    torch_params = init_params(pkey, input_shape, n_actions)
    params = prepare_params(torch_params, input_shape, n_actions)
    x = jax.random.normal(xkey, (batch,) + input_shape, dtype=jnp.float32)

    fwd = jax.jit(functools.partial(dqn_forward, n_actions=n_actions))
    q_values = fwd(params, x)
    jax.block_until_ready(q_values)
    assert q_values.shape == (batch, n_actions)

    ref = reference_forward(torch_params, x)
    assert jnp.allclose(q_values, ref, rtol=1e-1, atol=1e-1), (
        "max abs err: %s" % jnp.max(jnp.abs(q_values - ref)))
    print("KERNEL_OK")
</pallas_src>

<mosaic_0001>
module attributes {stable_mosaic.version = 11 : i64} {
  func.func @_conv1_kernel(%arg0: i32, %arg1: memref<128x256xbf16, #tpu.memory_space<vmem>>, %arg2: memref<256x128xbf16, #tpu.memory_space<vmem>>, %arg3: memref<1x128xf32, #tpu.memory_space<vmem>>, %arg4: memref<128x128xbf16, #tpu.memory_space<vmem>>) attributes {dimension_semantics = [#tpu.dimension_semantics<parallel>], iteration_bounds = array<i64: 1>, scalar_prefetch = 0 : i64, scratch_operands = 0 : i64, tpu.core_type = #tpu.core_type<tc>, window_params = [{transform_indices = @transform_0, window_bounds = array<i64: 128, 256>}, {pipeline_mode = #tpu.pipeline_mode<synchronous>, transform_indices = @transform_1, window_bounds = array<i64: 256, 128>}, {pipeline_mode = #tpu.pipeline_mode<synchronous>, transform_indices = @transform_2, window_bounds = array<i64: 1, 128>}, {transform_indices = @transform_3, window_bounds = array<i64: 128, 128>}]} {
    %c0 = arith.constant 0 : index
    %c0_0 = arith.constant 0 : index
    %0 = vector.load %arg1[%c0, %c0_0] : memref<128x256xbf16, #tpu.memory_space<vmem>>, vector<128x256xbf16>
    %c0_1 = arith.constant 0 : index
    %c0_2 = arith.constant 0 : index
    %1 = vector.load %arg2[%c0_1, %c0_2] : memref<256x128xbf16, #tpu.memory_space<vmem>>, vector<256x128xbf16>
    %cst = arith.constant dense<0.000000e+00> : vector<128x128xf32>
    %2 = tpu.matmul %0, %1, %cst {dimension_numbers = #tpu.dot_dimension_numbers<[1], [0], [0], [1], [0, 0, 1, 1], [], []>} : vector<128x256xbf16>, vector<256x128xbf16>, vector<128x128xf32> -> vector<128x128xf32>
    %c0_3 = arith.constant 0 : index
    %c0_4 = arith.constant 0 : index
    %3 = vector.load %arg3[%c0_3, %c0_4] : memref<1x128xf32, #tpu.memory_space<vmem>>, vector<1x128xf32>
    %4 = vector.broadcast %3 : vector<1x128xf32> to vector<128x128xf32>
    %5 = arith.addf %2, %4 : vector<128x128xf32>
    %cst_5 = arith.constant 0.000000e+00 : f32
    %6 = vector.broadcast %cst_5 : f32 to vector<128x128xf32>
    %7 = arith.cmpf ogt, %5, %6 : vector<128x128xf32>
    %cst_6 = arith.constant 0.00999999977 : f32
    %8 = vector.broadcast %cst_6 : f32 to vector<128x128xf32>
    %9 = arith.mulf %8, %5 : vector<128x128xf32>
    %10 = arith.select %7, %5, %9 : vector<128x128xi1>, vector<128x128xf32>
    %11 = arith.truncf %10 : vector<128x128xf32> to vector<128x128xbf16>
    %c0_7 = arith.constant 0 : index
    %c0_8 = arith.constant 0 : index
    %12 = vector.load %arg4[%c0_7, %c0_8] : memref<128x128xbf16, #tpu.memory_space<vmem>>, vector<128x128xbf16>
    tpu.vector_store %arg4[%c0_7, %c0_8], %11 {strides = array<i32>} : memref<128x128xbf16, #tpu.memory_space<vmem>>, vector<128x128xbf16>,
    return
  }
  func.func @transform_0(%arg0: i32) -> (i32, i32) {
    %c0_i32 = arith.constant 0 : i32
    %c0_i32_0 = arith.constant 0 : i32
    return %arg0, %c0_i32 : i32, i32
  }
  func.func @transform_1(%arg0: i32) -> (i32, i32) {
    %c0_i32 = arith.constant 0 : i32
    %c0_i32_0 = arith.constant 0 : i32
    %c0_i32_1 = arith.constant 0 : i32
    return %c0_i32, %c0_i32_0 : i32, i32
  }
  func.func @transform_2(%arg0: i32) -> (i32, i32) {
    %c0_i32 = arith.constant 0 : i32
    %c0_i32_0 = arith.constant 0 : i32
    %c0_i32_1 = arith.constant 0 : i32
    return %c0_i32, %c0_i32_0 : i32, i32
  }
  func.func @transform_3(%arg0: i32) -> (i32, i32) {
    %c0_i32 = arith.constant 0 : i32
    %c0_i32_0 = arith.constant 0 : i32
    return %arg0, %c0_i32 : i32, i32
  }
}

module attributes {stable_mosaic.version = 11 : i64} {
  func.func @_tail_kernel(%arg0: i32, %arg1: memref<72x2048xbf16, #tpu.memory_space<vmem>>, %arg2: memref<2048x128xbf16, #tpu.memory_space<vmem>>, %arg3: memref<1x128xf32, #tpu.memory_space<vmem>>, %arg4: memref<1152x128xbf16, #tpu.memory_space<vmem>>, %arg5: memref<1x128xf32, #tpu.memory_space<vmem>>, %arg6: memref<128x512xbf16, #tpu.memory_space<vmem>>, %arg7: memref<1x512xf32, #tpu.memory_space<vmem>>, %arg8: memref<512x128xbf16, #tpu.memory_space<vmem>>, %arg9: memref<1x128xf32, #tpu.memory_space<vmem>>, %arg10: memref<8x128xf32, #tpu.memory_space<vmem>>) attributes {dimension_semantics = [#tpu.dimension_semantics<arbitrary>], iteration_bounds = array<i64: 1>, scalar_prefetch = 0 : i64, scratch_operands = 0 : i64, tpu.core_type = #tpu.core_type<tc>, window_params = [{pipeline_mode = #tpu.pipeline_mode<synchronous>, transform_indices = @transform_0, window_bounds = array<i64: 72, 2048>}, {pipeline_mode = #tpu.pipeline_mode<synchronous>, transform_indices = @transform_1, window_bounds = array<i64: 2048, 128>}, {pipeline_mode = #tpu.pipeline_mode<synchronous>, transform_indices = @transform_2, window_bounds = array<i64: 1, 128>}, {pipeline_mode = #tpu.pipeline_mode<synchronous>, transform_indices = @transform_3, window_bounds = array<i64: 1152, 128>}, {pipeline_mode = #tpu.pipeline_mode<synchronous>, transform_indices = @transform_4, window_bounds = array<i64: 1, 128>}, {pipeline_mode = #tpu.pipeline_mode<synchronous>, transform_indices = @transform_5, window_bounds = array<i64: 128, 512>}, {pipeline_mode = #tpu.pipeline_mode<synchronous>, transform_indices = @transform_6, window_bounds = array<i64: 1, 512>}, {pipeline_mode = #tpu.pipeline_mode<synchronous>, transform_indices = @transform_7, window_bounds = array<i64: 512, 128>}, {pipeline_mode = #tpu.pipeline_mode<synchronous>, transform_indices = @transform_8, window_bounds = array<i64: 1, 128>}, {pipeline_mode = #tpu.pipeline_mode<synchronous>, transform_indices = @transform_9, window_bounds = array<i64: 8, 128>}]} {
    %c0 = arith.constant 0 : index
    %c0_0 = arith.constant 0 : index
    %0 = vector.load %arg1[%c0, %c0_0] : memref<72x2048xbf16, #tpu.memory_space<vmem>>, vector<72x2048xbf16>
    %c0_1 = arith.constant 0 : index
    %c0_2 = arith.constant 0 : index
    %1 = vector.load %arg2[%c0_1, %c0_2] : memref<2048x128xbf16, #tpu.memory_space<vmem>>, vector<2048x128xbf16>
    %cst = arith.constant dense<0.000000e+00> : vector<72x128xf32>
    %2 = tpu.matmul %0, %1, %cst {dimension_numbers = #tpu.dot_dimension_numbers<[1], [0], [0], [1], [0, 0, 1, 1], [], []>} : vector<72x2048xbf16>, vector<2048x128xbf16>, vector<72x128xf32> -> vector<72x128xf32>
    %c0_3 = arith.constant 0 : index
    %c0_4 = arith.constant 0 : index
    %3 = vector.load %arg3[%c0_3, %c0_4] : memref<1x128xf32, #tpu.memory_space<vmem>>, vector<1x128xf32>
    %4 = vector.broadcast %3 : vector<1x128xf32> to vector<72x128xf32>
    %5 = arith.addf %2, %4 : vector<72x128xf32>
    %cst_5 = arith.constant 0.000000e+00 : f32
    %6 = vector.broadcast %cst_5 : f32 to vector<72x128xf32>
    %7 = arith.cmpf ogt, %5, %6 : vector<72x128xf32>
    %cst_6 = arith.constant 0.00999999977 : f32
    %8 = vector.broadcast %cst_6 : f32 to vector<72x128xf32>
    %9 = arith.mulf %8, %5 : vector<72x128xf32>
    %10 = arith.select %7, %5, %9 : vector<72x128xi1>, vector<72x128xf32>
    %11 = arith.truncf %10 : vector<72x128xf32> to vector<72x128xbf16>
    %cst_7 = arith.constant 0.000000e+00 : f32
    %12 = vector.broadcast %cst_7 : f32 to vector<8x128xf32>
    %13 = vector.extract_strided_slice %11 {offsets = [0, 0], sizes = [8, 128], strides = [1, 1]} : vector<72x128xbf16> to vector<8x128xbf16>
    %c0_8 = arith.constant 0 : index
    %c0_9 = arith.constant 0 : index
    %14 = vector.load %arg4[%c0_8, %c0_9] : memref<1152x128xbf16, #tpu.memory_space<vmem>>, vector<128x128xbf16>
    %cst_10 = arith.constant dense<0.000000e+00> : vector<8x128xf32>
    %15 = tpu.matmul %13, %14, %cst_10 {dimension_numbers = #tpu.dot_dimension_numbers<[1], [0], [0], [1], [0, 0, 1, 1], [], []>} : vector<8x128xbf16>, vector<128x128xbf16>, vector<8x128xf32> -> vector<8x128xf32>
    %16 = arith.addf %12, %15 : vector<8x128xf32>
    %17 = vector.extract_strided_slice %11 {offsets = [8, 0], sizes = [8, 128], strides = [1, 1]} : vector<72x128xbf16> to vector<8x128xbf16>
    %c128 = arith.constant 128 : index
    %c0_11 = arith.constant 0 : index
    %18 = vector.load %arg4[%c128, %c0_11] : memref<1152x128xbf16, #tpu.memory_space<vmem>>, vector<128x128xbf16>
    %cst_12 = arith.constant dense<0.000000e+00> : vector<8x128xf32>
    %19 = tpu.matmul %17, %18, %cst_12 {dimension_numbers = #tpu.dot_dimension_numbers<[1], [0], [0], [1], [0, 0, 1, 1], [], []>} : vector<8x128xbf16>, vector<128x128xbf16>, vector<8x128xf32> -> vector<8x128xf32>
    %20 = arith.addf %16, %19 : vector<8x128xf32>
    %21 = vector.extract_strided_slice %11 {offsets = [16, 0], sizes = [8, 128], strides = [1, 1]} : vector<72x128xbf16> to vector<8x128xbf16>
    %c256 = arith.constant 256 : index
    %c0_13 = arith.constant 0 : index
    %22 = vector.load %arg4[%c256, %c0_13] : memref<1152x128xbf16, #tpu.memory_space<vmem>>, vector<128x128xbf16>
    %cst_14 = arith.constant dense<0.000000e+00> : vector<8x128xf32>
    %23 = tpu.matmul %21, %22, %cst_14 {dimension_numbers = #tpu.dot_dimension_numbers<[1], [0], [0], [1], [0, 0, 1, 1], [], []>} : vector<8x128xbf16>, vector<128x128xbf16>, vector<8x128xf32> -> vector<8x128xf32>
    %24 = arith.addf %20, %23 : vector<8x128xf32>
    %25 = vector.extract_strided_slice %11 {offsets = [24, 0], sizes = [8, 128], strides = [1, 1]} : vector<72x128xbf16> to vector<8x128xbf16>
    %c384 = arith.constant 384 : index
    %c0_15 = arith.constant 0 : index
    %26 = vector.load %arg4[%c384, %c0_15] : memref<1152x128xbf16, #tpu.memory_space<vmem>>, vector<128x128xbf16>
    %cst_16 = arith.constant dense<0.000000e+00> : vector<8x128xf32>
    %27 = tpu.matmul %25, %26, %cst_16 {dimension_numbers = #tpu.dot_dimension_numbers<[1], [0], [0], [1], [0, 0, 1, 1], [], []>} : vector<8x128xbf16>, vector<128x128xbf16>, vector<8x128xf32> -> vector<8x128xf32>
    %28 = arith.addf %24, %27 : vector<8x128xf32>
    %29 = vector.extract_strided_slice %11 {offsets = [32, 0], sizes = [8, 128], strides = [1, 1]} : vector<72x128xbf16> to vector<8x128xbf16>
    %c512 = arith.constant 512 : index
    %c0_17 = arith.constant 0 : index
    %30 = vector.load %arg4[%c512, %c0_17] : memref<1152x128xbf16, #tpu.memory_space<vmem>>, vector<128x128xbf16>
    %cst_18 = arith.constant dense<0.000000e+00> : vector<8x128xf32>
    %31 = tpu.matmul %29, %30, %cst_18 {dimension_numbers = #tpu.dot_dimension_numbers<[1], [0], [0], [1], [0, 0, 1, 1], [], []>} : vector<8x128xbf16>, vector<128x128xbf16>, vector<8x128xf32> -> vector<8x128xf32>
    %32 = arith.addf %28, %31 : vector<8x128xf32>
    %33 = vector.extract_strided_slice %11 {offsets = [40, 0], sizes = [8, 128], strides = [1, 1]} : vector<72x128xbf16> to vector<8x128xbf16>
    %c640 = arith.constant 640 : index
    %c0_19 = arith.constant 0 : index
    %34 = vector.load %arg4[%c640, %c0_19] : memref<1152x128xbf16, #tpu.memory_space<vmem>>, vector<128x128xbf16>
    %cst_20 = arith.constant dense<0.000000e+00> : vector<8x128xf32>
    %35 = tpu.matmul %33, %34, %cst_20 {dimension_numbers = #tpu.dot_dimension_numbers<[1], [0], [0], [1], [0, 0, 1, 1], [], []>} : vector<8x128xbf16>, vector<128x128xbf16>, vector<8x128xf32> -> vector<8x128xf32>
    %36 = arith.addf %32, %35 : vector<8x128xf32>
    %37 = vector.extract_strided_slice %11 {offsets = [48, 0], sizes = [8, 128], strides = [1, 1]} : vector<72x128xbf16> to vector<8x128xbf16>
    %c768 = arith.constant 768 : index
    %c0_21 = arith.constant 0 : index
    %38 = vector.load %arg4[%c768, %c0_21] : memref<1152x128xbf16, #tpu.memory_space<vmem>>, vector<128x128xbf16>
    %cst_22 = arith.constant dense<0.000000e+00> : vector<8x128xf32>
    %39 = tpu.matmul %37, %38, %cst_22 {dimension_numbers = #tpu.dot_dimension_numbers<[1], [0], [0], [1], [0, 0, 1, 1], [], []>} : vector<8x128xbf16>, vector<128x128xbf16>, vector<8x128xf32> -> vector<8x128xf32>
    %40 = arith.addf %36, %39 : vector<8x128xf32>
    %41 = vector.extract_strided_slice %11 {offsets = [56, 0], sizes = [8, 128], strides = [1, 1]} : vector<72x128xbf16> to vector<8x128xbf16>
    %c896 = arith.constant 896 : index
    %c0_23 = arith.constant 0 : index
    %42 = vector.load %arg4[%c896, %c0_23] : memref<1152x128xbf16, #tpu.memory_space<vmem>>, vector<128x128xbf16>
    %cst_24 = arith.constant dense<0.000000e+00> : vector<8x128xf32>
    %43 = tpu.matmul %41, %42, %cst_24 {dimension_numbers = #tpu.dot_dimension_numbers<[1], [0], [0], [1], [0, 0, 1, 1], [], []>} : vector<8x128xbf16>, vector<128x128xbf16>, vector<8x128xf32> -> vector<8x128xf32>
    %44 = arith.addf %40, %43 : vector<8x128xf32>
    %45 = vector.extract_strided_slice %11 {offsets = [64, 0], sizes = [8, 128], strides = [1, 1]} : vector<72x128xbf16> to vector<8x128xbf16>
    %c1024 = arith.constant 1024 : index
    %c0_25 = arith.constant 0 : index
    %46 = vector.load %arg4[%c1024, %c0_25] : memref<1152x128xbf16, #tpu.memory_space<vmem>>, vector<128x128xbf16>
    %cst_26 = arith.constant dense<0.000000e+00> : vector<8x128xf32>
    %47 = tpu.matmul %45, %46, %cst_26 {dimension_numbers = #tpu.dot_dimension_numbers<[1], [0], [0], [1], [0, 0, 1, 1], [], []>} : vector<8x128xbf16>, vector<128x128xbf16>, vector<8x128xf32> -> vector<8x128xf32>
    %48 = arith.addf %44, %47 : vector<8x128xf32>
    %c0_27 = arith.constant 0 : index
    %c0_28 = arith.constant 0 : index
    %49 = vector.load %arg5[%c0_27, %c0_28] : memref<1x128xf32, #tpu.memory_space<vmem>>, vector<1x128xf32>
    %50 = vector.broadcast %49 : vector<1x128xf32> to vector<8x128xf32>
    %51 = arith.addf %48, %50 : vector<8x128xf32>
    %cst_29 = arith.constant 0.000000e+00 : f32
    %52 = vector.broadcast %cst_29 : f32 to vector<8x128xf32>
    %53 = arith.cmpf ogt, %51, %52 : vector<8x128xf32>
    %cst_30 = arith.constant 0.00999999977 : f32
    %54 = vector.broadcast %cst_30 : f32 to vector<8x128xf32>
    %55 = arith.mulf %54, %51 : vector<8x128xf32>
    %56 = arith.select %53, %51, %55 : vector<8x128xi1>, vector<8x128xf32>
    %57 = arith.truncf %56 : vector<8x128xf32> to vector<8x128xbf16>
    %c0_31 = arith.constant 0 : index
    %c0_32 = arith.constant 0 : index
    %58 = vector.load %arg6[%c0_31, %c0_32] : memref<128x512xbf16, #tpu.memory_space<vmem>>, vector<128x512xbf16>
    %cst_33 = arith.constant dense<0.000000e+00> : vector<8x512xf32>
    %59 = tpu.matmul %57, %58, %cst_33 {dimension_numbers = #tpu.dot_dimension_numbers<[1], [0], [0], [1], [0, 0, 1, 1], [], []>} : vector<8x128xbf16>, vector<128x512xbf16>, vector<8x512xf32> -> vector<8x512xf32>
    %c0_34 = arith.constant 0 : index
    %c0_35 = arith.constant 0 : index
    %60 = vector.load %arg7[%c0_34, %c0_35] : memref<1x512xf32, #tpu.memory_space<vmem>>, vector<1x512xf32>
    %61 = vector.broadcast %60 : vector<1x512xf32> to vector<8x512xf32>
    %62 = arith.addf %59, %61 : vector<8x512xf32>
    %cst_36 = arith.constant 0.000000e+00 : f32
    %63 = vector.broadcast %cst_36 : f32 to vector<8x512xf32>
    %64 = arith.cmpf ogt, %62, %63 : vector<8x512xf32>
    %cst_37 = arith.constant 0.00999999977 : f32
    %65 = vector.broadcast %cst_37 : f32 to vector<8x512xf32>
    %66 = arith.mulf %65, %62 : vector<8x512xf32>
    %67 = arith.select %64, %62, %66 : vector<8x512xi1>, vector<8x512xf32>
    %68 = arith.truncf %67 : vector<8x512xf32> to vector<8x512xbf16>
    %c0_38 = arith.constant 0 : index
    %c0_39 = arith.constant 0 : index
    %69 = vector.load %arg8[%c0_38, %c0_39] : memref<512x128xbf16, #tpu.memory_space<vmem>>, vector<512x128xbf16>
    %cst_40 = arith.constant dense<0.000000e+00> : vector<8x128xf32>
    %70 = tpu.matmul %68, %69, %cst_40 {dimension_numbers = #tpu.dot_dimension_numbers<[1], [0], [0], [1], [0, 0, 1, 1], [], []>} : vector<8x512xbf16>, vector<512x128xbf16>, vector<8x128xf32> -> vector<8x128xf32>
    %c0_41 = arith.constant 0 : index
    %c0_42 = arith.constant 0 : index
    %71 = vector.load %arg9[%c0_41, %c0_42] : memref<1x128xf32, #tpu.memory_space<vmem>>, vector<1x128xf32>
    %72 = vector.broadcast %71 : vector<1x128xf32> to vector<8x128xf32>
    %73 = arith.addf %70, %72 : vector<8x128xf32>
    %c0_43 = arith.constant 0 : index
    %c0_44 = arith.constant 0 : index
    %74 = vector.load %arg10[%c0_43, %c0_44] : memref<8x128xf32, #tpu.memory_space<vmem>>, vector<8x128xf32>
    tpu.vector_store %arg10[%c0_43, %c0_44], %73 {strides = array<i32>} : memref<8x128xf32, #tpu.memory_space<vmem>>, vector<8x128xf32>,
    return
  }
  func.func @transform_0(%arg0: i32) -> (i32, i32) {
    %c0_i32 = arith.constant 0 : i32
    %c0_i32_0 = arith.constant 0 : i32
    %c0_i32_1 = arith.constant 0 : i32
    return %c0_i32, %c0_i32_0 : i32, i32
  }
  func.func @transform_1(%arg0: i32) -> (i32, i32) {
    %c0_i32 = arith.constant 0 : i32
    %c0_i32_0 = arith.constant 0 : i32
    %c0_i32_1 = arith.constant 0 : i32
    return %c0_i32, %c0_i32_0 : i32, i32
  }
  func.func @transform_2(%arg0: i32) -> (i32, i32) {
    %c0_i32 = arith.constant 0 : i32
    %c0_i32_0 = arith.constant 0 : i32
    %c0_i32_1 = arith.constant 0 : i32
    return %c0_i32, %c0_i32_0 : i32, i32
  }
  func.func @transform_3(%arg0: i32) -> (i32, i32) {
    %c0_i32 = arith.constant 0 : i32
    %c0_i32_0 = arith.constant 0 : i32
    %c0_i32_1 = arith.constant 0 : i32
    return %c0_i32, %c0_i32_0 : i32, i32
  }
  func.func @transform_4(%arg0: i32) -> (i32, i32) {
    %c0_i32 = arith.constant 0 : i32
    %c0_i32_0 = arith.constant 0 : i32
    %c0_i32_1 = arith.constant 0 : i32
    return %c0_i32, %c0_i32_0 : i32, i32
  }
  func.func @transform_5(%arg0: i32) -> (i32, i32) {
    %c0_i32 = arith.constant 0 : i32
    %c0_i32_0 = arith.constant 0 : i32
    %c0_i32_1 = arith.constant 0 : i32
    return %c0_i32, %c0_i32_0 : i32, i32
  }
  func.func @transform_6(%arg0: i32) -> (i32, i32) {
    %c0_i32 = arith.constant 0 : i32
    %c0_i32_0 = arith.constant 0 : i32
    %c0_i32_1 = arith.constant 0 : i32
    return %c0_i32, %c0_i32_0 : i32, i32
  }
  func.func @transform_7(%arg0: i32) -> (i32, i32) {
    %c0_i32 = arith.constant 0 : i32
    %c0_i32_0 = arith.constant 0 : i32
    %c0_i32_1 = arith.constant 0 : i32
    return %c0_i32, %c0_i32_0 : i32, i32
  }
  func.func @transform_8(%arg0: i32) -> (i32, i32) {
    %c0_i32 = arith.constant 0 : i32
    %c0_i32_0 = arith.constant 0 : i32
    %c0_i32_1 = arith.constant 0 : i32
    return %c0_i32, %c0_i32_0 : i32, i32
  }
  func.func @transform_9(%arg0: i32) -> (i32, i32) {
    %c0_i32 = arith.constant 0 : i32
    %c0_i32_0 = arith.constant 0 : i32
    %c0_i32_1 = arith.constant 0 : i32
    return %c0_i32, %c0_i32_0 : i32, i32
  }
}

</mosaic_0001>

<llo_original>
// kernel: dqn_forward.2
$region0: #{dqn_forward.2}
  #allocation0 [shape = 'u32[]', space=smem, size = 0x4, offset = 0x4, fixed_abs, tag = 'smem constant byte address 0x4 - core index']
  #allocation1 [shape = 'u32[144,128]{1,0:T(1,128)}', space=vmem, size = 0x12000, scoped, tag = 'internal scratch']
  %s0 = inlined_call_operand.vmem [shape: bf16[128,256], index: 0, kind: input, shape index: {}]
  %s1 = inlined_call_operand.vmem [shape: bf16[256,128], index: 1, kind: input, shape index: {}]
  %s2 = inlined_call_operand.vmem [shape: f32[1,128], index: 2, kind: input, shape index: {}]
  %s3 = inlined_call_operand.vmem [shape: bf16[128,128], index: 3, kind: output, shape index: {}]
  %s4 = sld [smem:[#allocation0]]
  $region22: #{dqn_forward.2} parent=0
    _
  %s6 = ssub.s32 1, %s4
  %s7 = scalar_select 0, %s6, %s4
  // Predicated region
  $region2: #{dqn_forward.2} parent=0 // pred_check
    _
  $region3: #{dqn_forward.2} parent=0 // pred_check_branch
    %9 = sbr.rel (0) target = $region5
  $region4: #{dqn_forward.2} parent=0 // pred_region
    _
  $region5: #{dqn_forward.2} parent=0 // pred_fallthru
    _
  // Predicated region
  $region6: #{dqn_forward.2} parent=0 // pred_check
    _
  $region7: #{dqn_forward.2} parent=0 // pred_check_branch
    %11 = sbr.rel (0) target = $region9
  $region8: #{dqn_forward.2} parent=0 // pred_region
    _
  $region9: #{dqn_forward.2} parent=0 // pred_fallthru
    _
  // Predicated region
  $region10: #{dqn_forward.2} parent=0 // pred_check
    _
  $region11: #{dqn_forward.2} parent=0 // pred_check_branch
    %13 = sbr.rel (0) target = $region13
  $region12: #{dqn_forward.2} parent=0 // pred_region
    _
  $region13: #{dqn_forward.2} parent=0 // pred_fallthru
    _
  %v15 = vld [vmem:[%s0] sm:$0xff]
  %v16 = vld [vmem:[%s0 + $0x8] sm:$0xff]
  %v17 = vld [vmem:[%s0 + $0x10] sm:$0xff]
  %v18 = vld [vmem:[%s0 + $0x18] sm:$0xff]
  %v19 = vld [vmem:[%s0 + $0x20] sm:$0xff]
  %v20 = vld [vmem:[%s0 + $0x28] sm:$0xff]
  %v21 = vld [vmem:[%s0 + $0x30] sm:$0xff]
  %v22 = vld [vmem:[%s0 + $0x38] sm:$0xff]
  %v23 = vld [vmem:[%s0 + $0x40] sm:$0xff]
  %v24 = vld [vmem:[%s0 + $0x48] sm:$0xff]
  %v25 = vld [vmem:[%s0 + $0x50] sm:$0xff]
  %v26 = vld [vmem:[%s0 + $0x58] sm:$0xff]
  %v27 = vld [vmem:[%s0 + $0x60] sm:$0xff]
  %v28 = vld [vmem:[%s0 + $0x68] sm:$0xff]
  %v29 = vld [vmem:[%s0 + $0x70] sm:$0xff]
  %v30 = vld [vmem:[%s0 + $0x78] sm:$0xff]
  %v31 = vld [vmem:[%s1] sm:$0xf]
  %v32 = vld [vmem:[%s1 + $0x4] sm:$0xf]
  %v33 = vld [vmem:[%s1 + $0x8] sm:$0xf]
  %v34 = vld [vmem:[%s1 + $0xc] sm:$0xf]
  %v35 = vld [vmem:[%s1 + $0x10] sm:$0xf]
  %v36 = vld [vmem:[%s1 + $0x14] sm:$0xf]
  %v37 = vld [vmem:[%s1 + $0x18] sm:$0xf]
  %v38 = vld [vmem:[%s1 + $0x1c] sm:$0xf]
  %v39 = vld [vmem:[%s1 + $0x20] sm:$0xf]
  %v40 = vld [vmem:[%s1 + $0x24] sm:$0xf]
  %v41 = vld [vmem:[%s1 + $0x28] sm:$0xf]
  %v42 = vld [vmem:[%s1 + $0x2c] sm:$0xf]
  %v43 = vld [vmem:[%s1 + $0x30] sm:$0xf]
  %v44 = vld [vmem:[%s1 + $0x34] sm:$0xf]
  %v45 = vld [vmem:[%s1 + $0x38] sm:$0xf]
  %v46 = vld [vmem:[%s1 + $0x3c] sm:$0xf]
  %v47 = vld [vmem:[%s1 + $0x40] sm:$0xf]
  %v48 = vld [vmem:[%s1 + $0x44] sm:$0xf]
  %v49 = vld [vmem:[%s1 + $0x48] sm:$0xf]
  %v50 = vld [vmem:[%s1 + $0x4c] sm:$0xf]
  %v51 = vld [vmem:[%s1 + $0x50] sm:$0xf]
  %v52 = vld [vmem:[%s1 + $0x54] sm:$0xf]
  %v53 = vld [vmem:[%s1 + $0x58] sm:$0xf]
  %v54 = vld [vmem:[%s1 + $0x5c] sm:$0xf]
  %v55 = vld [vmem:[%s1 + $0x60] sm:$0xf]
  %v56 = vld [vmem:[%s1 + $0x64] sm:$0xf]
  %v57 = vld [vmem:[%s1 + $0x68] sm:$0xf]
  %v58 = vld [vmem:[%s1 + $0x6c] sm:$0xf]
  %v59 = vld [vmem:[%s1 + $0x70] sm:$0xf]
  %v60 = vld [vmem:[%s1 + $0x74] sm:$0xf]
  %v61 = vld [vmem:[%s1 + $0x78] sm:$0xf]
  %v62 = vld [vmem:[%s1 + $0x7c] sm:$0xf]
  %v63 = vld [vmem:[%s2] sm:$0x1]
  %v65 = vlaneseq
  %v66 = vshrl.u32 %v65, 7
  %v67 = vsub.s32 0, %v66
  %v68 = vrot.slane %v63, %v67
  %v86 = vunpack.c.l.b16 %v15
  %v87 = vunpack.c.h.b16 %v15
  %v88 = vunpack.c.l.b16 %v16
  %v89 = vunpack.c.h.b16 %v16
  %v90 = vunpack.c.l.b16 %v17
  %v91 = vunpack.c.h.b16 %v17
  %v92 = vunpack.c.l.b16 %v18
  %v93 = vunpack.c.h.b16 %v18
  %v94 = vunpack.c.l.b16 %v19
  %v95 = vunpack.c.h.b16 %v19
  %v96 = vunpack.c.l.b16 %v20
  %v97 = vunpack.c.h.b16 %v20
  %v98 = vunpack.c.l.b16 %v21
  %v99 = vunpack.c.h.b16 %v21
  %v100 = vunpack.c.l.b16 %v22
  %v101 = vunpack.c.h.b16 %v22
  %v102 = vunpack.c.l.b16 %v23
  %v103 = vunpack.c.h.b16 %v23
  %v104 = vunpack.c.l.b16 %v24
  %v105 = vunpack.c.h.b16 %v24
  %v106 = vunpack.c.l.b16 %v25
  %v107 = vunpack.c.h.b16 %v25
  %v108 = vunpack.c.l.b16 %v26
  %v109 = vunpack.c.h.b16 %v26
  %v110 = vunpack.c.l.b16 %v27
  %v111 = vunpack.c.h.b16 %v27
  %v112 = vunpack.c.l.b16 %v28
  %v113 = vunpack.c.h.b16 %v28
  %v114 = vunpack.c.l.b16 %v29
  %v115 = vunpack.c.h.b16 %v29
  %v116 = vunpack.c.l.b16 %v30
  %v117 = vunpack.c.h.b16 %v30
  %v118 = vpack.c.b16 %v88, %v86
  %v119 = vpack.c.b16 %v89, %v87
  %v120 = vpack.c.b16 %v92, %v90
  %v121 = vpack.c.b16 %v93, %v91
  %v122 = vpack.c.b16 %v96, %v94
  %v123 = vpack.c.b16 %v97, %v95
  %v124 = vpack.c.b16 %v100, %v98
  %v125 = vpack.c.b16 %v101, %v99
  %v126 = vpack.c.b16 %v104, %v102
  %v127 = vpack.c.b16 %v105, %v103
  %v128 = vpack.c.b16 %v108, %v106
  %v129 = vpack.c.b16 %v109, %v107
  %v130 = vpack.c.b16 %v112, %v110
  %v131 = vpack.c.b16 %v113, %v111
  %v132 = vpack.c.b16 %v116, %v114
  %v133 = vpack.c.b16 %v117, %v115
  %v182 = vunpack.c.l.b16 %v31
  %v183 = vunpack.c.l.b16 %v32
  %v184 = vunpack.c.l.b16 %v33
  %v185 = vunpack.c.l.b16 %v34
  %v186 = vunpack.c.l.b16 %v35
  %v187 = vunpack.c.l.b16 %v36
  %v188 = vunpack.c.l.b16 %v37
  %v189 = vunpack.c.l.b16 %v38
  %v190 = vunpack.c.l.b16 %v39
  %v191 = vunpack.c.l.b16 %v40
  %v192 = vunpack.c.l.b16 %v41
  %v193 = vunpack.c.l.b16 %v42
  %v194 = vunpack.c.l.b16 %v43
  %v195 = vunpack.c.l.b16 %v44
  %v196 = vunpack.c.l.b16 %v45
  %v197 = vunpack.c.l.b16 %v46
  %v198 = vunpack.c.l.b16 %v47
  %v199 = vunpack.c.l.b16 %v48
  %v200 = vunpack.c.l.b16 %v49
  %v201 = vunpack.c.l.b16 %v50
  %v202 = vunpack.c.l.b16 %v51
  %v203 = vunpack.c.l.b16 %v52
  %v204 = vunpack.c.l.b16 %v53
  %v205 = vunpack.c.l.b16 %v54
  %v206 = vunpack.c.l.b16 %v55
  %v207 = vunpack.c.l.b16 %v56
  %v208 = vunpack.c.l.b16 %v57
  %v209 = vunpack.c.l.b16 %v58
  %v210 = vunpack.c.l.b16 %v59
  %v211 = vunpack.c.l.b16 %v60
  %v212 = vunpack.c.l.b16 %v61
  %v213 = vunpack.c.l.b16 %v62
  %v214 = vpack.c.b16 %v183, %v182
  %v215 = vpack.c.b16 %v185, %v184
  %v216 = vpack.c.b16 %v187, %v186
  %v217 = vpack.c.b16 %v189, %v188
  %v218 = vpack.c.b16 %v191, %v190
  %v219 = vpack.c.b16 %v193, %v192
  %v220 = vpack.c.b16 %v195, %v194
  %v221 = vpack.c.b16 %v197, %v196
  %v222 = vpack.c.b16 %v199, %v198
  %v223 = vpack.c.b16 %v201, %v200
  %v224 = vpack.c.b16 %v203, %v202
  %v225 = vpack.c.b16 %v205, %v204
  %v226 = vpack.c.b16 %v207, %v206
  %v227 = vpack.c.b16 %v209, %v208
  %v228 = vpack.c.b16 %v211, %v210
  %v229 = vpack.c.b16 %v213, %v212
  %246 = vmatprep.subr.bf16.mxu0 0
  %247 = vmatpush1.bf16.msra.mxu0 %v214
  %248 = vmatprep.subr.bf16.mxu0 0
  %249 = vmatpush1.bf16.msra.mxu0 %v215
  %250 = vmatprep.subr.bf16.mxu0 0
  %251 = vmatpush1.bf16.msra.mxu0 %v216
  %252 = vmatprep.subr.bf16.mxu0 0
  %253 = vmatpush1.bf16.msra.mxu0 %v217
  %254 = vmatprep.subr.bf16.mxu0 0
  %255 = vmatpush1.bf16.msra.mxu0 %v218
  %256 = vmatprep.subr.bf16.mxu0 0
  %257 = vmatpush1.bf16.msra.mxu0 %v219
  %258 = vmatprep.subr.bf16.mxu0 0
  %259 = vmatpush1.bf16.msra.mxu0 %v220
  %260 = vmatprep.subr.bf16.mxu0 0
  %261 = vmatpush1.bf16.msra.mxu0 %v221
  %262 = vmatprep.subr.bf16.mxu0 0
  %263 = vmatpush1.bf16.msra.mxu0 %v222
  %264 = vmatprep.subr.bf16.mxu0 0
  %265 = vmatpush1.bf16.msra.mxu0 %v223
  %266 = vmatprep.subr.bf16.mxu0 0
  %267 = vmatpush1.bf16.msra.mxu0 %v224
  %268 = vmatprep.subr.bf16.mxu0 0
  %269 = vmatpush1.bf16.msra.mxu0 %v225
  %270 = vmatprep.subr.bf16.mxu0 0
  %271 = vmatpush1.bf16.msra.mxu0 %v226
  %272 = vmatprep.subr.bf16.mxu0 0
  %273 = vmatpush1.bf16.msra.mxu0 %v227
  %274 = vmatprep.subr.bf16.mxu0 0
  %275 = vmatpush1.bf16.msra.mxu0 %v228
  %276 = vmatprep.subr.bf16.mxu0 0
  %277 = vmatpush1.bf16.msra.mxu0 %v229
  %278 = vmatprep.mubr.bf16.mxu0 %v119
  %279 = vmatmul.mubr.bf16.gmra.mrb[0].mxu0 %v118
  %v280 = vpop.f32.mrb[0].mxu0
  %v281 = vadd.f32 %v68, %v280
  %v282 = vpop.f32.mrb[0].mxu0
  %v283 = vpop.f32.mrb[0].mxu0
  %v284 = vadd.f32 %v68, %v283
  %v285 = vpop.f32.mrb[0].mxu0
  %286 = vmatprep.mubr.bf16.mxu0 %v121
  %287 = vmatmul.mubr.bf16.gmra.mrb[0].mxu0 %v120
  %v288 = vpop.f32.mrb[0].mxu0
  %v289 = vadd.f32 %v68, %v288
  %v290 = vpop.f32.mrb[0].mxu0
  %v291 = vpop.f32.mrb[0].mxu0
  %v292 = vadd.f32 %v68, %v291
  %v293 = vpop.f32.mrb[0].mxu0
  %294 = vmatprep.mubr.bf16.mxu0 %v123
  %295 = vmatmul.mubr.bf16.gmra.mrb[0].mxu0 %v122
  %v296 = vpop.f32.mrb[0].mxu0
  %v297 = vadd.f32 %v68, %v296
  %v298 = vpop.f32.mrb[0].mxu0
  %v299 = vpop.f32.mrb[0].mxu0
  %v300 = vadd.f32 %v68, %v299
  %v301 = vpop.f32.mrb[0].mxu0
  %302 = vmatprep.mubr.bf16.mxu0 %v125
  %303 = vmatmul.mubr.bf16.gmra.mrb[0].mxu0 %v124
  %v304 = vpop.f32.mrb[0].mxu0
  %v305 = vadd.f32 %v68, %v304
  %v306 = vpop.f32.mrb[0].mxu0
  %v307 = vpop.f32.mrb[0].mxu0
  %v308 = vadd.f32 %v68, %v307
  %v309 = vpop.f32.mrb[0].mxu0
  %310 = vmatprep.mubr.bf16.mxu0 %v127
  %311 = vmatmul.mubr.bf16.gmra.mrb[0].mxu0 %v126
  %v312 = vpop.f32.mrb[0].mxu0
  %v313 = vadd.f32 %v68, %v312
  %v314 = vpop.f32.mrb[0].mxu0
  %v315 = vpop.f32.mrb[0].mxu0
  %v316 = vadd.f32 %v68, %v315
  %v317 = vpop.f32.mrb[0].mxu0
  %318 = vmatprep.mubr.bf16.mxu0 %v129
  %319 = vmatmul.mubr.bf16.gmra.mrb[0].mxu0 %v128
  %v320 = vpop.f32.mrb[0].mxu0
  %v321 = vadd.f32 %v68, %v320
  %v322 = vpop.f32.mrb[0].mxu0
  %v323 = vpop.f32.mrb[0].mxu0
  %v324 = vadd.f32 %v68, %v323
  %v325 = vpop.f32.mrb[0].mxu0
  %326 = vmatprep.mubr.bf16.mxu0 %v131
  %327 = vmatmul.mubr.bf16.gmra.mrb[0].mxu0 %v130
  %v328 = vpop.f32.mrb[0].mxu0
  %v329 = vadd.f32 %v68, %v328
  %v330 = vpop.f32.mrb[0].mxu0
  %v331 = vpop.f32.mrb[0].mxu0
  %v332 = vadd.f32 %v68, %v331
  %v333 = vpop.f32.mrb[0].mxu0
  %334 = vmatprep.mubr.bf16.mxu0 %v133
  %335 = vmatmul.mubr.bf16.gmra.mrb[0].mxu0 %v132
  %v336 = vpop.f32.mrb[0].mxu0
  %v337 = vadd.f32 %v68, %v336
  %v338 = vpop.f32.mrb[0].mxu0
  %v339 = vpop.f32.mrb[0].mxu0
  %v340 = vadd.f32 %v68, %v339
  %v341 = vpop.f32.mrb[0].mxu0
  %342 = vdwg.mxu0
  %vm343 = vcmp.gt.f32.partialorder %v281, 0.0
  %vm344 = vcmp.gt.f32.partialorder %v284, 0.0
  %vm345 = vcmp.gt.f32.partialorder %v289, 0.0
  %vm346 = vcmp.gt.f32.partialorder %v292, 0.0
  %vm347 = vcmp.gt.f32.partialorder %v297, 0.0
  %vm348 = vcmp.gt.f32.partialorder %v300, 0.0
  %vm349 = vcmp.gt.f32.partialorder %v305, 0.0
  %vm350 = vcmp.gt.f32.partialorder %v308, 0.0
  %vm351 = vcmp.gt.f32.partialorder %v313, 0.0
  %vm352 = vcmp.gt.f32.partialorder %v316, 0.0
  %vm353 = vcmp.gt.f32.partialorder %v321, 0.0
  %vm354 = vcmp.gt.f32.partialorder %v324, 0.0
  %vm355 = vcmp.gt.f32.partialorder %v329, 0.0
  %vm356 = vcmp.gt.f32.partialorder %v332, 0.0
  %vm357 = vcmp.gt.f32.partialorder %v337, 0.0
  %vm358 = vcmp.gt.f32.partialorder %v340, 0.0
  %v359 = vmul.f32 %v281, 0.01
  %v360 = vmul.f32 %v284, 0.01
  %v361 = vmul.f32 %v289, 0.01
  %v362 = vmul.f32 %v292, 0.01
  %v363 = vmul.f32 %v297, 0.01
  %v364 = vmul.f32 %v300, 0.01
  %v365 = vmul.f32 %v305, 0.01
  %v366 = vmul.f32 %v308, 0.01
  %v367 = vmul.f32 %v313, 0.01
  %v368 = vmul.f32 %v316, 0.01
  %v369 = vmul.f32 %v321, 0.01
  %v370 = vmul.f32 %v324, 0.01
  %v371 = vmul.f32 %v329, 0.01
  %v372 = vmul.f32 %v332, 0.01
  %v373 = vmul.f32 %v337, 0.01
  %v374 = vmul.f32 %v340, 0.01
  %v375 = vsel %vm343, %v281, %v359
  %v376 = vsel %vm344, %v284, %v360
  %v377 = vsel %vm345, %v289, %v361
  %v378 = vsel %vm346, %v292, %v362
  %v379 = vsel %vm347, %v297, %v363
  %v380 = vsel %vm348, %v300, %v364
  %v381 = vsel %vm349, %v305, %v365
  %v382 = vsel %vm350, %v308, %v366
  %v383 = vsel %vm351, %v313, %v367
  %v384 = vsel %vm352, %v316, %v368
  %v385 = vsel %vm353, %v321, %v369
  %v386 = vsel %vm354, %v324, %v370
  %v387 = vsel %vm355, %v329, %v371
  %v388 = vsel %vm356, %v332, %v372
  %v389 = vsel %vm357, %v337, %v373
  %v390 = vsel %vm358, %v340, %v374
  %v391 = vpack.c.bf16 %v376, %v375
  %v392 = vpack.c.bf16 %v378, %v377
  %v393 = vpack.c.bf16 %v380, %v379
  %v394 = vpack.c.bf16 %v382, %v381
  %v395 = vpack.c.bf16 %v384, %v383
  %v396 = vpack.c.bf16 %v386, %v385
  %v397 = vpack.c.bf16 %v388, %v387
  %v398 = vpack.c.bf16 %v390, %v389
  %v407 = vunpack.c.l.b16 %v391
  %v408 = vunpack.c.h.b16 %v391
  %v409 = vunpack.c.l.b16 %v392
  %v410 = vunpack.c.h.b16 %v392
  %v411 = vunpack.c.l.b16 %v393
  %v412 = vunpack.c.h.b16 %v393
  %v413 = vunpack.c.l.b16 %v394
  %v414 = vunpack.c.h.b16 %v394
  %v415 = vunpack.c.l.b16 %v395
  %v416 = vunpack.c.h.b16 %v395
  %v417 = vunpack.c.l.b16 %v396
  %v418 = vunpack.c.h.b16 %v396
  %v419 = vunpack.c.l.b16 %v397
  %v420 = vunpack.c.h.b16 %v397
  %v421 = vunpack.c.l.b16 %v398
  %v422 = vunpack.c.h.b16 %v398
  %v423 = vpack.c.b16 %v407, %v407
  %v424 = vpack.c.b16 %v408, %v408
  %v425 = vpack.c.b16 %v409, %v409
  %v426 = vpack.c.b16 %v410, %v410
  %v427 = vpack.c.b16 %v411, %v411
  %v428 = vpack.c.b16 %v412, %v412
  %v429 = vpack.c.b16 %v413, %v413
  %v430 = vpack.c.b16 %v414, %v414
  %v431 = vpack.c.b16 %v415, %v415
  %v432 = vpack.c.b16 %v416, %v416
  %v433 = vpack.c.b16 %v417, %v417
  %v434 = vpack.c.b16 %v418, %v418
  %v435 = vpack.c.b16 %v419, %v419
  %v436 = vpack.c.b16 %v420, %v420
  %v437 = vpack.c.b16 %v421, %v421
  %v438 = vpack.c.b16 %v422, %v422
  %455 = vst [vmem:[%s3] sm:$0xf] %v423
  %456 = vst [vmem:[%s3 + $0x4] sm:$0xf] %v424
  %457 = vst [vmem:[%s3 + $0x8] sm:$0xf] %v425
  %458 = vst [vmem:[%s3 + $0xc] sm:$0xf] %v426
  %459 = vst [vmem:[%s3 + $0x10] sm:$0xf] %v427
  %460 = vst [vmem:[%s3 + $0x14] sm:$0xf] %v428
  %461 = vst [vmem:[%s3 + $0x18] sm:$0xf] %v429
  %462 = vst [vmem:[%s3 + $0x1c] sm:$0xf] %v430
  %463 = vst [vmem:[%s3 + $0x20] sm:$0xf] %v431
  %464 = vst [vmem:[%s3 + $0x24] sm:$0xf] %v432
  %465 = vst [vmem:[%s3 + $0x28] sm:$0xf] %v433
  %466 = vst [vmem:[%s3 + $0x2c] sm:$0xf] %v434
  %467 = vst [vmem:[%s3 + $0x30] sm:$0xf] %v435
  %468 = vst [vmem:[%s3 + $0x34] sm:$0xf] %v436
  %469 = vst [vmem:[%s3 + $0x38] sm:$0xf] %v437
  %470 = vst [vmem:[%s3 + $0x3c] sm:$0xf] %v438
  // Predicated region
  $region14: #{dqn_forward.2} parent=0 // pred_check
    _
  $region15: #{dqn_forward.2} parent=0 // pred_check_branch
    %472 = sbr.rel (0) target = $region17
  $region16: #{dqn_forward.2} parent=0 // pred_region
    _
  $region17: #{dqn_forward.2} parent=0 // pred_fallthru
    _
  // Predicated region
  $region18: #{dqn_forward.2} parent=0 // pred_check
    _
  $region19: #{dqn_forward.2} parent=0 // pred_check_branch
    %474 = sbr.rel (0) target = $region21
  $region20: #{dqn_forward.2} parent=0 // pred_region
    _
  $region21: #{dqn_forward.2} parent=0 // pred_fallthru
    _

// kernel: dqn_forward.3
$region0: #{dqn_forward.3}
  #allocation0 [shape = 'u32[]', space=smem, size = 0x4, offset = 0x4, fixed_abs, tag = 'smem constant byte address 0x4 - core index']
  #allocation1 [shape = 'u32[144,128]{1,0:T(1,128)}', space=vmem, size = 0x12000, scoped, tag = 'internal scratch']
  %s0 = inlined_call_operand.vmem [shape: bf16[72,2048], index: 0, kind: input, shape index: {}]
  %s1 = inlined_call_operand.vmem [shape: bf16[2048,128], index: 1, kind: input, shape index: {}]
  %s2 = inlined_call_operand.vmem [shape: f32[1,128], index: 2, kind: input, shape index: {}]
  %s3 = inlined_call_operand.vmem [shape: bf16[1152,128], index: 3, kind: input, shape index: {}]
  %s4 = inlined_call_operand.vmem [shape: f32[1,128], index: 4, kind: input, shape index: {}]
  %s5 = inlined_call_operand.vmem [shape: bf16[128,512], index: 5, kind: input, shape index: {}]
  %s6 = inlined_call_operand.vmem [shape: f32[1,512], index: 6, kind: input, shape index: {}]
  %s7 = inlined_call_operand.vmem [shape: bf16[512,128], index: 7, kind: input, shape index: {}]
  %s8 = inlined_call_operand.vmem [shape: f32[1,128], index: 8, kind: input, shape index: {}]
  %s9 = inlined_call_operand.vmem [shape: f32[8,128], index: 9, kind: output, shape index: {}]
  %s10 = sld [smem:[#allocation0]]
  $region46: #{dqn_forward.3} parent=0
    _
  %s12 = ssub.s32 1, %s10
  %s13 = scalar_select 0, %s12, %s10
  // Predicated region
  $region2: #{dqn_forward.3} parent=0 // pred_check
    _
  $region3: #{dqn_forward.3} parent=0 // pred_check_branch
    %15 = sbr.rel (0) target = $region5
  $region4: #{dqn_forward.3} parent=0 // pred_region
    _
  $region5: #{dqn_forward.3} parent=0 // pred_fallthru
    _
  // Predicated region
  $region6: #{dqn_forward.3} parent=0 // pred_check
    _
  $region7: #{dqn_forward.3} parent=0 // pred_check_branch
    %17 = sbr.rel (0) target = $region9
  $region8: #{dqn_forward.3} parent=0 // pred_region
    _
  $region9: #{dqn_forward.3} parent=0 // pred_fallthru
    _
  // Predicated region
  $region10: #{dqn_forward.3} parent=0 // pred_check
    _
  $region11: #{dqn_forward.3} parent=0 // pred_check_branch
    %19 = sbr.rel (0) target = $region13
  $region12: #{dqn_forward.3} parent=0 // pred_region
    _
  $region13: #{dqn_forward.3} parent=0 // pred_fallthru
    _
  // Predicated region
  $region14: #{dqn_forward.3} parent=0 // pred_check
    _
  $region15: #{dqn_forward.3} parent=0 // pred_check_branch
    %21 = sbr.rel (0) target = $region17
  $region16: #{dqn_forward.3} parent=0 // pred_region
    _
  $region17: #{dqn_forward.3} parent=0 // pred_fallthru
    _
  // Predicated region
  $region18: #{dqn_forward.3} parent=0 // pred_check
    _
  $region19: #{dqn_forward.3} parent=0 // pred_check_branch
    %23 = sbr.rel (0) target = $region21
  $region20: #{dqn_forward.3} parent=0 // pred_region
    _
  $region21: #{dqn_forward.3} parent=0 // pred_fallthru
    _
  // Predicated region
  $region22: #{dqn_forward.3} parent=0 // pred_check
    _
  $region23: #{dqn_forward.3} parent=0 // pred_check_branch
    %25 = sbr.rel (0) target = $region25
  $region24: #{dqn_forward.3} parent=0 // pred_region
    _
  $region25: #{dqn_forward.3} parent=0 // pred_fallthru
    _
  // Predicated region
  $region26: #{dqn_forward.3} parent=0 // pred_check
    _
  $region27: #{dqn_forward.3} parent=0 // pred_check_branch
    %27 = sbr.rel (0) target = $region29
  $region28: #{dqn_forward.3} parent=0 // pred_region
    _
  $region29: #{dqn_forward.3} parent=0 // pred_fallthru
    _
  // Predicated region
  $region30: #{dqn_forward.3} parent=0 // pred_check
    _
  $region31: #{dqn_forward.3} parent=0 // pred_check_branch
    %29 = sbr.rel (0) target = $region33
  $region32: #{dqn_forward.3} parent=0 // pred_region
    _
  $region33: #{dqn_forward.3} parent=0 // pred_fallthru
    _
  // Predicated region
  $region34: #{dqn_forward.3} parent=0 // pred_check
    _
  $region35: #{dqn_forward.3} parent=0 // pred_check_branch
    %31 = sbr.rel (0) target = $region37
  $region36: #{dqn_forward.3} parent=0 // pred_region
    _
  $region37: #{dqn_forward.3} parent=0 // pred_fallthru
    _
  %v33 = vld [vmem:[%s0] sm:$0xff]
  %v34 = vld [vmem:[%s0 + $0x8] sm:$0xff]
  %v35 = vld [vmem:[%s0 + $0x10] sm:$0xff]
  %v36 = vld [vmem:[%s0 + $0x18] sm:$0xff]
  %v37 = vld [vmem:[%s0 + $0x20] sm:$0xff]
  %v38 = vld [vmem:[%s0 + $0x28] sm:$0xff]
  %v39 = vld [vmem:[%s0 + $0x30] sm:$0xff]
  %v40 = vld [vmem:[%s0 + $0x38] sm:$0xff]
  %v41 = vld [vmem:[%s0 + $0x40] sm:$0xff]
  %v42 = vld [vmem:[%s0 + $0x48] sm:$0xff]
  %v43 = vld [vmem:[%s0 + $0x50] sm:$0xff]
  %v44 = vld [vmem:[%s0 + $0x58] sm:$0xff]
  %v45 = vld [vmem:[%s0 + $0x60] sm:$0xff]
  %v46 = vld [vmem:[%s0 + $0x68] sm:$0xff]
  %v47 = vld [vmem:[%s0 + $0x70] sm:$0xff]
  %v48 = vld [vmem:[%s0 + $0x78] sm:$0xff]
  %v49 = vld [vmem:[%s0 + $0x80] sm:$0xff]
  %v50 = vld [vmem:[%s0 + $0x88] sm:$0xff]
  %v51 = vld [vmem:[%s0 + $0x90] sm:$0xff]
  %v52 = vld [vmem:[%s0 + $0x98] sm:$0xff]
  %v53 = vld [vmem:[%s0 + $0xa0] sm:$0xff]
  %v54 = vld [vmem:[%s0 + $0xa8] sm:$0xff]
  %v55 = vld [vmem:[%s0 + $0xb0] sm:$0xff]
  %v56 = vld [vmem:[%s0 + $0xb8] sm:$0xff]
  %v57 = vld [vmem:[%s0 + $0xc0] sm:$0xff]
  %v58 = vld [vmem:[%s0 + $0xc8] sm:$0xff]
  %v59 = vld [vmem:[%s0 + $0xd0] sm:$0xff]
  %v60 = vld [vmem:[%s0 + $0xd8] sm:$0xff]
  %v61 = vld [vmem:[%s0 + $0xe0] sm:$0xff]
  %v62 = vld [vmem:[%s0 + $0xe8] sm:$0xff]
  %v63 = vld [vmem:[%s0 + $0xf0] sm:$0xff]
  %v64 = vld [vmem:[%s0 + $0xf8] sm:$0xff]
  %v65 = vld [vmem:[%s0 + $0x100] sm:$0xff]
  %v66 = vld [vmem:[%s0 + $0x108] sm:$0xff]
  %v67 = vld [vmem:[%s0 + $0x110] sm:$0xff]
  %v68 = vld [vmem:[%s0 + $0x118] sm:$0xff]
  %v69 = vld [vmem:[%s0 + $0x120] sm:$0xff]
  %v70 = vld [vmem:[%s0 + $0x128] sm:$0xff]
  %v71 = vld [vmem:[%s0 + $0x130] sm:$0xff]
  %v72 = vld [vmem:[%s0 + $0x138] sm:$0xff]
  %v73 = vld [vmem:[%s0 + $0x140] sm:$0xff]
  %v74 = vld [vmem:[%s0 + $0x148] sm:$0xff]
  %v75 = vld [vmem:[%s0 + $0x150] sm:$0xff]
  %v76 = vld [vmem:[%s0 + $0x158] sm:$0xff]
  %v77 = vld [vmem:[%s0 + $0x160] sm:$0xff]
  %v78 = vld [vmem:[%s0 + $0x168] sm:$0xff]
  %v79 = vld [vmem:[%s0 + $0x170] sm:$0xff]
  %v80 = vld [vmem:[%s0 + $0x178] sm:$0xff]
  %v81 = vld [vmem:[%s0 + $0x180] sm:$0xff]
  %v82 = vld [vmem:[%s0 + $0x188] sm:$0xff]
  %v83 = vld [vmem:[%s0 + $0x190] sm:$0xff]
  %v84 = vld [vmem:[%s0 + $0x198] sm:$0xff]
  %v85 = vld [vmem:[%s0 + $0x1a0] sm:$0xff]
  %v86 = vld [vmem:[%s0 + $0x1a8] sm:$0xff]
  %v87 = vld [vmem:[%s0 + $0x1b0] sm:$0xff]
  %v88 = vld [vmem:[%s0 + $0x1b8] sm:$0xff]
  %v89 = vld [vmem:[%s0 + $0x1c0] sm:$0xff]
  %v90 = vld [vmem:[%s0 + $0x1c8] sm:$0xff]
  %v91 = vld [vmem:[%s0 + $0x1d0] sm:$0xff]
  %v92 = vld [vmem:[%s0 + $0x1d8] sm:$0xff]
  %v93 = vld [vmem:[%s0 + $0x1e0] sm:$0xff]
  %v94 = vld [vmem:[%s0 + $0x1e8] sm:$0xff]
  %v95 = vld [vmem:[%s0 + $0x1f0] sm:$0xff]
  %v96 = vld [vmem:[%s0 + $0x1f8] sm:$0xff]
  %v97 = vld [vmem:[%s0 + $0x200] sm:$0xff]
  %v98 = vld [vmem:[%s0 + $0x208] sm:$0xff]
  %v99 = vld [vmem:[%s0 + $0x210] sm:$0xff]
  %v100 = vld [vmem:[%s0 + $0x218] sm:$0xff]
  %v101 = vld [vmem:[%s0 + $0x220] sm:$0xff]
  %v102 = vld [vmem:[%s0 + $0x228] sm:$0xff]
  %v103 = vld [vmem:[%s0 + $0x230] sm:$0xff]
  %v104 = vld [vmem:[%s0 + $0x238] sm:$0xff]
  %v105 = vld [vmem:[%s1] sm:$0xf]
  %v106 = vld [vmem:[%s1 + $0x4] sm:$0xf]
  %v107 = vld [vmem:[%s1 + $0x8] sm:$0xf]
  %v108 = vld [vmem:[%s1 + $0xc] sm:$0xf]
  %v109 = vld [vmem:[%s1 + $0x10] sm:$0xf]
  %v110 = vld [vmem:[%s1 + $0x14] sm:$0xf]
  %v111 = vld [vmem:[%s1 + $0x18] sm:$0xf]
  %v112 = vld [vmem:[%s1 + $0x1c] sm:$0xf]
  %v113 = vld [vmem:[%s1 + $0x20] sm:$0xf]
  %v114 = vld [vmem:[%s1 + $0x24] sm:$0xf]
  %v115 = vld [vmem:[%s1 + $0x28] sm:$0xf]
  %v116 = vld [vmem:[%s1 + $0x2c] sm:$0xf]
  %v117 = vld [vmem:[%s1 + $0x30] sm:$0xf]
  %v118 = vld [vmem:[%s1 + $0x34] sm:$0xf]
  %v119 = vld [vmem:[%s1 + $0x38] sm:$0xf]
  %v120 = vld [vmem:[%s1 + $0x3c] sm:$0xf]
  %v121 = vld [vmem:[%s1 + $0x40] sm:$0xf]
  %v122 = vld [vmem:[%s1 + $0x44] sm:$0xf]
  %v123 = vld [vmem:[%s1 + $0x48] sm:$0xf]
  %v124 = vld [vmem:[%s1 + $0x4c] sm:$0xf]
  %v125 = vld [vmem:[%s1 + $0x50] sm:$0xf]
  %v126 = vld [vmem:[%s1 + $0x54] sm:$0xf]
  %v127 = vld [vmem:[%s1 + $0x58] sm:$0xf]
  %v128 = vld [vmem:[%s1 + $0x5c] sm:$0xf]
  %v129 = vld [vmem:[%s1 + $0x60] sm:$0xf]
  %v130 = vld [vmem:[%s1 + $0x64] sm:$0xf]
  %v131 = vld [vmem:[%s1 + $0x68] sm:$0xf]
  %v132 = vld [vmem:[%s1 + $0x6c] sm:$0xf]
  %v133 = vld [vmem:[%s1 + $0x70] sm:$0xf]
  %v134 = vld [vmem:[%s1 + $0x74] sm:$0xf]
  %v135 = vld [vmem:[%s1 + $0x78] sm:$0xf]
  %v136 = vld [vmem:[%s1 + $0x7c] sm:$0xf]
  %v137 = vld [vmem:[%s1 + $0x80] sm:$0xf]
  %v138 = vld [vmem:[%s1 + $0x84] sm:$0xf]
  %v139 = vld [vmem:[%s1 + $0x88] sm:$0xf]
  %v140 = vld [vmem:[%s1 + $0x8c] sm:$0xf]
  %v141 = vld [vmem:[%s1 + $0x90] sm:$0xf]
  %v142 = vld [vmem:[%s1 + $0x94] sm:$0xf]
  %v143 = vld [vmem:[%s1 + $0x98] sm:$0xf]
  %v144 = vld [vmem:[%s1 + $0x9c] sm:$0xf]
  %v145 = vld [vmem:[%s1 + $0xa0] sm:$0xf]
  %v146 = vld [vmem:[%s1 + $0xa4] sm:$0xf]
  %v147 = vld [vmem:[%s1 + $0xa8] sm:$0xf]
  %v148 = vld [vmem:[%s1 + $0xac] sm:$0xf]
  %v149 = vld [vmem:[%s1 + $0xb0] sm:$0xf]
  %v150 = vld [vmem:[%s1 + $0xb4] sm:$0xf]
  %v151 = vld [vmem:[%s1 + $0xb8] sm:$0xf]
  %v152 = vld [vmem:[%s1 + $0xbc] sm:$0xf]
  %v153 = vld [vmem:[%s1 + $0xc0] sm:$0xf]
  %v154 = vld [vmem:[%s1 + $0xc4] sm:$0xf]
  %v155 = vld [vmem:[%s1 + $0xc8] sm:$0xf]
  %v156 = vld [vmem:[%s1 + $0xcc] sm:$0xf]
  %v157 = vld [vmem:[%s1 + $0xd0] sm:$0xf]
  %v158 = vld [vmem:[%s1 + $0xd4] sm:$0xf]
  %v159 = vld [vmem:[%s1 + $0xd8] sm:$0xf]
  %v160 = vld [vmem:[%s1 + $0xdc] sm:$0xf]
  %v161 = vld [vmem:[%s1 + $0xe0] sm:$0xf]
  %v162 = vld [vmem:[%s1 + $0xe4] sm:$0xf]
  %v163 = vld [vmem:[%s1 + $0xe8] sm:$0xf]
  %v164 = vld [vmem:[%s1 + $0xec] sm:$0xf]
  %v165 = vld [vmem:[%s1 + $0xf0] sm:$0xf]
  %v166 = vld [vmem:[%s1 + $0xf4] sm:$0xf]
  %v167 = vld [vmem:[%s1 + $0xf8] sm:$0xf]
  %v168 = vld [vmem:[%s1 + $0xfc] sm:$0xf]
  %v169 = vld [vmem:[%s1 + $0x100] sm:$0xf]
  %v170 = vld [vmem:[%s1 + $0x104] sm:$0xf]
  %v171 = vld [vmem:[%s1 + $0x108] sm:$0xf]
  %v172 = vld [vmem:[%s1 + $0x10c] sm:$0xf]
  %v173 = vld [vmem:[%s1 + $0x110] sm:$0xf]
  %v174 = vld [vmem:[%s1 + $0x114] sm:$0xf]
  %v175 = vld [vmem:[%s1 + $0x118] sm:$0xf]
  %v176 = vld [vmem:[%s1 + $0x11c] sm:$0xf]
  %v177 = vld [vmem:[%s1 + $0x120] sm:$0xf]
  %v178 = vld [vmem:[%s1 + $0x124] sm:$0xf]
  %v179 = vld [vmem:[%s1 + $0x128] sm:$0xf]
  %v180 = vld [vmem:[%s1 + $0x12c] sm:$0xf]
  %v181 = vld [vmem:[%s1 + $0x130] sm:$0xf]
  %v182 = vld [vmem:[%s1 + $0x134] sm:$0xf]
  %v183 = vld [vmem:[%s1 + $0x138] sm:$0xf]
  %v184 = vld [vmem:[%s1 + $0x13c] sm:$0xf]
  %v185 = vld [vmem:[%s1 + $0x140] sm:$0xf]
  %v186 = vld [vmem:[%s1 + $0x144] sm:$0xf]
  %v187 = vld [vmem:[%s1 + $0x148] sm:$0xf]
  %v188 = vld [vmem:[%s1 + $0x14c] sm:$0xf]
  %v189 = vld [vmem:[%s1 + $0x150] sm:$0xf]
  %v190 = vld [vmem:[%s1 + $0x154] sm:$0xf]
  %v191 = vld [vmem:[%s1 + $0x158] sm:$0xf]
  %v192 = vld [vmem:[%s1 + $0x15c] sm:$0xf]
  %v193 = vld [vmem:[%s1 + $0x160] sm:$0xf]
  %v194 = vld [vmem:[%s1 + $0x164] sm:$0xf]
  %v195 = vld [vmem:[%s1 + $0x168] sm:$0xf]
  %v196 = vld [vmem:[%s1 + $0x16c] sm:$0xf]
  %v197 = vld [vmem:[%s1 + $0x170] sm:$0xf]
  %v198 = vld [vmem:[%s1 + $0x174] sm:$0xf]
  %v199 = vld [vmem:[%s1 + $0x178] sm:$0xf]
  %v200 = vld [vmem:[%s1 + $0x17c] sm:$0xf]
  %v201 = vld [vmem:[%s1 + $0x180] sm:$0xf]
  %v202 = vld [vmem:[%s1 + $0x184] sm:$0xf]
  %v203 = vld [vmem:[%s1 + $0x188] sm:$0xf]
  %v204 = vld [vmem:[%s1 + $0x18c] sm:$0xf]
  %v205 = vld [vmem:[%s1 + $0x190] sm:$0xf]
  %v206 = vld [vmem:[%s1 + $0x194] sm:$0xf]
  %v207 = vld [vmem:[%s1 + $0x198] sm:$0xf]
  %v208 = vld [vmem:[%s1 + $0x19c] sm:$0xf]
  %v209 = vld [vmem:[%s1 + $0x1a0] sm:$0xf]
  %v210 = vld [vmem:[%s1 + $0x1a4] sm:$0xf]
  %v211 = vld [vmem:[%s1 + $0x1a8] sm:$0xf]
  %v212 = vld [vmem:[%s1 + $0x1ac] sm:$0xf]
  %v213 = vld [vmem:[%s1 + $0x1b0] sm:$0xf]
  %v214 = vld [vmem:[%s1 + $0x1b4] sm:$0xf]
  %v215 = vld [vmem:[%s1 + $0x1b8] sm:$0xf]
  %v216 = vld [vmem:[%s1 + $0x1bc] sm:$0xf]
  %v217 = vld [vmem:[%s1 + $0x1c0] sm:$0xf]
  %v218 = vld [vmem:[%s1 + $0x1c4] sm:$0xf]
  %v219 = vld [vmem:[%s1 + $0x1c8] sm:$0xf]
  %v220 = vld [vmem:[%s1 + $0x1cc] sm:$0xf]
  %v221 = vld [vmem:[%s1 + $0x1d0] sm:$0xf]
  %v222 = vld [vmem:[%s1 + $0x1d4] sm:$0xf]
  %v223 = vld [vmem:[%s1 + $0x1d8] sm:$0xf]
  %v224 = vld [vmem:[%s1 + $0x1dc] sm:$0xf]
  %v225 = vld [vmem:[%s1 + $0x1e0] sm:$0xf]
  %v226 = vld [vmem:[%s1 + $0x1e4] sm:$0xf]
  %v227 = vld [vmem:[%s1 + $0x1e8] sm:$0xf]
  %v228 = vld [vmem:[%s1 + $0x1ec] sm:$0xf]
  %v229 = vld [vmem:[%s1 + $0x1f0] sm:$0xf]
  %v230 = vld [vmem:[%s1 + $0x1f4] sm:$0xf]
  %v231 = vld [vmem:[%s1 + $0x1f8] sm:$0xf]
  %v232 = vld [vmem:[%s1 + $0x1fc] sm:$0xf]
  %v233 = vld [vmem:[%s1 + $0x200] sm:$0xf]
  %v234 = vld [vmem:[%s1 + $0x204] sm:$0xf]
  %v235 = vld [vmem:[%s1 + $0x208] sm:$0xf]
  %v236 = vld [vmem:[%s1 + $0x20c] sm:$0xf]
  %v237 = vld [vmem:[%s1 + $0x210] sm:$0xf]
  %v238 = vld [vmem:[%s1 + $0x214] sm:$0xf]
  %v239 = vld [vmem:[%s1 + $0x218] sm:$0xf]
  %v240 = vld [vmem:[%s1 + $0x21c] sm:$0xf]
  %v241 = vld [vmem:[%s1 + $0x220] sm:$0xf]
  %v242 = vld [vmem:[%s1 + $0x224] sm:$0xf]
  %v243 = vld [vmem:[%s1 + $0x228] sm:$0xf]
  %v244 = vld [vmem:[%s1 + $0x22c] sm:$0xf]
  %v245 = vld [vmem:[%s1 + $0x230] sm:$0xf]
  %v246 = vld [vmem:[%s1 + $0x234] sm:$0xf]
  %v247 = vld [vmem:[%s1 + $0x238] sm:$0xf]
  %v248 = vld [vmem:[%s1 + $0x23c] sm:$0xf]
  %v249 = vld [vmem:[%s1 + $0x240] sm:$0xf]
  %v250 = vld [vmem:[%s1 + $0x244] sm:$0xf]
  %v251 = vld [vmem:[%s1 + $0x248] sm:$0xf]
  %v252 = vld [vmem:[%s1 + $0x24c] sm:$0xf]
  %v253 = vld [vmem:[%s1 + $0x250] sm:$0xf]
  %v254 = vld [vmem:[%s1 + $0x254] sm:$0xf]
  %v255 = vld [vmem:[%s1 + $0x258] sm:$0xf]
  %v256 = vld [vmem:[%s1 + $0x25c] sm:$0xf]
  %v257 = vld [vmem:[%s1 + $0x260] sm:$0xf]
  %v258 = vld [vmem:[%s1 + $0x264] sm:$0xf]
  %v259 = vld [vmem:[%s1 + $0x268] sm:$0xf]
  %v260 = vld [vmem:[%s1 + $0x26c] sm:$0xf]
  %v261 = vld [vmem:[%s1 + $0x270] sm:$0xf]
  %v262 = vld [vmem:[%s1 + $0x274] sm:$0xf]
  %v263 = vld [vmem:[%s1 + $0x278] sm:$0xf]
  %v264 = vld [vmem:[%s1 + $0x27c] sm:$0xf]
  %v265 = vld [vmem:[%s1 + $0x280] sm:$0xf]
  %v266 = vld [vmem:[%s1 + $0x284] sm:$0xf]
  %v267 = vld [vmem:[%s1 + $0x288] sm:$0xf]
  %v268 = vld [vmem:[%s1 + $0x28c] sm:$0xf]
  %v269 = vld [vmem:[%s1 + $0x290] sm:$0xf]
  %v270 = vld [vmem:[%s1 + $0x294] sm:$0xf]
  %v271 = vld [vmem:[%s1 + $0x298] sm:$0xf]
  %v272 = vld [vmem:[%s1 + $0x29c] sm:$0xf]
  %v273 = vld [vmem:[%s1 + $0x2a0] sm:$0xf]
  %v274 = vld [vmem:[%s1 + $0x2a4] sm:$0xf]
  %v275 = vld [vmem:[%s1 + $0x2a8] sm:$0xf]
  %v276 = vld [vmem:[%s1 + $0x2ac] sm:$0xf]
  %v277 = vld [vmem:[%s1 + $0x2b0] sm:$0xf]
  %v278 = vld [vmem:[%s1 + $0x2b4] sm:$0xf]
  %v279 = vld [vmem:[%s1 + $0x2b8] sm:$0xf]
  %v280 = vld [vmem:[%s1 + $0x2bc] sm:$0xf]
  %v281 = vld [vmem:[%s1 + $0x2c0] sm:$0xf]
  %v282 = vld [vmem:[%s1 + $0x2c4] sm:$0xf]
  %v283 = vld [vmem:[%s1 + $0x2c8] sm:$0xf]
  %v284 = vld [vmem:[%s1 + $0x2cc] sm:$0xf]
  %v285 = vld [vmem:[%s1 + $0x2d0] sm:$0xf]
  %v286 = vld [vmem:[%s1 + $0x2d4] sm:$0xf]
  %v287 = vld [vmem:[%s1 + $0x2d8] sm:$0xf]
  %v288 = vld [vmem:[%s1 + $0x2dc] sm:$0xf]
  %v289 = vld [vmem:[%s1 + $0x2e0] sm:$0xf]
  %v290 = vld [vmem:[%s1 + $0x2e4] sm:$0xf]
  %v291 = vld [vmem:[%s1 + $0x2e8] sm:$0xf]
  %v292 = vld [vmem:[%s1 + $0x2ec] sm:$0xf]
  %v293 = vld [vmem:[%s1 + $0x2f0] sm:$0xf]
  %v294 = vld [vmem:[%s1 + $0x2f4] sm:$0xf]
  %v295 = vld [vmem:[%s1 + $0x2f8] sm:$0xf]
  %v296 = vld [vmem:[%s1 + $0x2fc] sm:$0xf]
  %v297 = vld [vmem:[%s1 + $0x300] sm:$0xf]
  %v298 = vld [vmem:[%s1 + $0x304] sm:$0xf]
  %v299 = vld [vmem:[%s1 + $0x308] sm:$0xf]
  %v300 = vld [vmem:[%s1 + $0x30c] sm:$0xf]
  %v301 = vld [vmem:[%s1 + $0x310] sm:$0xf]
  %v302 = vld [vmem:[%s1 + $0x314] sm:$0xf]
  %v303 = vld [vmem:[%s1 + $0x318] sm:$0xf]
  %v304 = vld [vmem:[%s1 + $0x31c] sm:$0xf]
  %v305 = vld [vmem:[%s1 + $0x320] sm:$0xf]
  %v306 = vld [vmem:[%s1 + $0x324] sm:$0xf]
  %v307 = vld [vmem:[%s1 + $0x328] sm:$0xf]
  %v308 = vld [vmem:[%s1 + $0x32c] sm:$0xf]
  %v309 = vld [vmem:[%s1 + $0x330] sm:$0xf]
  %v310 = vld [vmem:[%s1 + $0x334] sm:$0xf]
  %v311 = vld [vmem:[%s1 + $0x338] sm:$0xf]
  %v312 = vld [vmem:[%s1 + $0x33c] sm:$0xf]
  %v313 = vld [vmem:[%s1 + $0x340] sm:$0xf]
  %v314 = vld [vmem:[%s1 + $0x344] sm:$0xf]
  %v315 = vld [vmem:[%s1 + $0x348] sm:$0xf]
  %v316 = vld [vmem:[%s1 + $0x34c] sm:$0xf]
  %v317 = vld [vmem:[%s1 + $0x350] sm:$0xf]
  %v318 = vld [vmem:[%s1 + $0x354] sm:$0xf]
  %v319 = vld [vmem:[%s1 + $0x358] sm:$0xf]
  %v320 = vld [vmem:[%s1 + $0x35c] sm:$0xf]
  %v321 = vld [vmem:[%s1 + $0x360] sm:$0xf]
  %v322 = vld [vmem:[%s1 + $0x364] sm:$0xf]
  %v323 = vld [vmem:[%s1 + $0x368] sm:$0xf]
  %v324 = vld [vmem:[%s1 + $0x36c] sm:$0xf]
  %v325 = vld [vmem:[%s1 + $0x370] sm:$0xf]
  %v326 = vld [vmem:[%s1 + $0x374] sm:$0xf]
  %v327 = vld [vmem:[%s1 + $0x378] sm:$0xf]
  %v328 = vld [vmem:[%s1 + $0x37c] sm:$0xf]
  %v329 = vld [vmem:[%s1 + $0x380] sm:$0xf]
  %v330 = vld [vmem:[%s1 + $0x384] sm:$0xf]
  %v331 = vld [vmem:[%s1 + $0x388] sm:$0xf]
  %v332 = vld [vmem:[%s1 + $0x38c] sm:$0xf]
  %v333 = vld [vmem:[%s1 + $0x390] sm:$0xf]
  %v334 = vld [vmem:[%s1 + $0x394] sm:$0xf]
  %v335 = vld [vmem:[%s1 + $0x398] sm:$0xf]
  %v336 = vld [vmem:[%s1 + $0x39c] sm:$0xf]
  %v337 = vld [vmem:[%s1 + $0x3a0] sm:$0xf]
  %v338 = vld [vmem:[%s1 + $0x3a4] sm:$0xf]
  %v339 = vld [vmem:[%s1 + $0x3a8] sm:$0xf]
  %v340 = vld [vmem:[%s1 + $0x3ac] sm:$0xf]
  %v341 = vld [vmem:[%s1 + $0x3b0] sm:$0xf]
  %v342 = vld [vmem:[%s1 + $0x3b4] sm:$0xf]
  %v343 = vld [vmem:[%s1 + $0x3b8] sm:$0xf]
  %v344 = vld [vmem:[%s1 + $0x3bc] sm:$0xf]
  %v345 = vld [vmem:[%s1 + $0x3c0] sm:$0xf]
  %v346 = vld [vmem:[%s1 + $0x3c4] sm:$0xf]
  %v347 = vld [vmem:[%s1 + $0x3c8] sm:$0xf]
  %v348 = vld [vmem:[%s1 + $0x3cc] sm:$0xf]
  %v349 = vld [vmem:[%s1 + $0x3d0] sm:$0xf]
  %v350 = vld [vmem:[%s1 + $0x3d4] sm:$0xf]
  %v351 = vld [vmem:[%s1 + $0x3d8] sm:$0xf]
  %v352 = vld [vmem:[%s1 + $0x3dc] sm:$0xf]
  %v353 = vld [vmem:[%s1 + $0x3e0] sm:$0xf]
  %v354 = vld [vmem:[%s1 + $0x3e4] sm:$0xf]
  %v355 = vld [vmem:[%s1 + $0x3e8] sm:$0xf]
  %v356 = vld [vmem:[%s1 + $0x3ec] sm:$0xf]
  %v357 = vld [vmem:[%s1 + $0x3f0] sm:$0xf]
  %v358 = vld [vmem:[%s1 + $0x3f4] sm:$0xf]
  %v359 = vld [vmem:[%s1 + $0x3f8] sm:$0xf]
  %v360 = vld [vmem:[%s1 + $0x3fc] sm:$0xf]
  %v361 = vld [vmem:[%s2] sm:$0x1]
  %v363 = vlaneseq
  %v364 = vshrl.u32 %v363, 7
  %v365 = vsub.s32 0, %v364
  %v366 = vrot.slane %v361, %v365
  %v440 = vunpack.c.l.b16 %v33
  %v441 = vunpack.c.h.b16 %v33
  %v442 = vunpack.c.l.b16 %v34
  %v443 = vunpack.c.h.b16 %v34
  %v444 = vunpack.c.l.b16 %v35
  %v445 = vunpack.c.h.b16 %v35
  %v446 = vunpack.c.l.b16 %v36
  %v447 = vunpack.c.h.b16 %v36
  %v448 = vunpack.c.l.b16 %v37
  %v449 = vunpack.c.h.b16 %v37
  %v450 = vunpack.c.l.b16 %v38
  %v451 = vunpack.c.h.b16 %v38
  %v452 = vunpack.c.l.b16 %v39
  %v453 = vunpack.c.h.b16 %v39
  %v454 = vunpack.c.l.b16 %v40
  %v455 = vunpack.c.h.b16 %v40
  %v456 = vunpack.c.l.b16 %v41
  %v457 = vunpack.c.h.b16 %v41
  %v458 = vunpack.c.l.b16 %v42
  %v459 = vunpack.c.h.b16 %v42
  %v460 = vunpack.c.l.b16 %v43
  %v461 = vunpack.c.h.b16 %v43
  %v462 = vunpack.c.l.b16 %v44
  %v463 = vunpack.c.h.b16 %v44
  %v464 = vunpack.c.l.b16 %v45
  %v465 = vunpack.c.h.b16 %v45
  %v466 = vunpack.c.l.b16 %v46
  %v467 = vunpack.c.h.b16 %v46
  %v468 = vunpack.c.l.b16 %v47
  %v469 = vunpack.c.h.b16 %v47
  %v470 = vunpack.c.l.b16 %v48
  %v471 = vunpack.c.h.b16 %v48
  %v472 = vunpack.c.l.b16 %v49
  %v473 = vunpack.c.h.b16 %v49
  %v474 = vunpack.c.l.b16 %v50
  %v475 = vunpack.c.h.b16 %v50
  %v476 = vunpack.c.l.b16 %v51
  %v477 = vunpack.c.h.b16 %v51
  %v478 = vunpack.c.l.b16 %v52
  %v479 = vunpack.c.h.b16 %v52
  %v480 = vunpack.c.l.b16 %v53
  %v481 = vunpack.c.h.b16 %v53
  %v482 = vunpack.c.l.b16 %v54
  %v483 = vunpack.c.h.b16 %v54
  %v484 = vunpack.c.l.b16 %v55
  %v485 = vunpack.c.h.b16 %v55
  %v486 = vunpack.c.l.b16 %v56
  %v487 = vunpack.c.h.b16 %v56
  %v488 = vunpack.c.l.b16 %v57
  %v489 = vunpack.c.h.b16 %v57
  %v490 = vunpack.c.l.b16 %v58
  %v491 = vunpack.c.h.b16 %v58
  %v492 = vunpack.c.l.b16 %v59
  %v493 = vunpack.c.h.b16 %v59
  %v494 = vunpack.c.l.b16 %v60
  %v495 = vunpack.c.h.b16 %v60
  %v496 = vunpack.c.l.b16 %v61
  %v497 = vunpack.c.h.b16 %v61
  %v498 = vunpack.c.l.b16 %v62
  %v499 = vunpack.c.h.b16 %v62
  %v500 = vunpack.c.l.b16 %v63
  %v501 = vunpack.c.h.b16 %v63
  %v502 = vunpack.c.l.b16 %v64
  %v503 = vunpack.c.h.b16 %v64
  %v504 = vunpack.c.l.b16 %v65
  %v505 = vunpack.c.h.b16 %v65
  %v506 = vunpack.c.l.b16 %v66
  %v507 = vunpack.c.h.b16 %v66
  %v508 = vunpack.c.l.b16 %v67
  %v509 = vunpack.c.h.b16 %v67
  %v510 = vunpack.c.l.b16 %v68
  %v511 = vunpack.c.h.b16 %v68
  %v512 = vunpack.c.l.b16 %v69
  %v513 = vunpack.c.h.b16 %v69
  %v514 = vunpack.c.l.b16 %v70
  %v515 = vunpack.c.h.b16 %v70
  %v516 = vunpack.c.l.b16 %v71
  %v517 = vunpack.c.h.b16 %v71
  %v518 = vunpack.c.l.b16 %v72
  %v519 = vunpack.c.h.b16 %v72
  %v520 = vunpack.c.l.b16 %v73
  %v521 = vunpack.c.h.b16 %v73
  %v522 = vunpack.c.l.b16 %v74
  %v523 = vunpack.c.h.b16 %v74
  %v524 = vunpack.c.l.b16 %v75
  %v525 = vunpack.c.h.b16 %v75
  %v526 = vunpack.c.l.b16 %v76
  %v527 = vunpack.c.h.b16 %v76
  %v528 = vunpack.c.l.b16 %v77
  %v529 = vunpack.c.h.b16 %v77
  %v530 = vunpack.c.l.b16 %v78
  %v531 = vunpack.c.h.b16 %v78
  %v532 = vunpack.c.l.b16 %v79
  %v533 = vunpack.c.h.b16 %v79
  %v534 = vunpack.c.l.b16 %v80
  %v535 = vunpack.c.h.b16 %v80
  %v536 = vunpack.c.l.b16 %v81
  %v537 = vunpack.c.h.b16 %v81
  %v538 = vunpack.c.l.b16 %v82
  %v539 = vunpack.c.h.b16 %v82
  %v540 = vunpack.c.l.b16 %v83
  %v541 = vunpack.c.h.b16 %v83
  %v542 = vunpack.c.l.b16 %v84
  %v543 = vunpack.c.h.b16 %v84
  %v544 = vunpack.c.l.b16 %v85
  %v545 = vunpack.c.h.b16 %v85
  %v546 = vunpack.c.l.b16 %v86
  %v547 = vunpack.c.h.b16 %v86
  %v548 = vunpack.c.l.b16 %v87
  %v549 = vunpack.c.h.b16 %v87
  %v550 = vunpack.c.l.b16 %v88
  %v551 = vunpack.c.h.b16 %v88
  %v552 = vunpack.c.l.b16 %v89
  %v553 = vunpack.c.h.b16 %v89
  %v554 = vunpack.c.l.b16 %v90
  %v555 = vunpack.c.h.b16 %v90
  %v556 = vunpack.c.l.b16 %v91
  %v557 = vunpack.c.h.b16 %v91
  %v558 = vunpack.c.l.b16 %v92
  %v559 = vunpack.c.h.b16 %v92
  %v560 = vunpack.c.l.b16 %v93
  %v561 = vunpack.c.h.b16 %v93
  %v562 = vunpack.c.l.b16 %v94
  %v563 = vunpack.c.h.b16 %v94
  %v564 = vunpack.c.l.b16 %v95
  %v565 = vunpack.c.h.b16 %v95
  %v566 = vunpack.c.l.b16 %v96
  %v567 = vunpack.c.h.b16 %v96
  %v568 = vunpack.c.l.b16 %v97
  %v569 = vunpack.c.h.b16 %v97
  %v570 = vunpack.c.l.b16 %v98
  %v571 = vunpack.c.h.b16 %v98
  %v572 = vunpack.c.l.b16 %v99
  %v573 = vunpack.c.h.b16 %v99
  %v574 = vunpack.c.l.b16 %v100
  %v575 = vunpack.c.h.b16 %v100
  %v576 = vunpack.c.l.b16 %v101
  %v577 = vunpack.c.h.b16 %v101
  %v578 = vunpack.c.l.b16 %v102
  %v579 = vunpack.c.h.b16 %v102
  %v580 = vunpack.c.l.b16 %v103
  %v581 = vunpack.c.h.b16 %v103
  %v582 = vunpack.c.l.b16 %v104
  %v583 = vunpack.c.h.b16 %v104
  %v584 = vpack.c.b16 %v456, %v440
  %v585 = vpack.c.b16 %v457, %v441
  %v586 = vpack.c.b16 %v458, %v442
  %v587 = vpack.c.b16 %v459, %v443
  %v588 = vpack.c.b16 %v460, %v444
  %v589 = vpack.c.b16 %v461, %v445
  %v590 = vpack.c.b16 %v462, %v446
  %v591 = vpack.c.b16 %v463, %v447
  %v592 = vpack.c.b16 %v464, %v448
  %v593 = vpack.c.b16 %v465, %v449
  %v594 = vpack.c.b16 %v466, %v450
  %v595 = vpack.c.b16 %v467, %v451
  %v596 = vpack.c.b16 %v468, %v452
  %v597 = vpack.c.b16 %v469, %v453
  %v598 = vpack.c.b16 %v470, %v454
  %v599 = vpack.c.b16 %v471, %v455
  %v600 = vpack.c.b16 %v488, %v472
  %v601 = vpack.c.b16 %v489, %v473
  %v602 = vpack.c.b16 %v490, %v474
  %v603 = vpack.c.b16 %v491, %v475
  %v604 = vpack.c.b16 %v492, %v476
  %v605 = vpack.c.b16 %v493, %v477
  %v606 = vpack.c.b16 %v494, %v478
  %v607 = vpack.c.b16 %v495, %v479
  %v608 = vpack.c.b16 %v496, %v480
  %v609 = vpack.c.b16 %v497, %v481
  %v610 = vpack.c.b16 %v498, %v482
  %v611 = vpack.c.b16 %v499, %v483
  %v612 = vpack.c.b16 %v500, %v484
  %v613 = vpack.c.b16 %v501, %v485
  %v614 = vpack.c.b16 %v502, %v486
  %v615 = vpack.c.b16 %v503, %v487
  %v616 = vpack.c.b16 %v520, %v504
  %v617 = vpack.c.b16 %v521, %v505
  %v618 = vpack.c.b16 %v522, %v506
  %v619 = vpack.c.b16 %v523, %v507
  %v620 = vpack.c.b16 %v524, %v508
  %v621 = vpack.c.b16 %v525, %v509
  %v622 = vpack.c.b16 %v526, %v510
  %v623 = vpack.c.b16 %v527, %v511
  %v624 = vpack.c.b16 %v528, %v512
  %v625 = vpack.c.b16 %v529, %v513
  %v626 = vpack.c.b16 %v530, %v514
  %v627 = vpack.c.b16 %v531, %v515
  %v628 = vpack.c.b16 %v532, %v516
  %v629 = vpack.c.b16 %v533, %v517
  %v630 = vpack.c.b16 %v534, %v518
  %v631 = vpack.c.b16 %v535, %v519
  %v632 = vpack.c.b16 %v552, %v536
  %v633 = vpack.c.b16 %v553, %v537
  %v634 = vpack.c.b16 %v554, %v538
  %v635 = vpack.c.b16 %v555, %v539
  %v636 = vpack.c.b16 %v556, %v540
  %v637 = vpack.c.b16 %v557, %v541
  %v638 = vpack.c.b16 %v558, %v542
  %v639 = vpack.c.b16 %v559, %v543
  %v640 = vpack.c.b16 %v560, %v544
  %v641 = vpack.c.b16 %v561, %v545
  %v642 = vpack.c.b16 %v562, %v546
  %v643 = vpack.c.b16 %v563, %v547
  %v644 = vpack.c.b16 %v564, %v548
  %v645 = vpack.c.b16 %v565, %v549
  %v646 = vpack.c.b16 %v566, %v550
  %v647 = vpack.c.b16 %v567, %v551
  %v648 = vpack.c.b16 %v568, %v568
  %v649 = vpack.c.b16 %v569, %v569
  %v650 = vpack.c.b16 %v570, %v570
  %v651 = vpack.c.b16 %v571, %v571
  %v652 = vpack.c.b16 %v572, %v572
  %v653 = vpack.c.b16 %v573, %v573
  %v654 = vpack.c.b16 %v574, %v574
  %v655 = vpack.c.b16 %v575, %v575
  %v656 = vpack.c.b16 %v576, %v576
  %v657 = vpack.c.b16 %v577, %v577
  %v658 = vpack.c.b16 %v578, %v578
  %v659 = vpack.c.b16 %v579, %v579
  %v660 = vpack.c.b16 %v580, %v580
  %v661 = vpack.c.b16 %v581, %v581
  %v662 = vpack.c.b16 %v582, %v582
  %v663 = vpack.c.b16 %v583, %v583
  %v1000 = vunpack.c.l.b16 %v105
  %v1001 = vunpack.c.l.b16 %v106
  %v1002 = vunpack.c.l.b16 %v107
  %v1003 = vunpack.c.l.b16 %v108
  %v1004 = vunpack.c.l.b16 %v109
  %v1005 = vunpack.c.l.b16 %v110
  %v1006 = vunpack.c.l.b16 %v111
  %v1007 = vunpack.c.l.b16 %v112
  %v1008 = vunpack.c.l.b16 %v113
  %v1009 = vunpack.c.l.b16 %v114
  %v1010 = vunpack.c.l.b16 %v115
  %v1011 = vunpack.c.l.b16 %v116
  %v1012 = vunpack.c.l.b16 %v117
  %v1013 = vunpack.c.l.b16 %v118
  %v1014 = vunpack.c.l.b16 %v119
  %v1015 = vunpack.c.l.b16 %v120
  %v1016 = vunpack.c.l.b16 %v121
  %v1017 = vunpack.c.l.b16 %v122
  %v1018 = vunpack.c.l.b16 %v123
  %v1019 = vunpack.c.l.b16 %v124
  %v1020 = vunpack.c.l.b16 %v125
  %v1021 = vunpack.c.l.b16 %v126
  %v1022 = vunpack.c.l.b16 %v127
  %v1023 = vunpack.c.l.b16 %v128
  %v1024 = vunpack.c.l.b16 %v129
  %v1025 = vunpack.c.l.b16 %v130
  %v1026 = vunpack.c.l.b16 %v131
  %v1027 = vunpack.c.l.b16 %v132
  %v1028 = vunpack.c.l.b16 %v133
  %v1029 = vunpack.c.l.b16 %v134
  %v1030 = vunpack.c.l.b16 %v135
  %v1031 = vunpack.c.l.b16 %v136
  %v1032 = vunpack.c.l.b16 %v137
  %v1033 = vunpack.c.l.b16 %v138
  %v1034 = vunpack.c.l.b16 %v139
  %v1035 = vunpack.c.l.b16 %v140
  %v1036 = vunpack.c.l.b16 %v141
  %v1037 = vunpack.c.l.b16 %v142
  %v1038 = vunpack.c.l.b16 %v143
  %v1039 = vunpack.c.l.b16 %v144
  %v1040 = vunpack.c.l.b16 %v145
  %v1041 = vunpack.c.l.b16 %v146
  %v1042 = vunpack.c.l.b16 %v147
  %v1043 = vunpack.c.l.b16 %v148
  %v1044 = vunpack.c.l.b16 %v149
  %v1045 = vunpack.c.l.b16 %v150
  %v1046 = vunpack.c.l.b16 %v151
  %v1047 = vunpack.c.l.b16 %v152
  %v1048 = vunpack.c.l.b16 %v153
  %v1049 = vunpack.c.l.b16 %v154
  %v1050 = vunpack.c.l.b16 %v155
  %v1051 = vunpack.c.l.b16 %v156
  %v1052 = vunpack.c.l.b16 %v157
  %v1053 = vunpack.c.l.b16 %v158
  %v1054 = vunpack.c.l.b16 %v159
  %v1055 = vunpack.c.l.b16 %v160
  %v1056 = vunpack.c.l.b16 %v161
  %v1057 = vunpack.c.l.b16 %v162
  %v1058 = vunpack.c.l.b16 %v163
  %v1059 = vunpack.c.l.b16 %v164
  %v1060 = vunpack.c.l.b16 %v165
  %v1061 = vunpack.c.l.b16 %v166
  %v1062 = vunpack.c.l.b16 %v167
  %v1063 = vunpack.c.l.b16 %v168
  %v1064 = vunpack.c.l.b16 %v169
  %v1065 = vunpack.c.l.b16 %v170
  %v1066 = vunpack.c.l.b16 %v171
  %v1067 = vunpack.c.l.b16 %v172
  %v1068 = vunpack.c.l.b16 %v173
  %v1069 = vunpack.c.l.b16 %v174
  %v1070 = vunpack.c.l.b16 %v175
  %v1071 = vunpack.c.l.b16 %v176
  %v1072 = vunpack.c.l.b16 %v177
  %v1073 = vunpack.c.l.b16 %v178
  %v1074 = vunpack.c.l.b16 %v179
  %v1075 = vunpack.c.l.b16 %v180
  %v1076 = vunpack.c.l.b16 %v181
  %v1077 = vunpack.c.l.b16 %v182
  %v1078 = vunpack.c.l.b16 %v183
  %v1079 = vunpack.c.l.b16 %v184
  %v1080 = vunpack.c.l.b16 %v185
  %v1081 = vunpack.c.l.b16 %v186
  %v1082 = vunpack.c.l.b16 %v187
  %v1083 = vunpack.c.l.b16 %v188
  %v1084 = vunpack.c.l.b16 %v189
  %v1085 = vunpack.c.l.b16 %v190
  %v1086 = vunpack.c.l.b16 %v191
  %v1087 = vunpack.c.l.b16 %v192
  %v1088 = vunpack.c.l.b16 %v193
  %v1089 = vunpack.c.l.b16 %v194
  %v1090 = vunpack.c.l.b16 %v195
  %v1091 = vunpack.c.l.b16 %v196
  %v1092 = vunpack.c.l.b16 %v197
  %v1093 = vunpack.c.l.b16 %v198
  %v1094 = vunpack.c.l.b16 %v199
  %v1095 = vunpack.c.l.b16 %v200
  %v1096 = vunpack.c.l.b16 %v201
  %v1097 = vunpack.c.l.b16 %v202
  %v1098 = vunpack.c.l.b16 %v203
  %v1099 = vunpack.c.l.b16 %v204
  %v1100 = vunpack.c.l.b16 %v205
  %v1101 = vunpack.c.l.b16 %v206
  %v1102 = vunpack.c.l.b16 %v207
  %v1103 = vunpack.c.l.b16 %v208
  %v1104 = vunpack.c.l.b16 %v209
  %v1105 = vunpack.c.l.b16 %v210
  %v1106 = vunpack.c.l.b16 %v211
  %v1107 = vunpack.c.l.b16 %v212
  %v1108 = vunpack.c.l.b16 %v213
  %v1109 = vunpack.c.l.b16 %v214
  %v1110 = vunpack.c.l.b16 %v215
  %v1111 = vunpack.c.l.b16 %v216
  %v1112 = vunpack.c.l.b16 %v217
  %v1113 = vunpack.c.l.b16 %v218
  %v1114 = vunpack.c.l.b16 %v219
  %v1115 = vunpack.c.l.b16 %v220
  %v1116 = vunpack.c.l.b16 %v221
  %v1117 = vunpack.c.l.b16 %v222
  %v1118 = vunpack.c.l.b16 %v223
  %v1119 = vunpack.c.l.b16 %v224
  %v1120 = vunpack.c.l.b16 %v225
  %v1121 = vunpack.c.l.b16 %v226
  %v1122 = vunpack.c.l.b16 %v227
  %v1123 = vunpack.c.l.b16 %v228
  %v1124 = vunpack.c.l.b16 %v229
  %v1125 = vunpack.c.l.b16 %v230
  %v1126 = vunpack.c.l.b16 %v231
  %v1127 = vunpack.c.l.b16 %v232
  %v1128 = vunpack.c.l.b16 %v233
  %v1129 = vunpack.c.l.b16 %v234
  %v1130 = vunpack.c.l.b16 %v235
  %v1131 = vunpack.c.l.b16 %v236
  %v1132 = vunpack.c.l.b16 %v237
  %v1133 = vunpack.c.l.b16 %v238
  %v1134 = vunpack.c.l.b16 %v239
  %v1135 = vunpack.c.l.b16 %v240
  %v1136 = vunpack.c.l.b16 %v241
  %v1137 = vunpack.c.l.b16 %v242
  %v1138 = vunpack.c.l.b16 %v243
  %v1139 = vunpack.c.l.b16 %v244
  %v1140 = vunpack.c.l.b16 %v245
  %v1141 = vunpack.c.l.b16 %v246
  %v1142 = vunpack.c.l.b16 %v247
  %v1143 = vunpack.c.l.b16 %v248
  %v1144 = vunpack.c.l.b16 %v249
  %v1145 = vunpack.c.l.b16 %v250
  %v1146 = vunpack.c.l.b16 %v251
  %v1147 = vunpack.c.l.b16 %v252
  %v1148 = vunpack.c.l.b16 %v253
  %v1149 = vunpack.c.l.b16 %v254
  %v1150 = vunpack.c.l.b16 %v255
  %v1151 = vunpack.c.l.b16 %v256
  %v1152 = vunpack.c.l.b16 %v257
  %v1153 = vunpack.c.l.b16 %v258
  %v1154 = vunpack.c.l.b16 %v259
  %v1155 = vunpack.c.l.b16 %v260
  %v1156 = vunpack.c.l.b16 %v261
  %v1157 = vunpack.c.l.b16 %v262
  %v1158 = vunpack.c.l.b16 %v263
  %v1159 = vunpack.c.l.b16 %v264
  %v1160 = vunpack.c.l.b16 %v265
  %v1161 = vunpack.c.l.b16 %v266
  %v1162 = vunpack.c.l.b16 %v267
  %v1163 = vunpack.c.l.b16 %v268
  %v1164 = vunpack.c.l.b16 %v269
  %v1165 = vunpack.c.l.b16 %v270
  %v1166 = vunpack.c.l.b16 %v271
  %v1167 = vunpack.c.l.b16 %v272
  %v1168 = vunpack.c.l.b16 %v273
  %v1169 = vunpack.c.l.b16 %v274
  %v1170 = vunpack.c.l.b16 %v275
  %v1171 = vunpack.c.l.b16 %v276
  %v1172 = vunpack.c.l.b16 %v277
  %v1173 = vunpack.c.l.b16 %v278
  %v1174 = vunpack.c.l.b16 %v279
  %v1175 = vunpack.c.l.b16 %v280
  %v1176 = vunpack.c.l.b16 %v281
  %v1177 = vunpack.c.l.b16 %v282
  %v1178 = vunpack.c.l.b16 %v283
  %v1179 = vunpack.c.l.b16 %v284
  %v1180 = vunpack.c.l.b16 %v285
  %v1181 = vunpack.c.l.b16 %v286
  %v1182 = vunpack.c.l.b16 %v287
  %v1183 = vunpack.c.l.b16 %v288
  %v1184 = vunpack.c.l.b16 %v289
  %v1185 = vunpack.c.l.b16 %v290
  %v1186 = vunpack.c.l.b16 %v291
  %v1187 = vunpack.c.l.b16 %v292
  %v1188 = vunpack.c.l.b16 %v293
  %v1189 = vunpack.c.l.b16 %v294
  %v1190 = vunpack.c.l.b16 %v295
  %v1191 = vunpack.c.l.b16 %v296
  %v1192 = vunpack.c.l.b16 %v297
  %v1193 = vunpack.c.l.b16 %v298
  %v1194 = vunpack.c.l.b16 %v299
  %v1195 = vunpack.c.l.b16 %v300
  %v1196 = vunpack.c.l.b16 %v301
  %v1197 = vunpack.c.l.b16 %v302
  %v1198 = vunpack.c.l.b16 %v303
  %v1199 = vunpack.c.l.b16 %v304
  %v1200 = vunpack.c.l.b16 %v305
  %v1201 = vunpack.c.l.b16 %v306
  %v1202 = vunpack.c.l.b16 %v307
  %v1203 = vunpack.c.l.b16 %v308
  %v1204 = vunpack.c.l.b16 %v309
  %v1205 = vunpack.c.l.b16 %v310
  %v1206 = vunpack.c.l.b16 %v311
  %v1207 = vunpack.c.l.b16 %v312
  %v1208 = vunpack.c.l.b16 %v313
  %v1209 = vunpack.c.l.b16 %v314
  %v1210 = vunpack.c.l.b16 %v315
  %v1211 = vunpack.c.l.b16 %v316
  %v1212 = vunpack.c.l.b16 %v317
  %v1213 = vunpack.c.l.b16 %v318
  %v1214 = vunpack.c.l.b16 %v319
  %v1215 = vunpack.c.l.b16 %v320
  %v1216 = vunpack.c.l.b16 %v321
  %v1217 = vunpack.c.l.b16 %v322
  %v1218 = vunpack.c.l.b16 %v323
  %v1219 = vunpack.c.l.b16 %v324
  %v1220 = vunpack.c.l.b16 %v325
  %v1221 = vunpack.c.l.b16 %v326
  %v1222 = vunpack.c.l.b16 %v327
  %v1223 = vunpack.c.l.b16 %v328
  %v1224 = vunpack.c.l.b16 %v329
  %v1225 = vunpack.c.l.b16 %v330
  %v1226 = vunpack.c.l.b16 %v331
  %v1227 = vunpack.c.l.b16 %v332
  %v1228 = vunpack.c.l.b16 %v333
  %v1229 = vunpack.c.l.b16 %v334
  %v1230 = vunpack.c.l.b16 %v335
  %v1231 = vunpack.c.l.b16 %v336
  %v1232 = vunpack.c.l.b16 %v337
  %v1233 = vunpack.c.l.b16 %v338
  %v1234 = vunpack.c.l.b16 %v339
  %v1235 = vunpack.c.l.b16 %v340
  %v1236 = vunpack.c.l.b16 %v341
  %v1237 = vunpack.c.l.b16 %v342
  %v1238 = vunpack.c.l.b16 %v343
  %v1239 = vunpack.c.l.b16 %v344
  %v1240 = vunpack.c.l.b16 %v345
  %v1241 = vunpack.c.l.b16 %v346
  %v1242 = vunpack.c.l.b16 %v347
  %v1243 = vunpack.c.l.b16 %v348
  %v1244 = vunpack.c.l.b16 %v349
  %v1245 = vunpack.c.l.b16 %v350
  %v1246 = vunpack.c.l.b16 %v351
  %v1247 = vunpack.c.l.b16 %v352
  %v1248 = vunpack.c.l.b16 %v353
  %v1249 = vunpack.c.l.b16 %v354
  %v1250 = vunpack.c.l.b16 %v355
  %v1251 = vunpack.c.l.b16 %v356
  %v1252 = vunpack.c.l.b16 %v357
  %v1253 = vunpack.c.l.b16 %v358
  %v1254 = vunpack.c.l.b16 %v359
  %v1255 = vunpack.c.l.b16 %v360
  %v1256 = vpack.c.b16 %v1001, %v1000
  %v1257 = vpack.c.b16 %v1003, %v1002
  %v1258 = vpack.c.b16 %v1005, %v1004
  %v1259 = vpack.c.b16 %v1007, %v1006
  %v1260 = vpack.c.b16 %v1009, %v1008
  %v1261 = vpack.c.b16 %v1011, %v1010
  %v1262 = vpack.c.b16 %v1013, %v1012
  %v1263 = vpack.c.b16 %v1015, %v1014
  %v1264 = vpack.c.b16 %v1017, %v1016
  %v1265 = vpack.c.b16 %v1019, %v1018
  %v1266 = vpack.c.b16 %v1021, %v1020
  %v1267 = vpack.c.b16 %v1023, %v1022
  %v1268 = vpack.c.b16 %v1025, %v1024
  %v1269 = vpack.c.b16 %v1027, %v1026
  %v1270 = vpack.c.b16 %v1029, %v1028
  %v1271 = vpack.c.b16 %v1031, %v1030
  %v1272 = vpack.c.b16 %v1033, %v1032
  %v1273 = vpack.c.b16 %v1035, %v1034
  %v1274 = vpack.c.b16 %v1037, %v1036
  %v1275 = vpack.c.b16 %v1039, %v1038
  %v1276 = vpack.c.b16 %v1041, %v1040
  %v1277 = vpack.c.b16 %v1043, %v1042
  %v1278 = vpack.c.b16 %v1045, %v1044
  %v1279 = vpack.c.b16 %v1047, %v1046
  %v1280 = vpack.c.b16 %v1049, %v1048
  %v1281 = vpack.c.b16 %v1051, %v1050
  %v1282 = vpack.c.b16 %v1053, %v1052
  %v1283 = vpack.c.b16 %v1055, %v1054
  %v1284 = vpack.c.b16 %v1057, %v1056
  %v1285 = vpack.c.b16 %v1059, %v1058
  %v1286 = vpack.c.b16 %v1061, %v1060
  %v1287 = vpack.c.b16 %v1063, %v1062
  %v1288 = vpack.c.b16 %v1065, %v1064
  %v1289 = vpack.c.b16 %v1067, %v1066
  %v1290 = vpack.c.b16 %v1069, %v1068
  %v1291 = vpack.c.b16 %v1071, %v1070
  %v1292 = vpack.c.b16 %v1073, %v1072
  %v1293 = vpack.c.b16 %v1075, %v1074
  %v1294 = vpack.c.b16 %v1077, %v1076
  %v1295 = vpack.c.b16 %v1079, %v1078
  %v1296 = vpack.c.b16 %v1081, %v1080
  %v1297 = vpack.c.b16 %v1083, %v1082
  %v1298 = vpack.c.b16 %v1085, %v1084
  %v1299 = vpack.c.b16 %v1087, %v1086
  %v1300 = vpack.c.b16 %v1089, %v1088
  %v1301 = vpack.c.b16 %v1091, %v1090
  %v1302 = vpack.c.b16 %v1093, %v1092
  %v1303 = vpack.c.b16 %v1095, %v1094
  %v1304 = vpack.c.b16 %v1097, %v1096
  %v1305 = vpack.c.b16 %v1099, %v1098
  %v1306 = vpack.c.b16 %v1101, %v1100
  %v1307 = vpack.c.b16 %v1103, %v1102
  %v1308 = vpack.c.b16 %v1105, %v1104
  %v1309 = vpack.c.b16 %v1107, %v1106
  %v1310 = vpack.c.b16 %v1109, %v1108
  %v1311 = vpack.c.b16 %v1111, %v1110
  %v1312 = vpack.c.b16 %v1113, %v1112
  %v1313 = vpack.c.b16 %v1115, %v1114
  %v1314 = vpack.c.b16 %v1117, %v1116
  %v1315 = vpack.c.b16 %v1119, %v1118
  %v1316 = vpack.c.b16 %v1121, %v1120
  %v1317 = vpack.c.b16 %v1123, %v1122
  %v1318 = vpack.c.b16 %v1125, %v1124
  %v1319 = vpack.c.b16 %v1127, %v1126
  %v1320 = vpack.c.b16 %v1129, %v1128
  %v1321 = vpack.c.b16 %v1131, %v1130
  %v1322 = vpack.c.b16 %v1133, %v1132
  %v1323 = vpack.c.b16 %v1135, %v1134
  %v1324 = vpack.c.b16 %v1137, %v1136
  %v1325 = vpack.c.b16 %v1139, %v1138
  %v1326 = vpack.c.b16 %v1141, %v1140
  %v1327 = vpack.c.b16 %v1143, %v1142
  %v1328 = vpack.c.b16 %v1145, %v1144
  %v1329 = vpack.c.b16 %v1147, %v1146
  %v1330 = vpack.c.b16 %v1149, %v1148
  %v1331 = vpack.c.b16 %v1151, %v1150
  %v1332 = vpack.c.b16 %v1153, %v1152
  %v1333 = vpack.c.b16 %v1155, %v1154
  %v1334 = vpack.c.b16 %v1157, %v1156
  %v1335 = vpack.c.b16 %v1159, %v1158
  %v1336 = vpack.c.b16 %v1161, %v1160
  %v1337 = vpack.c.b16 %v1163, %v1162
  %v1338 = vpack.c.b16 %v1165, %v1164
  %v1339 = vpack.c.b16 %v1167, %v1166
  %v1340 = vpack.c.b16 %v1169, %v1168
  %v1341 = vpack.c.b16 %v1171, %v1170
  %v1342 = vpack.c.b16 %v1173, %v1172
  %v1343 = vpack.c.b16 %v1175, %v1174
  %v1344 = vpack.c.b16 %v1177, %v1176
  %v1345 = vpack.c.b16 %v1179, %v1178
  %v1346 = vpack.c.b16 %v1181, %v1180
  %v1347 = vpack.c.b16 %v1183, %v1182
  %v1348 = vpack.c.b16 %v1185, %v1184
  %v1349 = vpack.c.b16 %v1187, %v1186
  %v1350 = vpack.c.b16 %v1189, %v1188
  %v1351 = vpack.c.b16 %v1191, %v1190
  %v1352 = vpack.c.b16 %v1193, %v1192
  %v1353 = vpack.c.b16 %v1195, %v1194
  %v1354 = vpack.c.b16 %v1197, %v1196
  %v1355 = vpack.c.b16 %v1199, %v1198
  %v1356 = vpack.c.b16 %v1201, %v1200
  %v1357 = vpack.c.b16 %v1203, %v1202
  %v1358 = vpack.c.b16 %v1205, %v1204
  %v1359 = vpack.c.b16 %v1207, %v1206
  %v1360 = vpack.c.b16 %v1209, %v1208
  %v1361 = vpack.c.b16 %v1211, %v1210
  %v1362 = vpack.c.b16 %v1213, %v1212
  %v1363 = vpack.c.b16 %v1215, %v1214
  %v1364 = vpack.c.b16 %v1217, %v1216
  %v1365 = vpack.c.b16 %v1219, %v1218
  %v1366 = vpack.c.b16 %v1221, %v1220
  %v1367 = vpack.c.b16 %v1223, %v1222
  %v1368 = vpack.c.b16 %v1225, %v1224
  %v1369 = vpack.c.b16 %v1227, %v1226
  %v1370 = vpack.c.b16 %v1229, %v1228
  %v1371 = vpack.c.b16 %v1231, %v1230
  %v1372 = vpack.c.b16 %v1233, %v1232
  %v1373 = vpack.c.b16 %v1235, %v1234
  %v1374 = vpack.c.b16 %v1237, %v1236
  %v1375 = vpack.c.b16 %v1239, %v1238
  %v1376 = vpack.c.b16 %v1241, %v1240
  %v1377 = vpack.c.b16 %v1243, %v1242
  %v1378 = vpack.c.b16 %v1245, %v1244
  %v1379 = vpack.c.b16 %v1247, %v1246
  %v1380 = vpack.c.b16 %v1249, %v1248
  %v1381 = vpack.c.b16 %v1251, %v1250
  %v1382 = vpack.c.b16 %v1253, %v1252
  %v1383 = vpack.c.b16 %v1255, %v1254
  %1512 = vmatprep.subr.bf16.mxu0 0
  %1513 = vmatpush1.bf16.msra.mxu0 %v1256
  %1514 = vmatprep.subr.bf16.mxu0 0
  %1515 = vmatpush1.bf16.msra.mxu0 %v1257
  %1516 = vmatprep.subr.bf16.mxu0 0
  %1517 = vmatpush1.bf16.msra.mxu0 %v1258
  %1518 = vmatprep.subr.bf16.mxu0 0
  %1519 = vmatpush1.bf16.msra.mxu0 %v1259
  %1520 = vmatprep.subr.bf16.mxu0 0
  %1521 = vmatpush1.bf16.msra.mxu0 %v1260
  %1522 = vmatprep.subr.bf16.mxu0 0
  %1523 = vmatpush1.bf16.msra.mxu0 %v1261
  %1524 = vmatprep.subr.bf16.mxu0 0
  %1525 = vmatpush1.bf16.msra.mxu0 %v1262
  %1526 = vmatprep.subr.bf16.mxu0 0
  %1527 = vmatpush1.bf16.msra.mxu0 %v1263
  %1528 = vmatprep.subr.bf16.mxu0 0
  %1529 = vmatpush1.bf16.msra.mxu0 %v1264
  %1530 = vmatprep.subr.bf16.mxu0 0
  %1531 = vmatpush1.bf16.msra.mxu0 %v1265
  %1532 = vmatprep.subr.bf16.mxu0 0
  %1533 = vmatpush1.bf16.msra.mxu0 %v1266
  %1534 = vmatprep.subr.bf16.mxu0 0
  %1535 = vmatpush1.bf16.msra.mxu0 %v1267
  %1536 = vmatprep.subr.bf16.mxu0 0
  %1537 = vmatpush1.bf16.msra.mxu0 %v1268
  %1538 = vmatprep.subr.bf16.mxu0 0
  %1539 = vmatpush1.bf16.msra.mxu0 %v1269
  %1540 = vmatprep.subr.bf16.mxu0 0
  %1541 = vmatpush1.bf16.msra.mxu0 %v1270
  %1542 = vmatprep.subr.bf16.mxu0 0
  %1543 = vmatpush1.bf16.msra.mxu0 %v1271
  %1544 = vmatprep.mubr.bf16.mxu0 %v585
  %1545 = vmatmul.mubr.bf16.gmra.mrb[0].mxu0 %v584
  %v1546 = vpop.f32.mrb[0].mxu0
  %v1547 = vadd.f32 %v366, %v1546
  %v1548 = vpop.f32.mrb[0].mxu0
  %v1549 = vpop.f32.mrb[0].mxu0
  %v1550 = vadd.f32 %v366, %v1549
  %v1551 = vpop.f32.mrb[0].mxu0
  %1552 = vmatprep.mubr.bf16.mxu0 %v601
  %1553 = vmatmul.mubr.bf16.gmra.mrb[0].mxu0 %v600
  %v1554 = vpop.f32.mrb[0].mxu0
  %v1555 = vadd.f32 %v366, %v1554
  %v1556 = vpop.f32.mrb[0].mxu0
  %v1557 = vpop.f32.mrb[0].mxu0
  %v1558 = vadd.f32 %v366, %v1557
  %v1559 = vpop.f32.mrb[0].mxu0
  %1560 = vmatprep.mubr.bf16.mxu0 %v617
  %1561 = vmatmul.mubr.bf16.gmra.mrb[0].mxu0 %v616
  %v1562 = vpop.f32.mrb[0].mxu0
  %v1563 = vadd.f32 %v366, %v1562
  %v1564 = vpop.f32.mrb[0].mxu0
  %v1565 = vpop.f32.mrb[0].mxu0
  %v1566 = vadd.f32 %v366, %v1565
  %v1567 = vpop.f32.mrb[0].mxu0
  %1568 = vmatprep.mubr.bf16.mxu0 %v633
  %1569 = vmatmul.mubr.bf16.gmra.mrb[0].mxu0 %v632
  %v1570 = vpop.f32.mrb[0].mxu0
  %v1571 = vadd.f32 %v366, %v1570
  %v1572 = vpop.f32.mrb[0].mxu0
  %v1573 = vpop.f32.mrb[0].mxu0
  %v1574 = vadd.f32 %v366, %v1573
  %v1575 = vpop.f32.mrb[0].mxu0
  %1576 = vmatprep.mubr.bf16.mxu0 %v649
  %1577 = vmatmul.mubr.bf16.gmra.mrb[0].mxu0 %v648
  %v1578 = vpop.f32.mrb[0].mxu0
  %v1579 = vadd.f32 %v366, %v1578
  %v1580 = vpop.f32.mrb[0].mxu0
  %v1581 = vpop.f32.mrb[0].mxu0
  %v1582 = vpop.f32.mrb[0].mxu0
  %1583 = vdwg.mxu0
  %1584 = vmatprep.subr.bf16.mxu0 0
  %1585 = vmatpush1.bf16.msra.mxu0 %v1272
  %1586 = vmatprep.subr.bf16.mxu0 0
  %1587 = vmatpush1.bf16.msra.mxu0 %v1273
  %1588 = vmatprep.subr.bf16.mxu0 0
  %1589 = vmatpush1.bf16.msra.mxu0 %v1274
  %1590 = vmatprep.subr.bf16.mxu0 0
  %1591 = vmatpush1.bf16.msra.mxu0 %v1275
  %1592 = vmatprep.subr.bf16.mxu0 0
  %1593 = vmatpush1.bf16.msra.mxu0 %v1276
  %1594 = vmatprep.subr.bf16.mxu0 0
  %1595 = vmatpush1.bf16.msra.mxu0 %v1277
  %1596 = vmatprep.subr.bf16.mxu0 0
  %1597 = vmatpush1.bf16.msra.mxu0 %v1278
  %1598 = vmatprep.subr.bf16.mxu0 0
  %1599 = vmatpush1.bf16.msra.mxu0 %v1279
  %1600 = vmatprep.subr.bf16.mxu0 0
  %1601 = vmatpush1.bf16.msra.mxu0 %v1280
  %1602 = vmatprep.subr.bf16.mxu0 0
  %1603 = vmatpush1.bf16.msra.mxu0 %v1281
  %1604 = vmatprep.subr.bf16.mxu0 0
  %1605 = vmatpush1.bf16.msra.mxu0 %v1282
  %1606 = vmatprep.subr.bf16.mxu0 0
  %1607 = vmatpush1.bf16.msra.mxu0 %v1283
  %1608 = vmatprep.subr.bf16.mxu0 0
  %1609 = vmatpush1.bf16.msra.mxu0 %v1284
  %1610 = vmatprep.subr.bf16.mxu0 0
  %1611 = vmatpush1.bf16.msra.mxu0 %v1285
  %1612 = vmatprep.subr.bf16.mxu0 0
  %1613 = vmatpush1.bf16.msra.mxu0 %v1286
  %1614 = vmatprep.subr.bf16.mxu0 0
  %1615 = vmatpush1.bf16.msra.mxu0 %v1287
  %1616 = vmatprep.mubr.bf16.mxu0 %v587
  %1617 = vmatmul.mubr.bf16.gmra.mrb[0].mxu0 %v586
  %v1618 = vpop.f32.mrb[0].mxu0
  %v1619 = vadd.f32 %v1547, %v1618
  %v1620 = vpop.f32.mrb[0].mxu0
  %v1621 = vpop.f32.mrb[0].mxu0
  %v1622 = vadd.f32 %v1550, %v1621
  %v1623 = vpop.f32.mrb[0].mxu0
  %1624 = vmatprep.mubr.bf16.mxu0 %v603
  %1625 = vmatmul.mubr.bf16.gmra.mrb[0].mxu0 %v602
  %v1626 = vpop.f32.mrb[0].mxu0
  %v1627 = vadd.f32 %v1555, %v1626
  %v1628 = vpop.f32.mrb[0].mxu0
  %v1629 = vpop.f32.mrb[0].mxu0
  %v1630 = vadd.f32 %v1558, %v1629
  %v1631 = vpop.f32.mrb[0].mxu0
  %1632 = vmatprep.mubr.bf16.mxu0 %v619
  %1633 = vmatmul.mubr.bf16.gmra.mrb[0].mxu0 %v618
  %v1634 = vpop.f32.mrb[0].mxu0
  %v1635 = vadd.f32 %v1563, %v1634
  %v1636 = vpop.f32.mrb[0].mxu0
  %v1637 = vpop.f32.mrb[0].mxu0
  %v1638 = vadd.f32 %v1566, %v1637
  %v1639 = vpop.f32.mrb[0].mxu0
  %1640 = vmatprep.mubr.bf16.mxu0 %v635
  %1641 = vmatmul.mubr.bf16.gmra.mrb[0].mxu0 %v634
  %v1642 = vpop.f32.mrb[0].mxu0
  %v1643 = vadd.f32 %v1571, %v1642
  %v1644 = vpop.f32.mrb[0].mxu0
  %v1645 = vpop.f32.mrb[0].mxu0
  %v1646 = vadd.f32 %v1574, %v1645
  %v1647 = vpop.f32.mrb[0].mxu0
  %1648 = vmatprep.mubr.bf16.mxu0 %v651
  %1649 = vmatmul.mubr.bf16.gmra.mrb[0].mxu0 %v650
  %v1650 = vpop.f32.mrb[0].mxu0
  %v1651 = vadd.f32 %v1579, %v1650
  %v1652 = vpop.f32.mrb[0].mxu0
  %v1653 = vpop.f32.mrb[0].mxu0
  %v1654 = vpop.f32.mrb[0].mxu0
  %1655 = vdwg.mxu0
  %1656 = vmatprep.subr.bf16.mxu0 0
  %1657 = vmatpush1.bf16.msra.mxu0 %v1288
  %1658 = vmatprep.subr.bf16.mxu0 0
  %1659 = vmatpush1.bf16.msra.mxu0 %v1289
  %1660 = vmatprep.subr.bf16.mxu0 0
  %1661 = vmatpush1.bf16.msra.mxu0 %v1290
  %1662 = vmatprep.subr.bf16.mxu0 0
  %1663 = vmatpush1.bf16.msra.mxu0 %v1291
  %1664 = vmatprep.subr.bf16.mxu0 0
  %1665 = vmatpush1.bf16.msra.mxu0 %v1292
  %1666 = vmatprep.subr.bf16.mxu0 0
  %1667 = vmatpush1.bf16.msra.mxu0 %v1293
  %1668 = vmatprep.subr.bf16.mxu0 0
  %1669 = vmatpush1.bf16.msra.mxu0 %v1294
  %1670 = vmatprep.subr.bf16.mxu0 0
  %1671 = vmatpush1.bf16.msra.mxu0 %v1295
  %1672 = vmatprep.subr.bf16.mxu0 0
  %1673 = vmatpush1.bf16.msra.mxu0 %v1296
  %1674 = vmatprep.subr.bf16.mxu0 0
  %1675 = vmatpush1.bf16.msra.mxu0 %v1297
  %1676 = vmatprep.subr.bf16.mxu0 0
  %1677 = vmatpush1.bf16.msra.mxu0 %v1298
  %1678 = vmatprep.subr.bf16.mxu0 0
  %1679 = vmatpush1.bf16.msra.mxu0 %v1299
  %1680 = vmatprep.subr.bf16.mxu0 0
  %1681 = vmatpush1.bf16.msra.mxu0 %v1300
  %1682 = vmatprep.subr.bf16.mxu0 0
  %1683 = vmatpush1.bf16.msra.mxu0 %v1301
  %1684 = vmatprep.subr.bf16.mxu0 0
  %1685 = vmatpush1.bf16.msra.mxu0 %v1302
  %1686 = vmatprep.subr.bf16.mxu0 0
  %1687 = vmatpush1.bf16.msra.mxu0 %v1303
  %1688 = vmatprep.mubr.bf16.mxu0 %v589
  %1689 = vmatmul.mubr.bf16.gmra.mrb[0].mxu0 %v588
  %v1690 = vpop.f32.mrb[0].mxu0
  %v1691 = vadd.f32 %v1619, %v1690
  %v1692 = vpop.f32.mrb[0].mxu0
  %v1693 = vpop.f32.mrb[0].mxu0
  %v1694 = vadd.f32 %v1622, %v1693
  %v1695 = vpop.f32.mrb[0].mxu0
  %1696 = vmatprep.mubr.bf16.mxu0 %v605
  %1697 = vmatmul.mubr.bf16.gmra.mrb[0].mxu0 %v604
  %v1698 = vpop.f32.mrb[0].mxu0
  %v1699 = vadd.f32 %v1627, %v1698
  %v1700 = vpop.f32.mrb[0].mxu0
  %v1701 = vpop.f32.mrb[0].mxu0
  %v1702 = vadd.f32 %v1630, %v1701
  %v1703 = vpop.f32.mrb[0].mxu0
  %1704 = vmatprep.mubr.bf16.mxu0 %v621
  %1705 = vmatmul.mubr.bf16.gmra.mrb[0].mxu0 %v620
  %v1706 = vpop.f32.mrb[0].mxu0
  %v1707 = vadd.f32 %v1635, %v1706
  %v1708 = vpop.f32.mrb[0].mxu0
  %v1709 = vpop.f32.mrb[0].mxu0
  %v1710 = vadd.f32 %v1638, %v1709
  %v1711 = vpop.f32.mrb[0].mxu0
  %1712 = vmatprep.mubr.bf16.mxu0 %v637
  %1713 = vmatmul.mubr.bf16.gmra.mrb[0].mxu0 %v636
  %v1714 = vpop.f32.mrb[0].mxu0
  %v1715 = vadd.f32 %v1643, %v1714
  %v1716 = vpop.f32.mrb[0].mxu0
  %v1717 = vpop.f32.mrb[0].mxu0
  %v1718 = vadd.f32 %v1646, %v1717
  %v1719 = vpop.f32.mrb[0].mxu0
  %1720 = vmatprep.mubr.bf16.mxu0 %v653
  %1721 = vmatmul.mubr.bf16.gmra.mrb[0].mxu0 %v652
  %v1722 = vpop.f32.mrb[0].mxu0
  %v1723 = vadd.f32 %v1651, %v1722
  %v1724 = vpop.f32.mrb[0].mxu0
  %v1725 = vpop.f32.mrb[0].mxu0
  %v1726 = vpop.f32.mrb[0].mxu0
  %1727 = vdwg.mxu0
  %1728 = vmatprep.subr.bf16.mxu0 0
  %1729 = vmatpush1.bf16.msra.mxu0 %v1304
  %1730 = vmatprep.subr.bf16.mxu0 0
  %1731 = vmatpush1.bf16.msra.mxu0 %v1305
  %1732 = vmatprep.subr.bf16.mxu0 0
  %1733 = vmatpush1.bf16.msra.mxu0 %v1306
  %1734 = vmatprep.subr.bf16.mxu0 0
  %1735 = vmatpush1.bf16.msra.mxu0 %v1307
  %1736 = vmatprep.subr.bf16.mxu0 0
  %1737 = vmatpush1.bf16.msra.mxu0 %v1308
  %1738 = vmatprep.subr.bf16.mxu0 0
  %1739 = vmatpush1.bf16.msra.mxu0 %v1309
  %1740 = vmatprep.subr.bf16.mxu0 0
  %1741 = vmatpush1.bf16.msra.mxu0 %v1310
  %1742 = vmatprep.subr.bf16.mxu0 0
  %1743 = vmatpush1.bf16.msra.mxu0 %v1311
  %1744 = vmatprep.subr.bf16.mxu0 0
  %1745 = vmatpush1.bf16.msra.mxu0 %v1312
  %1746 = vmatprep.subr.bf16.mxu0 0
  %1747 = vmatpush1.bf16.msra.mxu0 %v1313
  %1748 = vmatprep.subr.bf16.mxu0 0
  %1749 = vmatpush1.bf16.msra.mxu0 %v1314
  %1750 = vmatprep.subr.bf16.mxu0 0
  %1751 = vmatpush1.bf16.msra.mxu0 %v1315
  %1752 = vmatprep.subr.bf16.mxu0 0
  %1753 = vmatpush1.bf16.msra.mxu0 %v1316
  %1754 = vmatprep.subr.bf16.mxu0 0
  %1755 = vmatpush1.bf16.msra.mxu0 %v1317
  %1756 = vmatprep.subr.bf16.mxu0 0
  %1757 = vmatpush1.bf16.msra.mxu0 %v1318
  %1758 = vmatprep.subr.bf16.mxu0 0
  %1759 = vmatpush1.bf16.msra.mxu0 %v1319
  %1760 = vmatprep.mubr.bf16.mxu0 %v591
  %1761 = vmatmul.mubr.bf16.gmra.mrb[0].mxu0 %v590
  %v1762 = vpop.f32.mrb[0].mxu0
  %v1763 = vadd.f32 %v1691, %v1762
  %v1764 = vpop.f32.mrb[0].mxu0
  %v1765 = vpop.f32.mrb[0].mxu0
  %v1766 = vadd.f32 %v1694, %v1765
  %v1767 = vpop.f32.mrb[0].mxu0
  %1768 = vmatprep.mubr.bf16.mxu0 %v607
  %1769 = vmatmul.mubr.bf16.gmra.mrb[0].mxu0 %v606
  %v1770 = vpop.f32.mrb[0].mxu0
  %v1771 = vadd.f32 %v1699, %v1770
  %v1772 = vpop.f32.mrb[0].mxu0
  %v1773 = vpop.f32.mrb[0].mxu0
  %v1774 = vadd.f32 %v1702, %v1773
  %v1775 = vpop.f32.mrb[0].mxu0
  %1776 = vmatprep.mubr.bf16.mxu0 %v623
  %1777 = vmatmul.mubr.bf16.gmra.mrb[0].mxu0 %v622
  %v1778 = vpop.f32.mrb[0].mxu0
  %v1779 = vadd.f32 %v1707, %v1778
  %v1780 = vpop.f32.mrb[0].mxu0
  %v1781 = vpop.f32.mrb[0].mxu0
  %v1782 = vadd.f32 %v1710, %v1781
  %v1783 = vpop.f32.mrb[0].mxu0
  %1784 = vmatprep.mubr.bf16.mxu0 %v639
  %1785 = vmatmul.mubr.bf16.gmra.mrb[0].mxu0 %v638
  %v1786 = vpop.f32.mrb[0].mxu0
  %v1787 = vadd.f32 %v1715, %v1786
  %v1788 = vpop.f32.mrb[0].mxu0
  %v1789 = vpop.f32.mrb[0].mxu0
  %v1790 = vadd.f32 %v1718, %v1789
  %v1791 = vpop.f32.mrb[0].mxu0
  %1792 = vmatprep.mubr.bf16.mxu0 %v655
  %1793 = vmatmul.mubr.bf16.gmra.mrb[0].mxu0 %v654
  %v1794 = vpop.f32.mrb[0].mxu0
  %v1795 = vadd.f32 %v1723, %v1794
  %v1796 = vpop.f32.mrb[0].mxu0
  %v1797 = vpop.f32.mrb[0].mxu0
  %v1798 = vpop.f32.mrb[0].mxu0
  %1799 = vdwg.mxu0
  %1800 = vmatprep.subr.bf16.mxu0 0
  %1801 = vmatpush1.bf16.msra.mxu0 %v1320
  %1802 = vmatprep.subr.bf16.mxu0 0
  %1803 = vmatpush1.bf16.msra.mxu0 %v1321
  %1804 = vmatprep.subr.bf16.mxu0 0
  %1805 = vmatpush1.bf16.msra.mxu0 %v1322
  %1806 = vmatprep.subr.bf16.mxu0 0
  %1807 = vmatpush1.bf16.msra.mxu0 %v1323
  %1808 = vmatprep.subr.bf16.mxu0 0
  %1809 = vmatpush1.bf16.msra.mxu0 %v1324
  %1810 = vmatprep.subr.bf16.mxu0 0
  %1811 = vmatpush1.bf16.msra.mxu0 %v1325
  %1812 = vmatprep.subr.bf16.mxu0 0
  %1813 = vmatpush1.bf16.msra.mxu0 %v1326
  %1814 = vmatprep.subr.bf16.mxu0 0
  %1815 = vmatpush1.bf16.msra.mxu0 %v1327
  %1816 = vmatprep.subr.bf16.mxu0 0
  %1817 = vmatpush1.bf16.msra.mxu0 %v1328
  %1818 = vmatprep.subr.bf16.mxu0 0
  %1819 = vmatpush1.bf16.msra.mxu0 %v1329
  %1820 = vmatprep.subr.bf16.mxu0 0
  %1821 = vmatpush1.bf16.msra.mxu0 %v1330
  %1822 = vmatprep.subr.bf16.mxu0 0
  %1823 = vmatpush1.bf16.msra.mxu0 %v1331
  %1824 = vmatprep.subr.bf16.mxu0 0
  %1825 = vmatpush1.bf16.msra.mxu0 %v1332
  %1826 = vmatprep.subr.bf16.mxu0 0
  %1827 = vmatpush1.bf16.msra.mxu0 %v1333
  %1828 = vmatprep.subr.bf16.mxu0 0
  %1829 = vmatpush1.bf16.msra.mxu0 %v1334
  %1830 = vmatprep.subr.bf16.mxu0 0
  %1831 = vmatpush1.bf16.msra.mxu0 %v1335
  %1832 = vmatprep.mubr.bf16.mxu0 %v593
  %1833 = vmatmul.mubr.bf16.gmra.mrb[0].mxu0 %v592
  %v1834 = vpop.f32.mrb[0].mxu0
  %v1835 = vadd.f32 %v1763, %v1834
  %v1836 = vpop.f32.mrb[0].mxu0
  %v1837 = vpop.f32.mrb[0].mxu0
  %v1838 = vadd.f32 %v1766, %v1837
  %v1839 = vpop.f32.mrb[0].mxu0
  %1840 = vmatprep.mubr.bf16.mxu0 %v609
  %1841 = vmatmul.mubr.bf16.gmra.mrb[0].mxu0 %v608
  %v1842 = vpop.f32.mrb[0].mxu0
  %v1843 = vadd.f32 %v1771, %v1842
  %v1844 = vpop.f32.mrb[0].mxu0
  %v1845 = vpop.f32.mrb[0].mxu0
  %v1846 = vadd.f32 %v1774, %v1845
  %v1847 = vpop.f32.mrb[0].mxu0
  %1848 = vmatprep.mubr.bf16.mxu0 %v625
  %1849 = vmatmul.mubr.bf16.gmra.mrb[0].mxu0 %v624
  %v1850 = vpop.f32.mrb[0].mxu0
  %v1851 = vadd.f32 %v1779, %v1850
  %v1852 = vpop.f32.mrb[0].mxu0
  %v1853 = vpop.f32.mrb[0].mxu0
  %v1854 = vadd.f32 %v1782, %v1853
  %v1855 = vpop.f32.mrb[0].mxu0
  %1856 = vmatprep.mubr.bf16.mxu0 %v641
  %1857 = vmatmul.mubr.bf16.gmra.mrb[0].mxu0 %v640
  %v1858 = vpop.f32.mrb[0].mxu0
  %v1859 = vadd.f32 %v1787, %v1858
  %v1860 = vpop.f32.mrb[0].mxu0
  %v1861 = vpop.f32.mrb[0].mxu0
  %v1862 = vadd.f32 %v1790, %v1861
  %v1863 = vpop.f32.mrb[0].mxu0
  %1864 = vmatprep.mubr.bf16.mxu0 %v657
  %1865 = vmatmul.mubr.bf16.gmra.mrb[0].mxu0 %v656
  %v1866 = vpop.f32.mrb[0].mxu0
  %v1867 = vadd.f32 %v1795, %v1866
  %v1868 = vpop.f32.mrb[0].mxu0
  %v1869 = vpop.f32.mrb[0].mxu0
  %v1870 = vpop.f32.mrb[0].mxu0
  %1871 = vdwg.mxu0
  %1872 = vmatprep.subr.bf16.mxu0 0
  %1873 = vmatpush1.bf16.msra.mxu0 %v1336
  %1874 = vmatprep.subr.bf16.mxu0 0
  %1875 = vmatpush1.bf16.msra.mxu0 %v1337
  %1876 = vmatprep.subr.bf16.mxu0 0
  %1877 = vmatpush1.bf16.msra.mxu0 %v1338
  %1878 = vmatprep.subr.bf16.mxu0 0
  %1879 = vmatpush1.bf16.msra.mxu0 %v1339
  %1880 = vmatprep.subr.bf16.mxu0 0
  %1881 = vmatpush1.bf16.msra.mxu0 %v1340
  %1882 = vmatprep.subr.bf16.mxu0 0
  %1883 = vmatpush1.bf16.msra.mxu0 %v1341
  %1884 = vmatprep.subr.bf16.mxu0 0
  %1885 = vmatpush1.bf16.msra.mxu0 %v1342
  %1886 = vmatprep.subr.bf16.mxu0 0
  %1887 = vmatpush1.bf16.msra.mxu0 %v1343
  %1888 = vmatprep.subr.bf16.mxu0 0
  %1889 = vmatpush1.bf16.msra.mxu0 %v1344
  %1890 = vmatprep.subr.bf16.mxu0 0
  %1891 = vmatpush1.bf16.msra.mxu0 %v1345
  %1892 = vmatprep.subr.bf16.mxu0 0
  %1893 = vmatpush1.bf16.msra.mxu0 %v1346
  %1894 = vmatprep.subr.bf16.mxu0 0
  %1895 = vmatpush1.bf16.msra.mxu0 %v1347
  %1896 = vmatprep.subr.bf16.mxu0 0
  %1897 = vmatpush1.bf16.msra.mxu0 %v1348
  %1898 = vmatprep.subr.bf16.mxu0 0
  %1899 = vmatpush1.bf16.msra.mxu0 %v1349
  %1900 = vmatprep.subr.bf16.mxu0 0
  %1901 = vmatpush1.bf16.msra.mxu0 %v1350
  %1902 = vmatprep.subr.bf16.mxu0 0
  %1903 = vmatpush1.bf16.msra.mxu0 %v1351
  %1904 = vmatprep.mubr.bf16.mxu0 %v595
  %1905 = vmatmul.mubr.bf16.gmra.mrb[0].mxu0 %v594
  %v1906 = vpop.f32.mrb[0].mxu0
  %v1907 = vadd.f32 %v1835, %v1906
  %v1908 = vpop.f32.mrb[0].mxu0
  %v1909 = vpop.f32.mrb[0].mxu0
  %v1910 = vadd.f32 %v1838, %v1909
  %v1911 = vpop.f32.mrb[0].mxu0
  %1912 = vmatprep.mubr.bf16.mxu0 %v611
  %1913 = vmatmul.mubr.bf16.gmra.mrb[0].mxu0 %v610
  %v1914 = vpop.f32.mrb[0].mxu0
  %v1915 = vadd.f32 %v1843, %v1914
  %v1916 = vpop.f32.mrb[0].mxu0
  %v1917 = vpop.f32.mrb[0].mxu0
  %v1918 = vadd.f32 %v1846, %v1917
  %v1919 = vpop.f32.mrb[0].mxu0
  %1920 = vmatprep.mubr.bf16.mxu0 %v627
  %1921 = vmatmul.mubr.bf16.gmra.mrb[0].mxu0 %v626
  %v1922 = vpop.f32.mrb[0].mxu0
  %v1923 = vadd.f32 %v1851, %v1922
  %v1924 = vpop.f32.mrb[0].mxu0
  %v1925 = vpop.f32.mrb[0].mxu0
  %v1926 = vadd.f32 %v1854, %v1925
  %v1927 = vpop.f32.mrb[0].mxu0
  %1928 = vmatprep.mubr.bf16.mxu0 %v643
  %1929 = vmatmul.mubr.bf16.gmra.mrb[0].mxu0 %v642
  %v1930 = vpop.f32.mrb[0].mxu0
  %v1931 = vadd.f32 %v1859, %v1930
  %v1932 = vpop.f32.mrb[0].mxu0
  %v1933 = vpop.f32.mrb[0].mxu0
  %v1934 = vadd.f32 %v1862, %v1933
  %v1935 = vpop.f32.mrb[0].mxu0
  %1936 = vmatprep.mubr.bf16.mxu0 %v659
  %1937 = vmatmul.mubr.bf16.gmra.mrb[0].mxu0 %v658
  %v1938 = vpop.f32.mrb[0].mxu0
  %v1939 = vadd.f32 %v1867, %v1938
  %v1940 = vpop.f32.mrb[0].mxu0
  %v1941 = vpop.f32.mrb[0].mxu0
  %v1942 = vpop.f32.mrb[0].mxu0
  %1943 = vdwg.mxu0
  %1944 = vmatprep.subr.bf16.mxu0 0
  %1945 = vmatpush1.bf16.msra.mxu0 %v1352
  %1946 = vmatprep.subr.bf16.mxu0 0
  %1947 = vmatpush1.bf16.msra.mxu0 %v1353
  %1948 = vmatprep.subr.bf16.mxu0 0
  %1949 = vmatpush1.bf16.msra.mxu0 %v1354
  %1950 = vmatprep.subr.bf16.mxu0 0
  %1951 = vmatpush1.bf16.msra.mxu0 %v1355
  %1952 = vmatprep.subr.bf16.mxu0 0
  %1953 = vmatpush1.bf16.msra.mxu0 %v1356
  %1954 = vmatprep.subr.bf16.mxu0 0
  %1955 = vmatpush1.bf16.msra.mxu0 %v1357
  %1956 = vmatprep.subr.bf16.mxu0 0
  %1957 = vmatpush1.bf16.msra.mxu0 %v1358
  %1958 = vmatprep.subr.bf16.mxu0 0
  %1959 = vmatpush1.bf16.msra.mxu0 %v1359
  %1960 = vmatprep.subr.bf16.mxu0 0
  %1961 = vmatpush1.bf16.msra.mxu0 %v1360
  %1962 = vmatprep.subr.bf16.mxu0 0
  %1963 = vmatpush1.bf16.msra.mxu0 %v1361
  %1964 = vmatprep.subr.bf16.mxu0 0
  %1965 = vmatpush1.bf16.msra.mxu0 %v1362
  %1966 = vmatprep.subr.bf16.mxu0 0
  %1967 = vmatpush1.bf16.msra.mxu0 %v1363
  %1968 = vmatprep.subr.bf16.mxu0 0
  %1969 = vmatpush1.bf16.msra.mxu0 %v1364
  %1970 = vmatprep.subr.bf16.mxu0 0
  %1971 = vmatpush1.bf16.msra.mxu0 %v1365
  %1972 = vmatprep.subr.bf16.mxu0 0
  %1973 = vmatpush1.bf16.msra.mxu0 %v1366
  %1974 = vmatprep.subr.bf16.mxu0 0
  %1975 = vmatpush1.bf16.msra.mxu0 %v1367
  %1976 = vmatprep.mubr.bf16.mxu0 %v597
  %1977 = vmatmul.mubr.bf16.gmra.mrb[0].mxu0 %v596
  %v1978 = vpop.f32.mrb[0].mxu0
  %v1979 = vadd.f32 %v1907, %v1978
  %v1980 = vpop.f32.mrb[0].mxu0
  %v1981 = vpop.f32.mrb[0].mxu0
  %v1982 = vadd.f32 %v1910, %v1981
  %v1983 = vpop.f32.mrb[0].mxu0
  %1984 = vmatprep.mubr.bf16.mxu0 %v613
  %1985 = vmatmul.mubr.bf16.gmra.mrb[0].mxu0 %v612
  %v1986 = vpop.f32.mrb[0].mxu0
  %v1987 = vadd.f32 %v1915, %v1986
  %v1988 = vpop.f32.mrb[0].mxu0
  %v1989 = vpop.f32.mrb[0].mxu0
  %v1990 = vadd.f32 %v1918, %v1989
  %v1991 = vpop.f32.mrb[0].mxu0
  %1992 = vmatprep.mubr.bf16.mxu0 %v629
  %1993 = vmatmul.mubr.bf16.gmra.mrb[0].mxu0 %v628
  %v1994 = vpop.f32.mrb[0].mxu0
  %v1995 = vadd.f32 %v1923, %v1994
  %v1996 = vpop.f32.mrb[0].mxu0
  %v1997 = vpop.f32.mrb[0].mxu0
  %v1998 = vadd.f32 %v1926, %v1997
  %v1999 = vpop.f32.mrb[0].mxu0
  %2000 = vmatprep.mubr.bf16.mxu0 %v645
  %2001 = vmatmul.mubr.bf16.gmra.mrb[0].mxu0 %v644
  %v2002 = vpop.f32.mrb[0].mxu0
  %v2003 = vadd.f32 %v1931, %v2002
  %v2004 = vpop.f32.mrb[0].mxu0
  %v2005 = vpop.f32.mrb[0].mxu0
  %v2006 = vadd.f32 %v1934, %v2005
  %v2007 = vpop.f32.mrb[0].mxu0
  %2008 = vmatprep.mubr.bf16.mxu0 %v661
  %2009 = vmatmul.mubr.bf16.gmra.mrb[0].mxu0 %v660
  %v2010 = vpop.f32.mrb[0].mxu0
  %v2011 = vadd.f32 %v1939, %v2010
  %v2012 = vpop.f32.mrb[0].mxu0
  %v2013 = vpop.f32.mrb[0].mxu0
  %v2014 = vpop.f32.mrb[0].mxu0
  %2015 = vdwg.mxu0
  %2016 = vmatprep.subr.bf16.mxu0 0
  %2017 = vmatpush1.bf16.msra.mxu0 %v1368
  %2018 = vmatprep.subr.bf16.mxu0 0
  %2019 = vmatpush1.bf16.msra.mxu0 %v1369
  %2020 = vmatprep.subr.bf16.mxu0 0
  %2021 = vmatpush1.bf16.msra.mxu0 %v1370
  %2022 = vmatprep.subr.bf16.mxu0 0
  %2023 = vmatpush1.bf16.msra.mxu0 %v1371
  %2024 = vmatprep.subr.bf16.mxu0 0
  %2025 = vmatpush1.bf16.msra.mxu0 %v1372
  %2026 = vmatprep.subr.bf16.mxu0 0
  %2027 = vmatpush1.bf16.msra.mxu0 %v1373
  %2028 = vmatprep.subr.bf16.mxu0 0
  %2029 = vmatpush1.bf16.msra.mxu0 %v1374
  %2030 = vmatprep.subr.bf16.mxu0 0
  %2031 = vmatpush1.bf16.msra.mxu0 %v1375
  %2032 = vmatprep.subr.bf16.mxu0 0
  %2033 = vmatpush1.bf16.msra.mxu0 %v1376
  %2034 = vmatprep.subr.bf16.mxu0 0
  %2035 = vmatpush1.bf16.msra.mxu0 %v1377
  %2036 = vmatprep.subr.bf16.mxu0 0
  %2037 = vmatpush1.bf16.msra.mxu0 %v1378
  %2038 = vmatprep.subr.bf16.mxu0 0
  %2039 = vmatpush1.bf16.msra.mxu0 %v1379
  %2040 = vmatprep.subr.bf16.mxu0 0
  %2041 = vmatpush1.bf16.msra.mxu0 %v1380
  %2042 = vmatprep.subr.bf16.mxu0 0
  %2043 = vmatpush1.bf16.msra.mxu0 %v1381
  %2044 = vmatprep.subr.bf16.mxu0 0
  %2045 = vmatpush1.bf16.msra.mxu0 %v1382
  %2046 = vmatprep.subr.bf16.mxu0 0
  %2047 = vmatpush1.bf16.msra.mxu0 %v1383
  %2048 = vmatprep.mubr.bf16.mxu0 %v599
  %2049 = vmatmul.mubr.bf16.gmra.mrb[0].mxu0 %v598
  %v2050 = vpop.f32.mrb[0].mxu0
  %v2051 = vadd.f32 %v1979, %v2050
  %v2052 = vpop.f32.mrb[0].mxu0
  %v2053 = vpop.f32.mrb[0].mxu0
  %v2054 = vadd.f32 %v1982, %v2053
  %v2055 = vpop.f32.mrb[0].mxu0
  %2056 = vmatprep.mubr.bf16.mxu0 %v615
  %2057 = vmatmul.mubr.bf16.gmra.mrb[0].mxu0 %v614
  %v2058 = vpop.f32.mrb[0].mxu0
  %v2059 = vadd.f32 %v1987, %v2058
  %v2060 = vpop.f32.mrb[0].mxu0
  %v2061 = vpop.f32.mrb[0].mxu0
  %v2062 = vadd.f32 %v1990, %v2061
  %v2063 = vpop.f32.mrb[0].mxu0
  %2064 = vmatprep.mubr.bf16.mxu0 %v631
  %2065 = vmatmul.mubr.bf16.gmra.mrb[0].mxu0 %v630
  %v2066 = vpop.f32.mrb[0].mxu0
  %v2067 = vadd.f32 %v1995, %v2066
  %v2068 = vpop.f32.mrb[0].mxu0
  %v2069 = vpop.f32.mrb[0].mxu0
  %v2070 = vadd.f32 %v1998, %v2069
  %v2071 = vpop.f32.mrb[0].mxu0
  %2072 = vmatprep.mubr.bf16.mxu0 %v647
  %2073 = vmatmul.mubr.bf16.gmra.mrb[0].mxu0 %v646
  %v2074 = vpop.f32.mrb[0].mxu0
  %v2075 = vadd.f32 %v2003, %v2074
  %v2076 = vpop.f32.mrb[0].mxu0
  %v2077 = vpop.f32.mrb[0].mxu0
  %v2078 = vadd.f32 %v2006, %v2077
  %v2079 = vpop.f32.mrb[0].mxu0
  %2080 = vmatprep.mubr.bf16.mxu0 %v663
  %2081 = vmatmul.mubr.bf16.gmra.mrb[0].mxu0 %v662
  %v2082 = vpop.f32.mrb[0].mxu0
  %v2083 = vadd.f32 %v2011, %v2082
  %v2084 = vpop.f32.mrb[0].mxu0
  %v2085 = vpop.f32.mrb[0].mxu0
  %v2086 = vpop.f32.mrb[0].mxu0
  %2087 = vdwg.mxu0
  %vm2088 = vcmp.gt.f32.partialorder %v2051, 0.0
  %vm2089 = vcmp.gt.f32.partialorder %v2054, 0.0
  %vm2090 = vcmp.gt.f32.partialorder %v2059, 0.0
  %vm2091 = vcmp.gt.f32.partialorder %v2062, 0.0
  %vm2092 = vcmp.gt.f32.partialorder %v2067, 0.0
  %vm2093 = vcmp.gt.f32.partialorder %v2070, 0.0
  %vm2094 = vcmp.gt.f32.partialorder %v2075, 0.0
  %vm2095 = vcmp.gt.f32.partialorder %v2078, 0.0
  %vm2096 = vcmp.gt.f32.partialorder %v2083, 0.0
  %v2097 = vmul.f32 %v2051, 0.01
  %v2098 = vmul.f32 %v2054, 0.01
  %v2099 = vmul.f32 %v2059, 0.01
  %v2100 = vmul.f32 %v2062, 0.01
  %v2101 = vmul.f32 %v2067, 0.01
  %v2102 = vmul.f32 %v2070, 0.01
  %v2103 = vmul.f32 %v2075, 0.01
  %v2104 = vmul.f32 %v2078, 0.01
  %v2105 = vmul.f32 %v2083, 0.01
  %v2106 = vsel %vm2088, %v2051, %v2097
  %v2107 = vsel %vm2089, %v2054, %v2098
  %v2108 = vsel %vm2090, %v2059, %v2099
  %v2109 = vsel %vm2091, %v2062, %v2100
  %v2110 = vsel %vm2092, %v2067, %v2101
  %v2111 = vsel %vm2093, %v2070, %v2102
  %v2112 = vsel %vm2094, %v2075, %v2103
  %v2113 = vsel %vm2095, %v2078, %v2104
  %v2114 = vsel %vm2096, %v2083, %v2105
  %v2115 = vpack.c.bf16 %v2107, %v2106
  %v2116 = vpack.c.bf16 %v2109, %v2108
  %v2117 = vpack.c.bf16 %v2111, %v2110
  %v2118 = vpack.c.bf16 %v2113, %v2112
  %v2119 = vpack.c.bf16 %v2114, %v2114
  %v2120 = vld [vmem:[%s3] sm:$0xf]
  %v2121 = vld [vmem:[%s3 + $0x4] sm:$0xf]
  %v2122 = vld [vmem:[%s3 + $0x8] sm:$0xf]
  %v2123 = vld [vmem:[%s3 + $0xc] sm:$0xf]
  %v2124 = vld [vmem:[%s3 + $0x10] sm:$0xf]
  %v2125 = vld [vmem:[%s3 + $0x14] sm:$0xf]
  %v2126 = vld [vmem:[%s3 + $0x18] sm:$0xf]
  %v2127 = vld [vmem:[%s3 + $0x1c] sm:$0xf]
  %v2128 = vld [vmem:[%s3 + $0x20] sm:$0xf]
  %v2129 = vld [vmem:[%s3 + $0x24] sm:$0xf]
  %v2130 = vld [vmem:[%s3 + $0x28] sm:$0xf]
  %v2131 = vld [vmem:[%s3 + $0x2c] sm:$0xf]
  %v2132 = vld [vmem:[%s3 + $0x30] sm:$0xf]
  %v2133 = vld [vmem:[%s3 + $0x34] sm:$0xf]
  %v2134 = vld [vmem:[%s3 + $0x38] sm:$0xf]
  %v2135 = vld [vmem:[%s3 + $0x3c] sm:$0xf]
  %v2136 = vld [vmem:[%s3 + $0x40] sm:$0xf]
  %v2137 = vld [vmem:[%s3 + $0x44] sm:$0xf]
  %v2138 = vld [vmem:[%s3 + $0x48] sm:$0xf]
  %v2139 = vld [vmem:[%s3 + $0x4c] sm:$0xf]
  %v2140 = vld [vmem:[%s3 + $0x50] sm:$0xf]
  %v2141 = vld [vmem:[%s3 + $0x54] sm:$0xf]
  %v2142 = vld [vmem:[%s3 + $0x58] sm:$0xf]
  %v2143 = vld [vmem:[%s3 + $0x5c] sm:$0xf]
  %v2144 = vld [vmem:[%s3 + $0x60] sm:$0xf]
  %v2145 = vld [vmem:[%s3 + $0x64] sm:$0xf]
  %v2146 = vld [vmem:[%s3 + $0x68] sm:$0xf]
  %v2147 = vld [vmem:[%s3 + $0x6c] sm:$0xf]
  %v2148 = vld [vmem:[%s3 + $0x70] sm:$0xf]
  %v2149 = vld [vmem:[%s3 + $0x74] sm:$0xf]
  %v2150 = vld [vmem:[%s3 + $0x78] sm:$0xf]
  %v2151 = vld [vmem:[%s3 + $0x7c] sm:$0xf]
  %v2153 = vrot.slane %v2115, 4
  %v2171 = vunpack.c.l.b16 %v2136
  %v2172 = vunpack.c.l.b16 %v2137
  %v2173 = vunpack.c.l.b16 %v2138
  %v2174 = vunpack.c.l.b16 %v2139
  %v2175 = vunpack.c.l.b16 %v2140
  %v2176 = vunpack.c.l.b16 %v2141
  %v2177 = vunpack.c.l.b16 %v2142
  %v2178 = vunpack.c.l.b16 %v2143
  %v2179 = vunpack.c.l.b16 %v2144
  %v2180 = vunpack.c.l.b16 %v2145
  %v2181 = vunpack.c.l.b16 %v2146
  %v2182 = vunpack.c.l.b16 %v2147
  %v2183 = vunpack.c.l.b16 %v2148
  %v2184 = vunpack.c.l.b16 %v2149
  %v2185 = vunpack.c.l.b16 %v2150
  %v2186 = vunpack.c.l.b16 %v2151
  %v2187 = vpack.c.b16 %v2172, %v2171
  %v2188 = vpack.c.b16 %v2174, %v2173
  %v2189 = vpack.c.b16 %v2176, %v2175
  %v2190 = vpack.c.b16 %v2178, %v2177
  %v2191 = vpack.c.b16 %v2180, %v2179
  %v2192 = vpack.c.b16 %v2182, %v2181
  %v2193 = vpack.c.b16 %v2184, %v2183
  %v2194 = vpack.c.b16 %v2186, %v2185
  %2203 = vmatprep.subr.bf16.mxu0 0
  %2204 = vmatpush1.bf16.msra.mxu0 %v2187
  %2205 = vmatprep.subr.bf16.mxu0 0
  %2206 = vmatpush1.bf16.msra.mxu0 %v2188
  %2207 = vmatprep.subr.bf16.mxu0 0
  %2208 = vmatpush1.bf16.msra.mxu0 %v2189
  %2209 = vmatprep.subr.bf16.mxu0 0
  %2210 = vmatpush1.bf16.msra.mxu0 %v2190
  %2211 = vmatprep.subr.bf16.mxu0 0
  %2212 = vmatpush1.bf16.msra.mxu0 %v2191
  %2213 = vmatprep.subr.bf16.mxu0 0
  %2214 = vmatpush1.bf16.msra.mxu0 %v2192
  %2215 = vmatprep.subr.bf16.mxu0 0
  %2216 = vmatpush1.bf16.msra.mxu0 %v2193
  %2217 = vmatprep.subr.bf16.mxu0 0
  %2218 = vmatpush1.bf16.msra.mxu0 %v2194
  %2219 = vmatprep.subr.bf16.mxu0 0
  %2220 = vmatpush1.bf16.msra.mxu0 0
  %2221 = vmatprep.subr.bf16.mxu0 0
  %2222 = vmatpush1.bf16.msra.mxu0 0
  %2223 = vmatprep.subr.bf16.mxu0 0
  %2224 = vmatpush1.bf16.msra.mxu0 0
  %2225 = vmatprep.subr.bf16.mxu0 0
  %2226 = vmatpush1.bf16.msra.mxu0 0
  %2227 = vmatprep.subr.bf16.mxu0 0
  %2228 = vmatpush1.bf16.msra.mxu0 0
  %2229 = vmatprep.subr.bf16.mxu0 0
  %2230 = vmatpush1.bf16.msra.mxu0 0
  %2231 = vmatprep.subr.bf16.mxu0 0
  %2232 = vmatpush1.bf16.msra.mxu0 0
  %2233 = vmatprep.subr.bf16.mxu0 0
  %2234 = vmatpush1.bf16.msra.mxu0 0
  %2235 = vmatprep.mubr.bf16.mxu0 0
  %2236 = vmatmul.mubr.bf16.gmra.mrb[0].mxu0 %v2153
  %v2237 = vpop.f32.mrb[0].mxu0
  %v2238 = vadd.f32 0.0, %v2237
  %v2239 = vpop.f32.mrb[0].mxu0
  %v2240 = vpop.f32.mrb[0].mxu0
  %v2241 = vpop.f32.mrb[0].mxu0
  %2242 = vdwg.mxu0
  %v2259 = vunpack.c.l.b16 %v2120
  %v2260 = vunpack.c.l.b16 %v2121
  %v2261 = vunpack.c.l.b16 %v2122
  %v2262 = vunpack.c.l.b16 %v2123
  %v2263 = vunpack.c.l.b16 %v2124
  %v2264 = vunpack.c.l.b16 %v2125
  %v2265 = vunpack.c.l.b16 %v2126
  %v2266 = vunpack.c.l.b16 %v2127
  %v2267 = vunpack.c.l.b16 %v2128
  %v2268 = vunpack.c.l.b16 %v2129
  %v2269 = vunpack.c.l.b16 %v2130
  %v2270 = vunpack.c.l.b16 %v2131
  %v2271 = vunpack.c.l.b16 %v2132
  %v2272 = vunpack.c.l.b16 %v2133
  %v2273 = vunpack.c.l.b16 %v2134
  %v2274 = vunpack.c.l.b16 %v2135
  %v2275 = vpack.c.b16 %v2260, %v2259
  %v2276 = vpack.c.b16 %v2262, %v2261
  %v2277 = vpack.c.b16 %v2264, %v2263
  %v2278 = vpack.c.b16 %v2266, %v2265
  %v2279 = vpack.c.b16 %v2268, %v2267
  %v2280 = vpack.c.b16 %v2270, %v2269
  %v2281 = vpack.c.b16 %v2272, %v2271
  %v2282 = vpack.c.b16 %v2274, %v2273
  %2291 = vmatprep.subr.bf16.mxu0 0
  %2292 = vmatpush1.bf16.msra.mxu0 %v2275
  %2293 = vmatprep.subr.bf16.mxu0 0
  %2294 = vmatpush1.bf16.msra.mxu0 %v2276
  %2295 = vmatprep.subr.bf16.mxu0 0
  %2296 = vmatpush1.bf16.msra.mxu0 %v2277
  %2297 = vmatprep.subr.bf16.mxu0 0
  %2298 = vmatpush1.bf16.msra.mxu0 %v2278
  %2299 = vmatprep.subr.bf16.mxu0 0
  %2300 = vmatpush1.bf16.msra.mxu0 %v2279
  %2301 = vmatprep.subr.bf16.mxu0 0
  %2302 = vmatpush1.bf16.msra.mxu0 %v2280
  %2303 = vmatprep.subr.bf16.mxu0 0
  %2304 = vmatpush1.bf16.msra.mxu0 %v2281
  %2305 = vmatprep.subr.bf16.mxu0 0
  %2306 = vmatpush1.bf16.msra.mxu0 %v2282
  %2307 = vmatprep.subr.bf16.mxu0 0
  %2308 = vmatpush1.bf16.msra.mxu0 0
  %2309 = vmatprep.subr.bf16.mxu0 0
  %2310 = vmatpush1.bf16.msra.mxu0 0
  %2311 = vmatprep.subr.bf16.mxu0 0
  %2312 = vmatpush1.bf16.msra.mxu0 0
  %2313 = vmatprep.subr.bf16.mxu0 0
  %2314 = vmatpush1.bf16.msra.mxu0 0
  %2315 = vmatprep.subr.bf16.mxu0 0
  %2316 = vmatpush1.bf16.msra.mxu0 0
  %2317 = vmatprep.subr.bf16.mxu0 0
  %2318 = vmatpush1.bf16.msra.mxu0 0
  %2319 = vmatprep.subr.bf16.mxu0 0
  %2320 = vmatpush1.bf16.msra.mxu0 0
  %2321 = vmatprep.subr.bf16.mxu0 0
  %2322 = vmatpush1.bf16.msra.mxu0 0
  %2323 = vmatprep.mubr.bf16.mxu0 0
  %2324 = vmatmul.mubr.bf16.gmra.mrb[0].mxu0 %v2115
  %v2325 = vpop.f32.mrb[0].mxu0
  %v2326 = vadd.f32 %v2238, %v2325
  %v2327 = vpop.f32.mrb[0].mxu0
  %v2328 = vpop.f32.mrb[0].mxu0
  %v2329 = vpop.f32.mrb[0].mxu0
  %2330 = vdwg.mxu0
  %v2331 = vld [vmem:[%s3 + $0x80] sm:$0xf]
  %v2332 = vld [vmem:[%s3 + $0x84] sm:$0xf]
  %v2333 = vld [vmem:[%s3 + $0x88] sm:$0xf]
  %v2334 = vld [vmem:[%s3 + $0x8c] sm:$0xf]
  %v2335 = vld [vmem:[%s3 + $0x90] sm:$0xf]
  %v2336 = vld [vmem:[%s3 + $0x94] sm:$0xf]
  %v2337 = vld [vmem:[%s3 + $0x98] sm:$0xf]
  %v2338 = vld [vmem:[%s3 + $0x9c] sm:$0xf]
  %v2339 = vld [vmem:[%s3 + $0xa0] sm:$0xf]
  %v2340 = vld [vmem:[%s3 + $0xa4] sm:$0xf]
  %v2341 = vld [vmem:[%s3 + $0xa8] sm:$0xf]
  %v2342 = vld [vmem:[%s3 + $0xac] sm:$0xf]
  %v2343 = vld [vmem:[%s3 + $0xb0] sm:$0xf]
  %v2344 = vld [vmem:[%s3 + $0xb4] sm:$0xf]
  %v2345 = vld [vmem:[%s3 + $0xb8] sm:$0xf]
  %v2346 = vld [vmem:[%s3 + $0xbc] sm:$0xf]
  %v2363 = vunpack.c.l.b16 %v2331
  %v2364 = vunpack.c.l.b16 %v2332
  %v2365 = vunpack.c.l.b16 %v2333
  %v2366 = vunpack.c.l.b16 %v2334
  %v2367 = vunpack.c.l.b16 %v2335
  %v2368 = vunpack.c.l.b16 %v2336
  %v2369 = vunpack.c.l.b16 %v2337
  %v2370 = vunpack.c.l.b16 %v2338
  %v2371 = vunpack.c.l.b16 %v2339
  %v2372 = vunpack.c.l.b16 %v2340
  %v2373 = vunpack.c.l.b16 %v2341
  %v2374 = vunpack.c.l.b16 %v2342
  %v2375 = vunpack.c.l.b16 %v2343
  %v2376 = vunpack.c.l.b16 %v2344
  %v2377 = vunpack.c.l.b16 %v2345
  %v2378 = vunpack.c.l.b16 %v2346
  %v2379 = vpack.c.b16 %v2364, %v2363
  %v2380 = vpack.c.b16 %v2366, %v2365
  %v2381 = vpack.c.b16 %v2368, %v2367
  %v2382 = vpack.c.b16 %v2370, %v2369
  %v2383 = vpack.c.b16 %v2372, %v2371
  %v2384 = vpack.c.b16 %v2374, %v2373
  %v2385 = vpack.c.b16 %v2376, %v2375
  %v2386 = vpack.c.b16 %v2378, %v2377
  %2395 = vmatprep.subr.bf16.mxu0 0
  %2396 = vmatpush1.bf16.msra.mxu0 %v2379
  %2397 = vmatprep.subr.bf16.mxu0 0
  %2398 = vmatpush1.bf16.msra.mxu0 %v2380
  %2399 = vmatprep.subr.bf16.mxu0 0
  %2400 = vmatpush1.bf16.msra.mxu0 %v2381
  %2401 = vmatprep.subr.bf16.mxu0 0
  %2402 = vmatpush1.bf16.msra.mxu0 %v2382
  %2403 = vmatprep.subr.bf16.mxu0 0
  %2404 = vmatpush1.bf16.msra.mxu0 %v2383
  %2405 = vmatprep.subr.bf16.mxu0 0
  %2406 = vmatpush1.bf16.msra.mxu0 %v2384
  %2407 = vmatprep.subr.bf16.mxu0 0
  %2408 = vmatpush1.bf16.msra.mxu0 %v2385
  %2409 = vmatprep.subr.bf16.mxu0 0
  %2410 = vmatpush1.bf16.msra.mxu0 %v2386
  %2411 = vmatprep.subr.bf16.mxu0 0
  %2412 = vmatpush1.bf16.msra.mxu0 0
  %2413 = vmatprep.subr.bf16.mxu0 0
  %2414 = vmatpush1.bf16.msra.mxu0 0
  %2415 = vmatprep.subr.bf16.mxu0 0
  %2416 = vmatpush1.bf16.msra.mxu0 0
  %2417 = vmatprep.subr.bf16.mxu0 0
  %2418 = vmatpush1.bf16.msra.mxu0 0
  %2419 = vmatprep.subr.bf16.mxu0 0
  %2420 = vmatpush1.bf16.msra.mxu0 0
  %2421 = vmatprep.subr.bf16.mxu0 0
  %2422 = vmatpush1.bf16.msra.mxu0 0
  %2423 = vmatprep.subr.bf16.mxu0 0
  %2424 = vmatpush1.bf16.msra.mxu0 0
  %2425 = vmatprep.subr.bf16.mxu0 0
  %2426 = vmatpush1.bf16.msra.mxu0 0
  %2427 = vmatprep.mubr.bf16.mxu0 0
  %2428 = vmatmul.mubr.bf16.gmra.mrb[0].mxu0 %v2116
  %v2429 = vpop.f32.mrb[0].mxu0
  %v2430 = vadd.f32 0.0, %v2429
  %v2431 = vpop.f32.mrb[0].mxu0
  %v2432 = vpop.f32.mrb[0].mxu0
  %v2433 = vpop.f32.mrb[0].mxu0
  %2434 = vdwg.mxu0
  %v2435 = vadd.f32 %v2326, %v2430
  %v2436 = vld [vmem:[%s3 + $0xc0] sm:$0xf]
  %v2437 = vld [vmem:[%s3 + $0xc4] sm:$0xf]
  %v2438 = vld [vmem:[%s3 + $0xc8] sm:$0xf]
  %v2439 = vld [vmem:[%s3 + $0xcc] sm:$0xf]
  %v2440 = vld [vmem:[%s3 + $0xd0] sm:$0xf]
  %v2441 = vld [vmem:[%s3 + $0xd4] sm:$0xf]
  %v2442 = vld [vmem:[%s3 + $0xd8] sm:$0xf]
  %v2443 = vld [vmem:[%s3 + $0xdc] sm:$0xf]
  %v2444 = vld [vmem:[%s3 + $0xe0] sm:$0xf]
  %v2445 = vld [vmem:[%s3 + $0xe4] sm:$0xf]
  %v2446 = vld [vmem:[%s3 + $0xe8] sm:$0xf]
  %v2447 = vld [vmem:[%s3 + $0xec] sm:$0xf]
  %v2448 = vld [vmem:[%s3 + $0xf0] sm:$0xf]
  %v2449 = vld [vmem:[%s3 + $0xf4] sm:$0xf]
  %v2450 = vld [vmem:[%s3 + $0xf8] sm:$0xf]
  %v2451 = vld [vmem:[%s3 + $0xfc] sm:$0xf]
  %v2453 = vrot.slane %v2116, 4
  %v2471 = vunpack.c.l.b16 %v2436
  %v2472 = vunpack.c.l.b16 %v2437
  %v2473 = vunpack.c.l.b16 %v2438
  %v2474 = vunpack.c.l.b16 %v2439
  %v2475 = vunpack.c.l.b16 %v2440
  %v2476 = vunpack.c.l.b16 %v2441
  %v2477 = vunpack.c.l.b16 %v2442
  %v2478 = vunpack.c.l.b16 %v2443
  %v2479 = vunpack.c.l.b16 %v2444
  %v2480 = vunpack.c.l.b16 %v2445
  %v2481 = vunpack.c.l.b16 %v2446
  %v2482 = vunpack.c.l.b16 %v2447
  %v2483 = vunpack.c.l.b16 %v2448
  %v2484 = vunpack.c.l.b16 %v2449
  %v2485 = vunpack.c.l.b16 %v2450
  %v2486 = vunpack.c.l.b16 %v2451
  %v2487 = vpack.c.b16 %v2472, %v2471
  %v2488 = vpack.c.b16 %v2474, %v2473
  %v2489 = vpack.c.b16 %v2476, %v2475
  %v2490 = vpack.c.b16 %v2478, %v2477
  %v2491 = vpack.c.b16 %v2480, %v2479
  %v2492 = vpack.c.b16 %v2482, %v2481
  %v2493 = vpack.c.b16 %v2484, %v2483
  %v2494 = vpack.c.b16 %v2486, %v2485
  %2503 = vmatprep.subr.bf16.mxu0 0
  %2504 = vmatpush1.bf16.msra.mxu0 %v2487
  %2505 = vmatprep.subr.bf16.mxu0 0
  %2506 = vmatpush1.bf16.msra.mxu0 %v2488
  %2507 = vmatprep.subr.bf16.mxu0 0
  %2508 = vmatpush1.bf16.msra.mxu0 %v2489
  %2509 = vmatprep.subr.bf16.mxu0 0
  %2510 = vmatpush1.bf16.msra.mxu0 %v2490
  %2511 = vmatprep.subr.bf16.mxu0 0
  %2512 = vmatpush1.bf16.msra.mxu0 %v2491
  %2513 = vmatprep.subr.bf16.mxu0 0
  %2514 = vmatpush1.bf16.msra.mxu0 %v2492
  %2515 = vmatprep.subr.bf16.mxu0 0
  %2516 = vmatpush1.bf16.msra.mxu0 %v2493
  %2517 = vmatprep.subr.bf16.mxu0 0
  %2518 = vmatpush1.bf16.msra.mxu0 %v2494
  %2519 = vmatprep.subr.bf16.mxu0 0
  %2520 = vmatpush1.bf16.msra.mxu0 0
  %2521 = vmatprep.subr.bf16.mxu0 0
  %2522 = vmatpush1.bf16.msra.mxu0 0
  %2523 = vmatprep.subr.bf16.mxu0 0
  %2524 = vmatpush1.bf16.msra.mxu0 0
  %2525 = vmatprep.subr.bf16.mxu0 0
  %2526 = vmatpush1.bf16.msra.mxu0 0
  %2527 = vmatprep.subr.bf16.mxu0 0
  %2528 = vmatpush1.bf16.msra.mxu0 0
  %2529 = vmatprep.subr.bf16.mxu0 0
  %2530 = vmatpush1.bf16.msra.mxu0 0
  %2531 = vmatprep.subr.bf16.mxu0 0
  %2532 = vmatpush1.bf16.msra.mxu0 0
  %2533 = vmatprep.subr.bf16.mxu0 0
  %2534 = vmatpush1.bf16.msra.mxu0 0
  %2535 = vmatprep.mubr.bf16.mxu0 0
  %2536 = vmatmul.mubr.bf16.gmra.mrb[0].mxu0 %v2453
  %v2537 = vpop.f32.mrb[0].mxu0
  %v2538 = vadd.f32 0.0, %v2537
  %v2539 = vpop.f32.mrb[0].mxu0
  %v2540 = vpop.f32.mrb[0].mxu0
  %v2541 = vpop.f32.mrb[0].mxu0
  %2542 = vdwg.mxu0
  %v2543 = vadd.f32 %v2435, %v2538
  %v2544 = vld [vmem:[%s3 + $0x100] sm:$0xf]
  %v2545 = vld [vmem:[%s3 + $0x104] sm:$0xf]
  %v2546 = vld [vmem:[%s3 + $0x108] sm:$0xf]
  %v2547 = vld [vmem:[%s3 + $0x10c] sm:$0xf]
  %v2548 = vld [vmem:[%s3 + $0x110] sm:$0xf]
  %v2549 = vld [vmem:[%s3 + $0x114] sm:$0xf]
  %v2550 = vld [vmem:[%s3 + $0x118] sm:$0xf]
  %v2551 = vld [vmem:[%s3 + $0x11c] sm:$0xf]
  %v2552 = vld [vmem:[%s3 + $0x120] sm:$0xf]
  %v2553 = vld [vmem:[%s3 + $0x124] sm:$0xf]
  %v2554 = vld [vmem:[%s3 + $0x128] sm:$0xf]
  %v2555 = vld [vmem:[%s3 + $0x12c] sm:$0xf]
  %v2556 = vld [vmem:[%s3 + $0x130] sm:$0xf]
  %v2557 = vld [vmem:[%s3 + $0x134] sm:$0xf]
  %v2558 = vld [vmem:[%s3 + $0x138] sm:$0xf]
  %v2559 = vld [vmem:[%s3 + $0x13c] sm:$0xf]
  %v2576 = vunpack.c.l.b16 %v2544
  %v2577 = vunpack.c.l.b16 %v2545
  %v2578 = vunpack.c.l.b16 %v2546
  %v2579 = vunpack.c.l.b16 %v2547
  %v2580 = vunpack.c.l.b16 %v2548
  %v2581 = vunpack.c.l.b16 %v2549
  %v2582 = vunpack.c.l.b16 %v2550
  %v2583 = vunpack.c.l.b16 %v2551
  %v2584 = vunpack.c.l.b16 %v2552
  %v2585 = vunpack.c.l.b16 %v2553
  %v2586 = vunpack.c.l.b16 %v2554
  %v2587 = vunpack.c.l.b16 %v2555
  %v2588 = vunpack.c.l.b16 %v2556
  %v2589 = vunpack.c.l.b16 %v2557
  %v2590 = vunpack.c.l.b16 %v2558
  %v2591 = vunpack.c.l.b16 %v2559
  %v2592 = vpack.c.b16 %v2577, %v2576
  %v2593 = vpack.c.b16 %v2579, %v2578
  %v2594 = vpack.c.b16 %v2581, %v2580
  %v2595 = vpack.c.b16 %v2583, %v2582
  %v2596 = vpack.c.b16 %v2585, %v2584
  %v2597 = vpack.c.b16 %v2587, %v2586
  %v2598 = vpack.c.b16 %v2589, %v2588
  %v2599 = vpack.c.b16 %v2591, %v2590
  %2608 = vmatprep.subr.bf16.mxu0 0
  %2609 = vmatpush1.bf16.msra.mxu0 %v2592
  %2610 = vmatprep.subr.bf16.mxu0 0
  %2611 = vmatpush1.bf16.msra.mxu0 %v2593
  %2612 = vmatprep.subr.bf16.mxu0 0
  %2613 = vmatpush1.bf16.msra.mxu0 %v2594
  %2614 = vmatprep.subr.bf16.mxu0 0
  %2615 = vmatpush1.bf16.msra.mxu0 %v2595
  %2616 = vmatprep.subr.bf16.mxu0 0
  %2617 = vmatpush1.bf16.msra.mxu0 %v2596
  %2618 = vmatprep.subr.bf16.mxu0 0
  %2619 = vmatpush1.bf16.msra.mxu0 %v2597
  %2620 = vmatprep.subr.bf16.mxu0 0
  %2621 = vmatpush1.bf16.msra.mxu0 %v2598
  %2622 = vmatprep.subr.bf16.mxu0 0
  %2623 = vmatpush1.bf16.msra.mxu0 %v2599
  %2624 = vmatprep.subr.bf16.mxu0 0
  %2625 = vmatpush1.bf16.msra.mxu0 0
  %2626 = vmatprep.subr.bf16.mxu0 0
  %2627 = vmatpush1.bf16.msra.mxu0 0
  %2628 = vmatprep.subr.bf16.mxu0 0
  %2629 = vmatpush1.bf16.msra.mxu0 0
  %2630 = vmatprep.subr.bf16.mxu0 0
  %2631 = vmatpush1.bf16.msra.mxu0 0
  %2632 = vmatprep.subr.bf16.mxu0 0
  %2633 = vmatpush1.bf16.msra.mxu0 0
  %2634 = vmatprep.subr.bf16.mxu0 0
  %2635 = vmatpush1.bf16.msra.mxu0 0
  %2636 = vmatprep.subr.bf16.mxu0 0
  %2637 = vmatpush1.bf16.msra.mxu0 0
  %2638 = vmatprep.subr.bf16.mxu0 0
  %2639 = vmatpush1.bf16.msra.mxu0 0
  %2640 = vmatprep.mubr.bf16.mxu0 0
  %2641 = vmatmul.mubr.bf16.gmra.mrb[0].mxu0 %v2117
  %v2642 = vpop.f32.mrb[0].mxu0
  %v2643 = vadd.f32 0.0, %v2642
  %v2644 = vpop.f32.mrb[0].mxu0
  %v2645 = vpop.f32.mrb[0].mxu0
  %v2646 = vpop.f32.mrb[0].mxu0
  %2647 = vdwg.mxu0
  %v2648 = vadd.f32 %v2543, %v2643
  %v2649 = vld [vmem:[%s3 + $0x140] sm:$0xf]
  %v2650 = vld [vmem:[%s3 + $0x144] sm:$0xf]
  %v2651 = vld [vmem:[%s3 + $0x148] sm:$0xf]
  %v2652 = vld [vmem:[%s3 + $0x14c] sm:$0xf]
  %v2653 = vld [vmem:[%s3 + $0x150] sm:$0xf]
  %v2654 = vld [vmem:[%s3 + $0x154] sm:$0xf]
  %v2655 = vld [vmem:[%s3 + $0x158] sm:$0xf]
  %v2656 = vld [vmem:[%s3 + $0x15c] sm:$0xf]
  %v2657 = vld [vmem:[%s3 + $0x160] sm:$0xf]
  %v2658 = vld [vmem:[%s3 + $0x164] sm:$0xf]
  %v2659 = vld [vmem:[%s3 + $0x168] sm:$0xf]
  %v2660 = vld [vmem:[%s3 + $0x16c] sm:$0xf]
  %v2661 = vld [vmem:[%s3 + $0x170] sm:$0xf]
  %v2662 = vld [vmem:[%s3 + $0x174] sm:$0xf]
  %v2663 = vld [vmem:[%s3 + $0x178] sm:$0xf]
  %v2664 = vld [vmem:[%s3 + $0x17c] sm:$0xf]
  %v2666 = vrot.slane %v2117, 4
  %v2684 = vunpack.c.l.b16 %v2649
  %v2685 = vunpack.c.l.b16 %v2650
  %v2686 = vunpack.c.l.b16 %v2651
  %v2687 = vunpack.c.l.b16 %v2652
  %v2688 = vunpack.c.l.b16 %v2653
  %v2689 = vunpack.c.l.b16 %v2654
  %v2690 = vunpack.c.l.b16 %v2655
  %v2691 = vunpack.c.l.b16 %v2656
  %v2692 = vunpack.c.l.b16 %v2657
  %v2693 = vunpack.c.l.b16 %v2658
  %v2694 = vunpack.c.l.b16 %v2659
  %v2695 = vunpack.c.l.b16 %v2660
  %v2696 = vunpack.c.l.b16 %v2661
  %v2697 = vunpack.c.l.b16 %v2662
  %v2698 = vunpack.c.l.b16 %v2663
  %v2699 = vunpack.c.l.b16 %v2664
  %v2700 = vpack.c.b16 %v2685, %v2684
  %v2701 = vpack.c.b16 %v2687, %v2686
  %v2702 = vpack.c.b16 %v2689, %v2688
  %v2703 = vpack.c.b16 %v2691, %v2690
  %v2704 = vpack.c.b16 %v2693, %v2692
  %v2705 = vpack.c.b16 %v2695, %v2694
  %v2706 = vpack.c.b16 %v2697, %v2696
  %v2707 = vpack.c.b16 %v2699, %v2698
  %2716 = vmatprep.subr.bf16.mxu0 0
  %2717 = vmatpush1.bf16.msra.mxu0 %v2700
  %2718 = vmatprep.subr.bf16.mxu0 0
  %2719 = vmatpush1.bf16.msra.mxu0 %v2701
  %2720 = vmatprep.subr.bf16.mxu0 0
  %2721 = vmatpush1.bf16.msra.mxu0 %v2702
  %2722 = vmatprep.subr.bf16.mxu0 0
  %2723 = vmatpush1.bf16.msra.mxu0 %v2703
  %2724 = vmatprep.subr.bf16.mxu0 0
  %2725 = vmatpush1.bf16.msra.mxu0 %v2704
  %2726 = vmatprep.subr.bf16.mxu0 0
  %2727 = vmatpush1.bf16.msra.mxu0 %v2705
  %2728 = vmatprep.subr.bf16.mxu0 0
  %2729 = vmatpush1.bf16.msra.mxu0 %v2706
  %2730 = vmatprep.subr.bf16.mxu0 0
  %2731 = vmatpush1.bf16.msra.mxu0 %v2707
  %2732 = vmatprep.subr.bf16.mxu0 0
  %2733 = vmatpush1.bf16.msra.mxu0 0
  %2734 = vmatprep.subr.bf16.mxu0 0
  %2735 = vmatpush1.bf16.msra.mxu0 0
  %2736 = vmatprep.subr.bf16.mxu0 0
  %2737 = vmatpush1.bf16.msra.mxu0 0
  %2738 = vmatprep.subr.bf16.mxu0 0
  %2739 = vmatpush1.bf16.msra.mxu0 0
  %2740 = vmatprep.subr.bf16.mxu0 0
  %2741 = vmatpush1.bf16.msra.mxu0 0
  %2742 = vmatprep.subr.bf16.mxu0 0
  %2743 = vmatpush1.bf16.msra.mxu0 0
  %2744 = vmatprep.subr.bf16.mxu0 0
  %2745 = vmatpush1.bf16.msra.mxu0 0
  %2746 = vmatprep.subr.bf16.mxu0 0
  %2747 = vmatpush1.bf16.msra.mxu0 0
  %2748 = vmatprep.mubr.bf16.mxu0 0
  %2749 = vmatmul.mubr.bf16.gmra.mrb[0].mxu0 %v2666
  %v2750 = vpop.f32.mrb[0].mxu0
  %v2751 = vadd.f32 0.0, %v2750
  %v2752 = vpop.f32.mrb[0].mxu0
  %v2753 = vpop.f32.mrb[0].mxu0
  %v2754 = vpop.f32.mrb[0].mxu0
  %2755 = vdwg.mxu0
  %v2756 = vadd.f32 %v2648, %v2751
  %v2757 = vld [vmem:[%s3 + $0x180] sm:$0xf]
  %v2758 = vld [vmem:[%s3 + $0x184] sm:$0xf]
  %v2759 = vld [vmem:[%s3 + $0x188] sm:$0xf]
  %v2760 = vld [vmem:[%s3 + $0x18c] sm:$0xf]
  %v2761 = vld [vmem:[%s3 + $0x190] sm:$0xf]
  %v2762 = vld [vmem:[%s3 + $0x194] sm:$0xf]
  %v2763 = vld [vmem:[%s3 + $0x198] sm:$0xf]
  %v2764 = vld [vmem:[%s3 + $0x19c] sm:$0xf]
  %v2765 = vld [vmem:[%s3 + $0x1a0] sm:$0xf]
  %v2766 = vld [vmem:[%s3 + $0x1a4] sm:$0xf]
  %v2767 = vld [vmem:[%s3 + $0x1a8] sm:$0xf]
  %v2768 = vld [vmem:[%s3 + $0x1ac] sm:$0xf]
  %v2769 = vld [vmem:[%s3 + $0x1b0] sm:$0xf]
  %v2770 = vld [vmem:[%s3 + $0x1b4] sm:$0xf]
  %v2771 = vld [vmem:[%s3 + $0x1b8] sm:$0xf]
  %v2772 = vld [vmem:[%s3 + $0x1bc] sm:$0xf]
  %v2789 = vunpack.c.l.b16 %v2757
  %v2790 = vunpack.c.l.b16 %v2758
  %v2791 = vunpack.c.l.b16 %v2759
  %v2792 = vunpack.c.l.b16 %v2760
  %v2793 = vunpack.c.l.b16 %v2761
  %v2794 = vunpack.c.l.b16 %v2762
  %v2795 = vunpack.c.l.b16 %v2763
  %v2796 = vunpack.c.l.b16 %v2764
  %v2797 = vunpack.c.l.b16 %v2765
  %v2798 = vunpack.c.l.b16 %v2766
  %v2799 = vunpack.c.l.b16 %v2767
  %v2800 = vunpack.c.l.b16 %v2768
  %v2801 = vunpack.c.l.b16 %v2769
  %v2802 = vunpack.c.l.b16 %v2770
  %v2803 = vunpack.c.l.b16 %v2771
  %v2804 = vunpack.c.l.b16 %v2772
  %v2805 = vpack.c.b16 %v2790, %v2789
  %v2806 = vpack.c.b16 %v2792, %v2791
  %v2807 = vpack.c.b16 %v2794, %v2793
  %v2808 = vpack.c.b16 %v2796, %v2795
  %v2809 = vpack.c.b16 %v2798, %v2797
  %v2810 = vpack.c.b16 %v2800, %v2799
  %v2811 = vpack.c.b16 %v2802, %v2801
  %v2812 = vpack.c.b16 %v2804, %v2803
  %2821 = vmatprep.subr.bf16.mxu0 0
  %2822 = vmatpush1.bf16.msra.mxu0 %v2805
  %2823 = vmatprep.subr.bf16.mxu0 0
  %2824 = vmatpush1.bf16.msra.mxu0 %v2806
  %2825 = vmatprep.subr.bf16.mxu0 0
  %2826 = vmatpush1.bf16.msra.mxu0 %v2807
  %2827 = vmatprep.subr.bf16.mxu0 0
  %2828 = vmatpush1.bf16.msra.mxu0 %v2808
  %2829 = vmatprep.subr.bf16.mxu0 0
  %2830 = vmatpush1.bf16.msra.mxu0 %v2809
  %2831 = vmatprep.subr.bf16.mxu0 0
  %2832 = vmatpush1.bf16.msra.mxu0 %v2810
  %2833 = vmatprep.subr.bf16.mxu0 0
  %2834 = vmatpush1.bf16.msra.mxu0 %v2811
  %2835 = vmatprep.subr.bf16.mxu0 0
  %2836 = vmatpush1.bf16.msra.mxu0 %v2812
  %2837 = vmatprep.subr.bf16.mxu0 0
  %2838 = vmatpush1.bf16.msra.mxu0 0
  %2839 = vmatprep.subr.bf16.mxu0 0
  %2840 = vmatpush1.bf16.msra.mxu0 0
  %2841 = vmatprep.subr.bf16.mxu0 0
  %2842 = vmatpush1.bf16.msra.mxu0 0
  %2843 = vmatprep.subr.bf16.mxu0 0
  %2844 = vmatpush1.bf16.msra.mxu0 0
  %2845 = vmatprep.subr.bf16.mxu0 0
  %2846 = vmatpush1.bf16.msra.mxu0 0
  %2847 = vmatprep.subr.bf16.mxu0 0
  %2848 = vmatpush1.bf16.msra.mxu0 0
  %2849 = vmatprep.subr.bf16.mxu0 0
  %2850 = vmatpush1.bf16.msra.mxu0 0
  %2851 = vmatprep.subr.bf16.mxu0 0
  %2852 = vmatpush1.bf16.msra.mxu0 0
  %2853 = vmatprep.mubr.bf16.mxu0 0
  %2854 = vmatmul.mubr.bf16.gmra.mrb[0].mxu0 %v2118
  %v2855 = vpop.f32.mrb[0].mxu0
  %v2856 = vadd.f32 0.0, %v2855
  %v2857 = vpop.f32.mrb[0].mxu0
  %v2858 = vpop.f32.mrb[0].mxu0
  %v2859 = vpop.f32.mrb[0].mxu0
  %2860 = vdwg.mxu0
  %v2861 = vadd.f32 %v2756, %v2856
  %v2862 = vld [vmem:[%s3 + $0x1c0] sm:$0xf]
  %v2863 = vld [vmem:[%s3 + $0x1c4] sm:$0xf]
  %v2864 = vld [vmem:[%s3 + $0x1c8] sm:$0xf]
  %v2865 = vld [vmem:[%s3 + $0x1cc] sm:$0xf]
  %v2866 = vld [vmem:[%s3 + $0x1d0] sm:$0xf]
  %v2867 = vld [vmem:[%s3 + $0x1d4] sm:$0xf]
  %v2868 = vld [vmem:[%s3 + $0x1d8] sm:$0xf]
  %v2869 = vld [vmem:[%s3 + $0x1dc] sm:$0xf]
  %v2870 = vld [vmem:[%s3 + $0x1e0] sm:$0xf]
  %v2871 = vld [vmem:[%s3 + $0x1e4] sm:$0xf]
  %v2872 = vld [vmem:[%s3 + $0x1e8] sm:$0xf]
  %v2873 = vld [vmem:[%s3 + $0x1ec] sm:$0xf]
  %v2874 = vld [vmem:[%s3 + $0x1f0] sm:$0xf]
  %v2875 = vld [vmem:[%s3 + $0x1f4] sm:$0xf]
  %v2876 = vld [vmem:[%s3 + $0x1f8] sm:$0xf]
  %v2877 = vld [vmem:[%s3 + $0x1fc] sm:$0xf]
  %v2879 = vrot.slane %v2118, 4
  %v2897 = vunpack.c.l.b16 %v2862
  %v2898 = vunpack.c.l.b16 %v2863
  %v2899 = vunpack.c.l.b16 %v2864
  %v2900 = vunpack.c.l.b16 %v2865
  %v2901 = vunpack.c.l.b16 %v2866
  %v2902 = vunpack.c.l.b16 %v2867
  %v2903 = vunpack.c.l.b16 %v2868
  %v2904 = vunpack.c.l.b16 %v2869
  %v2905 = vunpack.c.l.b16 %v2870
  %v2906 = vunpack.c.l.b16 %v2871
  %v2907 = vunpack.c.l.b16 %v2872
  %v2908 = vunpack.c.l.b16 %v2873
  %v2909 = vunpack.c.l.b16 %v2874
  %v2910 = vunpack.c.l.b16 %v2875
  %v2911 = vunpack.c.l.b16 %v2876
  %v2912 = vunpack.c.l.b16 %v2877
  %v2913 = vpack.c.b16 %v2898, %v2897
  %v2914 = vpack.c.b16 %v2900, %v2899
  %v2915 = vpack.c.b16 %v2902, %v2901
  %v2916 = vpack.c.b16 %v2904, %v2903
  %v2917 = vpack.c.b16 %v2906, %v2905
  %v2918 = vpack.c.b16 %v2908, %v2907
  %v2919 = vpack.c.b16 %v2910, %v2909
  %v2920 = vpack.c.b16 %v2912, %v2911
  %2929 = vmatprep.subr.bf16.mxu0 0
  %2930 = vmatpush1.bf16.msra.mxu0 %v2913
  %2931 = vmatprep.subr.bf16.mxu0 0
  %2932 = vmatpush1.bf16.msra.mxu0 %v2914
  %2933 = vmatprep.subr.bf16.mxu0 0
  %2934 = vmatpush1.bf16.msra.mxu0 %v2915
  %2935 = vmatprep.subr.bf16.mxu0 0
  %2936 = vmatpush1.bf16.msra.mxu0 %v2916
  %2937 = vmatprep.subr.bf16.mxu0 0
  %2938 = vmatpush1.bf16.msra.mxu0 %v2917
  %2939 = vmatprep.subr.bf16.mxu0 0
  %2940 = vmatpush1.bf16.msra.mxu0 %v2918
  %2941 = vmatprep.subr.bf16.mxu0 0
  %2942 = vmatpush1.bf16.msra.mxu0 %v2919
  %2943 = vmatprep.subr.bf16.mxu0 0
  %2944 = vmatpush1.bf16.msra.mxu0 %v2920
  %2945 = vmatprep.subr.bf16.mxu0 0
  %2946 = vmatpush1.bf16.msra.mxu0 0
  %2947 = vmatprep.subr.bf16.mxu0 0
  %2948 = vmatpush1.bf16.msra.mxu0 0
  %2949 = vmatprep.subr.bf16.mxu0 0
  %2950 = vmatpush1.bf16.msra.mxu0 0
  %2951 = vmatprep.subr.bf16.mxu0 0
  %2952 = vmatpush1.bf16.msra.mxu0 0
  %2953 = vmatprep.subr.bf16.mxu0 0
  %2954 = vmatpush1.bf16.msra.mxu0 0
  %2955 = vmatprep.subr.bf16.mxu0 0
  %2956 = vmatpush1.bf16.msra.mxu0 0
  %2957 = vmatprep.subr.bf16.mxu0 0
  %2958 = vmatpush1.bf16.msra.mxu0 0
  %2959 = vmatprep.subr.bf16.mxu0 0
  %2960 = vmatpush1.bf16.msra.mxu0 0
  %2961 = vmatprep.mubr.bf16.mxu0 0
  %2962 = vmatmul.mubr.bf16.gmra.mrb[0].mxu0 %v2879
  %v2963 = vpop.f32.mrb[0].mxu0
  %v2964 = vadd.f32 0.0, %v2963
  %v2965 = vpop.f32.mrb[0].mxu0
  %v2966 = vpop.f32.mrb[0].mxu0
  %v2967 = vpop.f32.mrb[0].mxu0
  %2968 = vdwg.mxu0
  %v2969 = vadd.f32 %v2861, %v2964
  %v2970 = vld [vmem:[%s3 + $0x200] sm:$0xf]
  %v2971 = vld [vmem:[%s3 + $0x204] sm:$0xf]
  %v2972 = vld [vmem:[%s3 + $0x208] sm:$0xf]
  %v2973 = vld [vmem:[%s3 + $0x20c] sm:$0xf]
  %v2974 = vld [vmem:[%s3 + $0x210] sm:$0xf]
  %v2975 = vld [vmem:[%s3 + $0x214] sm:$0xf]
  %v2976 = vld [vmem:[%s3 + $0x218] sm:$0xf]
  %v2977 = vld [vmem:[%s3 + $0x21c] sm:$0xf]
  %v2978 = vld [vmem:[%s3 + $0x220] sm:$0xf]
  %v2979 = vld [vmem:[%s3 + $0x224] sm:$0xf]
  %v2980 = vld [vmem:[%s3 + $0x228] sm:$0xf]
  %v2981 = vld [vmem:[%s3 + $0x22c] sm:$0xf]
  %v2982 = vld [vmem:[%s3 + $0x230] sm:$0xf]
  %v2983 = vld [vmem:[%s3 + $0x234] sm:$0xf]
  %v2984 = vld [vmem:[%s3 + $0x238] sm:$0xf]
  %v2985 = vld [vmem:[%s3 + $0x23c] sm:$0xf]
  %v3002 = vunpack.c.l.b16 %v2970
  %v3003 = vunpack.c.l.b16 %v2971
  %v3004 = vunpack.c.l.b16 %v2972
  %v3005 = vunpack.c.l.b16 %v2973
  %v3006 = vunpack.c.l.b16 %v2974
  %v3007 = vunpack.c.l.b16 %v2975
  %v3008 = vunpack.c.l.b16 %v2976
  %v3009 = vunpack.c.l.b16 %v2977
  %v3010 = vunpack.c.l.b16 %v2978
  %v3011 = vunpack.c.l.b16 %v2979
  %v3012 = vunpack.c.l.b16 %v2980
  %v3013 = vunpack.c.l.b16 %v2981
  %v3014 = vunpack.c.l.b16 %v2982
  %v3015 = vunpack.c.l.b16 %v2983
  %v3016 = vunpack.c.l.b16 %v2984
  %v3017 = vunpack.c.l.b16 %v2985
  %v3018 = vpack.c.b16 %v3003, %v3002
  %v3019 = vpack.c.b16 %v3005, %v3004
  %v3020 = vpack.c.b16 %v3007, %v3006
  %v3021 = vpack.c.b16 %v3009, %v3008
  %v3022 = vpack.c.b16 %v3011, %v3010
  %v3023 = vpack.c.b16 %v3013, %v3012
  %v3024 = vpack.c.b16 %v3015, %v3014
  %v3025 = vpack.c.b16 %v3017, %v3016
  %3034 = vmatprep.subr.bf16.mxu0 0
  %3035 = vmatpush1.bf16.msra.mxu0 %v3018
  %3036 = vmatprep.subr.bf16.mxu0 0
  %3037 = vmatpush1.bf16.msra.mxu0 %v3019
  %3038 = vmatprep.subr.bf16.mxu0 0
  %3039 = vmatpush1.bf16.msra.mxu0 %v3020
  %3040 = vmatprep.subr.bf16.mxu0 0
  %3041 = vmatpush1.bf16.msra.mxu0 %v3021
  %3042 = vmatprep.subr.bf16.mxu0 0
  %3043 = vmatpush1.bf16.msra.mxu0 %v3022
  %3044 = vmatprep.subr.bf16.mxu0 0
  %3045 = vmatpush1.bf16.msra.mxu0 %v3023
  %3046 = vmatprep.subr.bf16.mxu0 0
  %3047 = vmatpush1.bf16.msra.mxu0 %v3024
  %3048 = vmatprep.subr.bf16.mxu0 0
  %3049 = vmatpush1.bf16.msra.mxu0 %v3025
  %3050 = vmatprep.subr.bf16.mxu0 0
  %3051 = vmatpush1.bf16.msra.mxu0 0
  %3052 = vmatprep.subr.bf16.mxu0 0
  %3053 = vmatpush1.bf16.msra.mxu0 0
  %3054 = vmatprep.subr.bf16.mxu0 0
  %3055 = vmatpush1.bf16.msra.mxu0 0
  %3056 = vmatprep.subr.bf16.mxu0 0
  %3057 = vmatpush1.bf16.msra.mxu0 0
  %3058 = vmatprep.subr.bf16.mxu0 0
  %3059 = vmatpush1.bf16.msra.mxu0 0
  %3060 = vmatprep.subr.bf16.mxu0 0
  %3061 = vmatpush1.bf16.msra.mxu0 0
  %3062 = vmatprep.subr.bf16.mxu0 0
  %3063 = vmatpush1.bf16.msra.mxu0 0
  %3064 = vmatprep.subr.bf16.mxu0 0
  %3065 = vmatpush1.bf16.msra.mxu0 0
  %3066 = vmatprep.mubr.bf16.mxu0 0
  %3067 = vmatmul.mubr.bf16.gmra.mrb[0].mxu0 %v2119
  %v3068 = vpop.f32.mrb[0].mxu0
  %v3069 = vadd.f32 0.0, %v3068
  %v3070 = vpop.f32.mrb[0].mxu0
  %v3071 = vpop.f32.mrb[0].mxu0
  %v3072 = vpop.f32.mrb[0].mxu0
  %3073 = vdwg.mxu0
  %v3074 = vadd.f32 %v2969, %v3069
  %v3075 = vld [vmem:[%s4] sm:$0x1]
  %v3077 = vlaneseq
  %v3078 = vshrl.u32 %v3077, 7
  %v3079 = vsub.s32 0, %v3078
  %v3080 = vrot.slane %v3075, %v3079
  %v3082 = vadd.f32 %v3074, %v3080
  %vm3083 = vcmp.gt.f32.partialorder %v3082, 0.0
  %v3084 = vmul.f32 %v3082, 0.01
  %v3085 = vsel %vm3083, %v3082, %v3084
  %v3086 = vpack.c.bf16 %v3085, %v3085
  %v3087 = vld [vmem:[%s5] sm:$0xff]
  %v3088 = vld [vmem:[%s5 + $0x8] sm:$0xff]
  %v3089 = vld [vmem:[%s5 + $0x10] sm:$0xff]
  %v3090 = vld [vmem:[%s5 + $0x18] sm:$0xff]
  %v3091 = vld [vmem:[%s5 + $0x20] sm:$0xff]
  %v3092 = vld [vmem:[%s5 + $0x28] sm:$0xff]
  %v3093 = vld [vmem:[%s5 + $0x30] sm:$0xff]
  %v3094 = vld [vmem:[%s5 + $0x38] sm:$0xff]
  %v3095 = vld [vmem:[%s5 + $0x40] sm:$0xff]
  %v3096 = vld [vmem:[%s5 + $0x48] sm:$0xff]
  %v3097 = vld [vmem:[%s5 + $0x50] sm:$0xff]
  %v3098 = vld [vmem:[%s5 + $0x58] sm:$0xff]
  %v3099 = vld [vmem:[%s5 + $0x60] sm:$0xff]
  %v3100 = vld [vmem:[%s5 + $0x68] sm:$0xff]
  %v3101 = vld [vmem:[%s5 + $0x70] sm:$0xff]
  %v3102 = vld [vmem:[%s5 + $0x78] sm:$0xff]
  %v3103 = vld [vmem:[%s5 + $0x80] sm:$0xff]
  %v3104 = vld [vmem:[%s5 + $0x88] sm:$0xff]
  %v3105 = vld [vmem:[%s5 + $0x90] sm:$0xff]
  %v3106 = vld [vmem:[%s5 + $0x98] sm:$0xff]
  %v3107 = vld [vmem:[%s5 + $0xa0] sm:$0xff]
  %v3108 = vld [vmem:[%s5 + $0xa8] sm:$0xff]
  %v3109 = vld [vmem:[%s5 + $0xb0] sm:$0xff]
  %v3110 = vld [vmem:[%s5 + $0xb8] sm:$0xff]
  %v3111 = vld [vmem:[%s5 + $0xc0] sm:$0xff]
  %v3112 = vld [vmem:[%s5 + $0xc8] sm:$0xff]
  %v3113 = vld [vmem:[%s5 + $0xd0] sm:$0xff]
  %v3114 = vld [vmem:[%s5 + $0xd8] sm:$0xff]
  %v3115 = vld [vmem:[%s5 + $0xe0] sm:$0xff]
  %v3116 = vld [vmem:[%s5 + $0xe8] sm:$0xff]
  %v3117 = vld [vmem:[%s5 + $0xf0] sm:$0xff]
  %v3118 = vld [vmem:[%s5 + $0xf8] sm:$0xff]
  %v3119 = vld [vmem:[%s6] sm:$0xf]
  %v3121 = vlaneseq
  %v3122 = vshrl.u32 %v3121, 7
  %v3123 = vsub.s32 0, %v3122
  %v3124 = vrot.slane %v3119, %v3123
  %v3125 = vlaneseq
  %v3126 = vshrl.u32 %v3125, 7
  %v3127 = vsub.s32 1, %v3126
  %v3128 = vrot.slane %v3119, %v3127
  %v3129 = vlaneseq
  %v3130 = vshrl.u32 %v3129, 7
  %v3131 = vsub.s32 2, %v3130
  %v3132 = vrot.slane %v3119, %v3131
  %v3133 = vlaneseq
  %v3134 = vshrl.u32 %v3133, 7
  %v3135 = vsub.s32 3, %v3134
  %v3136 = vrot.slane %v3119, %v3135
  %v3173 = vunpack.c.l.b16 %v3087
  %v3174 = vunpack.c.h.b16 %v3087
  %v3175 = vunpack.c.l.b16 %v3088
  %v3176 = vunpack.c.h.b16 %v3088
  %v3177 = vunpack.c.l.b16 %v3089
  %v3178 = vunpack.c.h.b16 %v3089
  %v3179 = vunpack.c.l.b16 %v3090
  %v3180 = vunpack.c.h.b16 %v3090
  %v3181 = vunpack.c.l.b16 %v3091
  %v3182 = vunpack.c.h.b16 %v3091
  %v3183 = vunpack.c.l.b16 %v3092
  %v3184 = vunpack.c.h.b16 %v3092
  %v3185 = vunpack.c.l.b16 %v3093
  %v3186 = vunpack.c.h.b16 %v3093
  %v3187 = vunpack.c.l.b16 %v3094
  %v3188 = vunpack.c.h.b16 %v3094
  %v3189 = vunpack.c.l.b16 %v3095
  %v3190 = vunpack.c.h.b16 %v3095
  %v3191 = vunpack.c.l.b16 %v3096
  %v3192 = vunpack.c.h.b16 %v3096
  %v3193 = vunpack.c.l.b16 %v3097
  %v3194 = vunpack.c.h.b16 %v3097
  %v3195 = vunpack.c.l.b16 %v3098
  %v3196 = vunpack.c.h.b16 %v3098
  %v3197 = vunpack.c.l.b16 %v3099
  %v3198 = vunpack.c.h.b16 %v3099
  %v3199 = vunpack.c.l.b16 %v3100
  %v3200 = vunpack.c.h.b16 %v3100
  %v3201 = vunpack.c.l.b16 %v3101
  %v3202 = vunpack.c.h.b16 %v3101
  %v3203 = vunpack.c.l.b16 %v3102
  %v3204 = vunpack.c.h.b16 %v3102
  %v3205 = vunpack.c.l.b16 %v3103
  %v3206 = vunpack.c.h.b16 %v3103
  %v3207 = vunpack.c.l.b16 %v3104
  %v3208 = vunpack.c.h.b16 %v3104
  %v3209 = vunpack.c.l.b16 %v3105
  %v3210 = vunpack.c.h.b16 %v3105
  %v3211 = vunpack.c.l.b16 %v3106
  %v3212 = vunpack.c.h.b16 %v3106
  %v3213 = vunpack.c.l.b16 %v3107
  %v3214 = vunpack.c.h.b16 %v3107
  %v3215 = vunpack.c.l.b16 %v3108
  %v3216 = vunpack.c.h.b16 %v3108
  %v3217 = vunpack.c.l.b16 %v3109
  %v3218 = vunpack.c.h.b16 %v3109
  %v3219 = vunpack.c.l.b16 %v3110
  %v3220 = vunpack.c.h.b16 %v3110
  %v3221 = vunpack.c.l.b16 %v3111
  %v3222 = vunpack.c.h.b16 %v3111
  %v3223 = vunpack.c.l.b16 %v3112
  %v3224 = vunpack.c.h.b16 %v3112
  %v3225 = vunpack.c.l.b16 %v3113
  %v3226 = vunpack.c.h.b16 %v3113
  %v3227 = vunpack.c.l.b16 %v3114
  %v3228 = vunpack.c.h.b16 %v3114
  %v3229 = vunpack.c.l.b16 %v3115
  %v3230 = vunpack.c.h.b16 %v3115
  %v3231 = vunpack.c.l.b16 %v3116
  %v3232 = vunpack.c.h.b16 %v3116
  %v3233 = vunpack.c.l.b16 %v3117
  %v3234 = vunpack.c.h.b16 %v3117
  %v3235 = vunpack.c.l.b16 %v3118
  %v3236 = vunpack.c.h.b16 %v3118
  %v3237 = vpack.c.b16 %v3177, %v3173
  %v3238 = vpack.c.b16 %v3178, %v3174
  %v3239 = vpack.c.b16 %v3179, %v3175
  %v3240 = vpack.c.b16 %v3180, %v3176
  %v3241 = vpack.c.b16 %v3185, %v3181
  %v3242 = vpack.c.b16 %v3186, %v3182
  %v3243 = vpack.c.b16 %v3187, %v3183
  %v3244 = vpack.c.b16 %v3188, %v3184
  %v3245 = vpack.c.b16 %v3193, %v3189
  %v3246 = vpack.c.b16 %v3194, %v3190
  %v3247 = vpack.c.b16 %v3195, %v3191
  %v3248 = vpack.c.b16 %v3196, %v3192
  %v3249 = vpack.c.b16 %v3201, %v3197
  %v3250 = vpack.c.b16 %v3202, %v3198
  %v3251 = vpack.c.b16 %v3203, %v3199
  %v3252 = vpack.c.b16 %v3204, %v3200
  %v3253 = vpack.c.b16 %v3209, %v3205
  %v3254 = vpack.c.b16 %v3210, %v3206
  %v3255 = vpack.c.b16 %v3211, %v3207
  %v3256 = vpack.c.b16 %v3212, %v3208
  %v3257 = vpack.c.b16 %v3217, %v3213
  %v3258 = vpack.c.b16 %v3218, %v3214
  %v3259 = vpack.c.b16 %v3219, %v3215
  %v3260 = vpack.c.b16 %v3220, %v3216
  %v3261 = vpack.c.b16 %v3225, %v3221
  %v3262 = vpack.c.b16 %v3226, %v3222
  %v3263 = vpack.c.b16 %v3227, %v3223
  %v3264 = vpack.c.b16 %v3228, %v3224
  %v3265 = vpack.c.b16 %v3233, %v3229
  %v3266 = vpack.c.b16 %v3234, %v3230
  %v3267 = vpack.c.b16 %v3235, %v3231
  %v3268 = vpack.c.b16 %v3236, %v3232
  %3301 = vmatprep.subr.bf16.mxu0 %v3238
  %3302 = vmatpush1.bf16.msra.mxu0 %v3237
  %3303 = vmatprep.subr.bf16.mxu0 %v3242
  %3304 = vmatpush1.bf16.msra.mxu0 %v3241
  %3305 = vmatprep.subr.bf16.mxu0 %v3246
  %3306 = vmatpush1.bf16.msra.mxu0 %v3245
  %3307 = vmatprep.subr.bf16.mxu0 %v3250
  %3308 = vmatpush1.bf16.msra.mxu0 %v3249
  %3309 = vmatprep.subr.bf16.mxu0 %v3254
  %3310 = vmatpush1.bf16.msra.mxu0 %v3253
  %3311 = vmatprep.subr.bf16.mxu0 %v3258
  %3312 = vmatpush1.bf16.msra.mxu0 %v3257
  %3313 = vmatprep.subr.bf16.mxu0 %v3262
  %3314 = vmatpush1.bf16.msra.mxu0 %v3261
  %3315 = vmatprep.subr.bf16.mxu0 %v3266
  %3316 = vmatpush1.bf16.msra.mxu0 %v3265
  %3317 = vmatprep.subr.bf16.mxu0 0
  %3318 = vmatpush1.bf16.msra.mxu0 0
  %3319 = vmatprep.subr.bf16.mxu0 0
  %3320 = vmatpush1.bf16.msra.mxu0 0
  %3321 = vmatprep.subr.bf16.mxu0 0
  %3322 = vmatpush1.bf16.msra.mxu0 0
  %3323 = vmatprep.subr.bf16.mxu0 0
  %3324 = vmatpush1.bf16.msra.mxu0 0
  %3325 = vmatprep.subr.bf16.mxu0 0
  %3326 = vmatpush1.bf16.msra.mxu0 0
  %3327 = vmatprep.subr.bf16.mxu0 0
  %3328 = vmatpush1.bf16.msra.mxu0 0
  %3329 = vmatprep.subr.bf16.mxu0 0
  %3330 = vmatpush1.bf16.msra.mxu0 0
  %3331 = vmatprep.subr.bf16.mxu0 0
  %3332 = vmatpush1.bf16.msra.mxu0 0
  %3333 = vmatprep.mubr.bf16.mxu0 0
  %3334 = vmatmul.mubr.bf16.gmra.mrb[0].mxu0 %v3086
  %v3335 = vpop.f32.mrb[0].mxu0
  %v3336 = vadd.f32 %v3124, %v3335
  %v3337 = vpop.f32.mrb[0].mxu0
  %v3338 = vadd.f32 %v3128, %v3337
  %v3339 = vpop.f32.mrb[0].mxu0
  %v3340 = vpop.f32.mrb[0].mxu0
  %3341 = vdwg.mxu0
  %3342 = vmatprep.subr.bf16.mxu0 %v3240
  %3343 = vmatpush1.bf16.msra.mxu0 %v3239
  %3344 = vmatprep.subr.bf16.mxu0 %v3244
  %3345 = vmatpush1.bf16.msra.mxu0 %v3243
  %3346 = vmatprep.subr.bf16.mxu0 %v3248
  %3347 = vmatpush1.bf16.msra.mxu0 %v3247
  %3348 = vmatprep.subr.bf16.mxu0 %v3252
  %3349 = vmatpush1.bf16.msra.mxu0 %v3251
  %3350 = vmatprep.subr.bf16.mxu0 %v3256
  %3351 = vmatpush1.bf16.msra.mxu0 %v3255
  %3352 = vmatprep.subr.bf16.mxu0 %v3260
  %3353 = vmatpush1.bf16.msra.mxu0 %v3259
  %3354 = vmatprep.subr.bf16.mxu0 %v3264
  %3355 = vmatpush1.bf16.msra.mxu0 %v3263
  %3356 = vmatprep.subr.bf16.mxu0 %v3268
  %3357 = vmatpush1.bf16.msra.mxu0 %v3267
  %3358 = vmatprep.subr.bf16.mxu0 0
  %3359 = vmatpush1.bf16.msra.mxu0 0
  %3360 = vmatprep.subr.bf16.mxu0 0
  %3361 = vmatpush1.bf16.msra.mxu0 0
  %3362 = vmatprep.subr.bf16.mxu0 0
  %3363 = vmatpush1.bf16.msra.mxu0 0
  %3364 = vmatprep.subr.bf16.mxu0 0
  %3365 = vmatpush1.bf16.msra.mxu0 0
  %3366 = vmatprep.subr.bf16.mxu0 0
  %3367 = vmatpush1.bf16.msra.mxu0 0
  %3368 = vmatprep.subr.bf16.mxu0 0
  %3369 = vmatpush1.bf16.msra.mxu0 0
  %3370 = vmatprep.subr.bf16.mxu0 0
  %3371 = vmatpush1.bf16.msra.mxu0 0
  %3372 = vmatprep.subr.bf16.mxu0 0
  %3373 = vmatpush1.bf16.msra.mxu0 0
  %3374 = vmatprep.mubr.bf16.mxu0 0
  %3375 = vmatmul.mubr.bf16.gmra.mrb[0].mxu0 %v3086
  %v3376 = vpop.f32.mrb[0].mxu0
  %v3377 = vadd.f32 %v3132, %v3376
  %v3378 = vpop.f32.mrb[0].mxu0
  %v3379 = vadd.f32 %v3136, %v3378
  %v3380 = vpop.f32.mrb[0].mxu0
  %v3381 = vpop.f32.mrb[0].mxu0
  %3382 = vdwg.mxu0
  %vm3383 = vcmp.gt.f32.partialorder %v3336, 0.0
  %vm3384 = vcmp.gt.f32.partialorder %v3338, 0.0
  %vm3385 = vcmp.gt.f32.partialorder %v3377, 0.0
  %vm3386 = vcmp.gt.f32.partialorder %v3379, 0.0
  %v3387 = vmul.f32 %v3336, 0.01
  %v3388 = vmul.f32 %v3338, 0.01
  %v3389 = vmul.f32 %v3377, 0.01
  %v3390 = vmul.f32 %v3379, 0.01
  %v3391 = vsel %vm3383, %v3336, %v3387
  %v3392 = vsel %vm3384, %v3338, %v3388
  %v3393 = vsel %vm3385, %v3377, %v3389
  %v3394 = vsel %vm3386, %v3379, %v3390
  %v3395 = vpack.c.bf16 %v3391, %v3391
  %v3396 = vpack.c.bf16 %v3392, %v3392
  %v3397 = vpack.c.bf16 %v3393, %v3393
  %v3398 = vpack.c.bf16 %v3394, %v3394
  %v3399 = vld [vmem:[%s7] sm:$0xf]
  %v3400 = vld [vmem:[%s7 + $0x4] sm:$0xf]
  %v3401 = vld [vmem:[%s7 + $0x8] sm:$0xf]
  %v3402 = vld [vmem:[%s7 + $0xc] sm:$0xf]
  %v3403 = vld [vmem:[%s7 + $0x10] sm:$0xf]
  %v3404 = vld [vmem:[%s7 + $0x14] sm:$0xf]
  %v3405 = vld [vmem:[%s7 + $0x18] sm:$0xf]
  %v3406 = vld [vmem:[%s7 + $0x1c] sm:$0xf]
  %v3407 = vld [vmem:[%s7 + $0x20] sm:$0xf]
  %v3408 = vld [vmem:[%s7 + $0x24] sm:$0xf]
  %v3409 = vld [vmem:[%s7 + $0x28] sm:$0xf]
  %v3410 = vld [vmem:[%s7 + $0x2c] sm:$0xf]
  %v3411 = vld [vmem:[%s7 + $0x30] sm:$0xf]
  %v3412 = vld [vmem:[%s7 + $0x34] sm:$0xf]
  %v3413 = vld [vmem:[%s7 + $0x38] sm:$0xf]
  %v3414 = vld [vmem:[%s7 + $0x3c] sm:$0xf]
  %v3415 = vld [vmem:[%s7 + $0x40] sm:$0xf]
  %v3416 = vld [vmem:[%s7 + $0x44] sm:$0xf]
  %v3417 = vld [vmem:[%s7 + $0x48] sm:$0xf]
  %v3418 = vld [vmem:[%s7 + $0x4c] sm:$0xf]
  %v3419 = vld [vmem:[%s7 + $0x50] sm:$0xf]
  %v3420 = vld [vmem:[%s7 + $0x54] sm:$0xf]
  %v3421 = vld [vmem:[%s7 + $0x58] sm:$0xf]
  %v3422 = vld [vmem:[%s7 + $0x5c] sm:$0xf]
  %v3423 = vld [vmem:[%s7 + $0x60] sm:$0xf]
  %v3424 = vld [vmem:[%s7 + $0x64] sm:$0xf]
  %v3425 = vld [vmem:[%s7 + $0x68] sm:$0xf]
  %v3426 = vld [vmem:[%s7 + $0x6c] sm:$0xf]
  %v3427 = vld [vmem:[%s7 + $0x70] sm:$0xf]
  %v3428 = vld [vmem:[%s7 + $0x74] sm:$0xf]
  %v3429 = vld [vmem:[%s7 + $0x78] sm:$0xf]
  %v3430 = vld [vmem:[%s7 + $0x7c] sm:$0xf]
  %v3431 = vld [vmem:[%s7 + $0x80] sm:$0xf]
  %v3432 = vld [vmem:[%s7 + $0x84] sm:$0xf]
  %v3433 = vld [vmem:[%s7 + $0x88] sm:$0xf]
  %v3434 = vld [vmem:[%s7 + $0x8c] sm:$0xf]
  %v3435 = vld [vmem:[%s7 + $0x90] sm:$0xf]
  %v3436 = vld [vmem:[%s7 + $0x94] sm:$0xf]
  %v3437 = vld [vmem:[%s7 + $0x98] sm:$0xf]
  %v3438 = vld [vmem:[%s7 + $0x9c] sm:$0xf]
  %v3439 = vld [vmem:[%s7 + $0xa0] sm:$0xf]
  %v3440 = vld [vmem:[%s7 + $0xa4] sm:$0xf]
  %v3441 = vld [vmem:[%s7 + $0xa8] sm:$0xf]
  %v3442 = vld [vmem:[%s7 + $0xac] sm:$0xf]
  %v3443 = vld [vmem:[%s7 + $0xb0] sm:$0xf]
  %v3444 = vld [vmem:[%s7 + $0xb4] sm:$0xf]
  %v3445 = vld [vmem:[%s7 + $0xb8] sm:$0xf]
  %v3446 = vld [vmem:[%s7 + $0xbc] sm:$0xf]
  %v3447 = vld [vmem:[%s7 + $0xc0] sm:$0xf]
  %v3448 = vld [vmem:[%s7 + $0xc4] sm:$0xf]
  %v3449 = vld [vmem:[%s7 + $0xc8] sm:$0xf]
  %v3450 = vld [vmem:[%s7 + $0xcc] sm:$0xf]
  %v3451 = vld [vmem:[%s7 + $0xd0] sm:$0xf]
  %v3452 = vld [vmem:[%s7 + $0xd4] sm:$0xf]
  %v3453 = vld [vmem:[%s7 + $0xd8] sm:$0xf]
  %v3454 = vld [vmem:[%s7 + $0xdc] sm:$0xf]
  %v3455 = vld [vmem:[%s7 + $0xe0] sm:$0xf]
  %v3456 = vld [vmem:[%s7 + $0xe4] sm:$0xf]
  %v3457 = vld [vmem:[%s7 + $0xe8] sm:$0xf]
  %v3458 = vld [vmem:[%s7 + $0xec] sm:$0xf]
  %v3459 = vld [vmem:[%s7 + $0xf0] sm:$0xf]
  %v3460 = vld [vmem:[%s7 + $0xf4] sm:$0xf]
  %v3461 = vld [vmem:[%s7 + $0xf8] sm:$0xf]
  %v3462 = vld [vmem:[%s7 + $0xfc] sm:$0xf]
  %v3463 = vld [vmem:[%s8] sm:$0x1]
  %v3465 = vlaneseq
  %v3466 = vshrl.u32 %v3465, 7
  %v3467 = vsub.s32 0, %v3466
  %v3468 = vrot.slane %v3463, %v3467
  %v3534 = vunpack.c.l.b16 %v3399
  %v3535 = vunpack.c.l.b16 %v3400
  %v3536 = vunpack.c.l.b16 %v3401
  %v3537 = vunpack.c.l.b16 %v3402
  %v3538 = vunpack.c.l.b16 %v3403
  %v3539 = vunpack.c.l.b16 %v3404
  %v3540 = vunpack.c.l.b16 %v3405
  %v3541 = vunpack.c.l.b16 %v3406
  %v3542 = vunpack.c.l.b16 %v3407
  %v3543 = vunpack.c.l.b16 %v3408
  %v3544 = vunpack.c.l.b16 %v3409
  %v3545 = vunpack.c.l.b16 %v3410
  %v3546 = vunpack.c.l.b16 %v3411
  %v3547 = vunpack.c.l.b16 %v3412
  %v3548 = vunpack.c.l.b16 %v3413
  %v3549 = vunpack.c.l.b16 %v3414
  %v3550 = vunpack.c.l.b16 %v3415
  %v3551 = vunpack.c.l.b16 %v3416
  %v3552 = vunpack.c.l.b16 %v3417
  %v3553 = vunpack.c.l.b16 %v3418
  %v3554 = vunpack.c.l.b16 %v3419
  %v3555 = vunpack.c.l.b16 %v3420
  %v3556 = vunpack.c.l.b16 %v3421
  %v3557 = vunpack.c.l.b16 %v3422
  %v3558 = vunpack.c.l.b16 %v3423
  %v3559 = vunpack.c.l.b16 %v3424
  %v3560 = vunpack.c.l.b16 %v3425
  %v3561 = vunpack.c.l.b16 %v3426
  %v3562 = vunpack.c.l.b16 %v3427
  %v3563 = vunpack.c.l.b16 %v3428
  %v3564 = vunpack.c.l.b16 %v3429
  %v3565 = vunpack.c.l.b16 %v3430
  %v3566 = vunpack.c.l.b16 %v3431
  %v3567 = vunpack.c.l.b16 %v3432
  %v3568 = vunpack.c.l.b16 %v3433
  %v3569 = vunpack.c.l.b16 %v3434
  %v3570 = vunpack.c.l.b16 %v3435
  %v3571 = vunpack.c.l.b16 %v3436
  %v3572 = vunpack.c.l.b16 %v3437
  %v3573 = vunpack.c.l.b16 %v3438
  %v3574 = vunpack.c.l.b16 %v3439
  %v3575 = vunpack.c.l.b16 %v3440
  %v3576 = vunpack.c.l.b16 %v3441
  %v3577 = vunpack.c.l.b16 %v3442
  %v3578 = vunpack.c.l.b16 %v3443
  %v3579 = vunpack.c.l.b16 %v3444
  %v3580 = vunpack.c.l.b16 %v3445
  %v3581 = vunpack.c.l.b16 %v3446
  %v3582 = vunpack.c.l.b16 %v3447
  %v3583 = vunpack.c.l.b16 %v3448
  %v3584 = vunpack.c.l.b16 %v3449
  %v3585 = vunpack.c.l.b16 %v3450
  %v3586 = vunpack.c.l.b16 %v3451
  %v3587 = vunpack.c.l.b16 %v3452
  %v3588 = vunpack.c.l.b16 %v3453
  %v3589 = vunpack.c.l.b16 %v3454
  %v3590 = vunpack.c.l.b16 %v3455
  %v3591 = vunpack.c.l.b16 %v3456
  %v3592 = vunpack.c.l.b16 %v3457
  %v3593 = vunpack.c.l.b16 %v3458
  %v3594 = vunpack.c.l.b16 %v3459
  %v3595 = vunpack.c.l.b16 %v3460
  %v3596 = vunpack.c.l.b16 %v3461
  %v3597 = vunpack.c.l.b16 %v3462
  %v3598 = vpack.c.b16 %v3535, %v3534
  %v3599 = vpack.c.b16 %v3537, %v3536
  %v3600 = vpack.c.b16 %v3539, %v3538
  %v3601 = vpack.c.b16 %v3541, %v3540
  %v3602 = vpack.c.b16 %v3543, %v3542
  %v3603 = vpack.c.b16 %v3545, %v3544
  %v3604 = vpack.c.b16 %v3547, %v3546
  %v3605 = vpack.c.b16 %v3549, %v3548
  %v3606 = vpack.c.b16 %v3551, %v3550
  %v3607 = vpack.c.b16 %v3553, %v3552
  %v3608 = vpack.c.b16 %v3555, %v3554
  %v3609 = vpack.c.b16 %v3557, %v3556
  %v3610 = vpack.c.b16 %v3559, %v3558
  %v3611 = vpack.c.b16 %v3561, %v3560
  %v3612 = vpack.c.b16 %v3563, %v3562
  %v3613 = vpack.c.b16 %v3565, %v3564
  %v3614 = vpack.c.b16 %v3567, %v3566
  %v3615 = vpack.c.b16 %v3569, %v3568
  %v3616 = vpack.c.b16 %v3571, %v3570
  %v3617 = vpack.c.b16 %v3573, %v3572
  %v3618 = vpack.c.b16 %v3575, %v3574
  %v3619 = vpack.c.b16 %v3577, %v3576
  %v3620 = vpack.c.b16 %v3579, %v3578
  %v3621 = vpack.c.b16 %v3581, %v3580
  %v3622 = vpack.c.b16 %v3583, %v3582
  %v3623 = vpack.c.b16 %v3585, %v3584
  %v3624 = vpack.c.b16 %v3587, %v3586
  %v3625 = vpack.c.b16 %v3589, %v3588
  %v3626 = vpack.c.b16 %v3591, %v3590
  %v3627 = vpack.c.b16 %v3593, %v3592
  %v3628 = vpack.c.b16 %v3595, %v3594
  %v3629 = vpack.c.b16 %v3597, %v3596
  %3662 = vmatprep.subr.bf16.mxu0 0
  %3663 = vmatpush1.bf16.msra.mxu0 %v3598
  %3664 = vmatprep.subr.bf16.mxu0 0
  %3665 = vmatpush1.bf16.msra.mxu0 %v3599
  %3666 = vmatprep.subr.bf16.mxu0 0
  %3667 = vmatpush1.bf16.msra.mxu0 %v3600
  %3668 = vmatprep.subr.bf16.mxu0 0
  %3669 = vmatpush1.bf16.msra.mxu0 %v3601
  %3670 = vmatprep.subr.bf16.mxu0 0
  %3671 = vmatpush1.bf16.msra.mxu0 %v3602
  %3672 = vmatprep.subr.bf16.mxu0 0
  %3673 = vmatpush1.bf16.msra.mxu0 %v3603
  %3674 = vmatprep.subr.bf16.mxu0 0
  %3675 = vmatpush1.bf16.msra.mxu0 %v3604
  %3676 = vmatprep.subr.bf16.mxu0 0
  %3677 = vmatpush1.bf16.msra.mxu0 %v3605
  %3678 = vmatprep.subr.bf16.mxu0 0
  %3679 = vmatpush1.bf16.msra.mxu0 %v3606
  %3680 = vmatprep.subr.bf16.mxu0 0
  %3681 = vmatpush1.bf16.msra.mxu0 %v3607
  %3682 = vmatprep.subr.bf16.mxu0 0
  %3683 = vmatpush1.bf16.msra.mxu0 %v3608
  %3684 = vmatprep.subr.bf16.mxu0 0
  %3685 = vmatpush1.bf16.msra.mxu0 %v3609
  %3686 = vmatprep.subr.bf16.mxu0 0
  %3687 = vmatpush1.bf16.msra.mxu0 %v3610
  %3688 = vmatprep.subr.bf16.mxu0 0
  %3689 = vmatpush1.bf16.msra.mxu0 %v3611
  %3690 = vmatprep.subr.bf16.mxu0 0
  %3691 = vmatpush1.bf16.msra.mxu0 %v3612
  %3692 = vmatprep.subr.bf16.mxu0 0
  %3693 = vmatpush1.bf16.msra.mxu0 %v3613
  %3694 = vmatprep.mubr.bf16.mxu0 %v3396
  %3695 = vmatmul.mubr.bf16.gmra.mrb[0].mxu0 %v3395
  %v3696 = vpop.f32.mrb[0].mxu0
  %v3697 = vadd.f32 %v3468, %v3696
  %v3698 = vpop.f32.mrb[0].mxu0
  %v3699 = vpop.f32.mrb[0].mxu0
  %v3700 = vpop.f32.mrb[0].mxu0
  %3701 = vdwg.mxu0
  %3702 = vmatprep.subr.bf16.mxu0 0
  %3703 = vmatpush1.bf16.msra.mxu0 %v3614
  %3704 = vmatprep.subr.bf16.mxu0 0
  %3705 = vmatpush1.bf16.msra.mxu0 %v3615
  %3706 = vmatprep.subr.bf16.mxu0 0
  %3707 = vmatpush1.bf16.msra.mxu0 %v3616
  %3708 = vmatprep.subr.bf16.mxu0 0
  %3709 = vmatpush1.bf16.msra.mxu0 %v3617
  %3710 = vmatprep.subr.bf16.mxu0 0
  %3711 = vmatpush1.bf16.msra.mxu0 %v3618
  %3712 = vmatprep.subr.bf16.mxu0 0
  %3713 = vmatpush1.bf16.msra.mxu0 %v3619
  %3714 = vmatprep.subr.bf16.mxu0 0
  %3715 = vmatpush1.bf16.msra.mxu0 %v3620
  %3716 = vmatprep.subr.bf16.mxu0 0
  %3717 = vmatpush1.bf16.msra.mxu0 %v3621
  %3718 = vmatprep.subr.bf16.mxu0 0
  %3719 = vmatpush1.bf16.msra.mxu0 %v3622
  %3720 = vmatprep.subr.bf16.mxu0 0
  %3721 = vmatpush1.bf16.msra.mxu0 %v3623
  %3722 = vmatprep.subr.bf16.mxu0 0
  %3723 = vmatpush1.bf16.msra.mxu0 %v3624
  %3724 = vmatprep.subr.bf16.mxu0 0
  %3725 = vmatpush1.bf16.msra.mxu0 %v3625
  %3726 = vmatprep.subr.bf16.mxu0 0
  %3727 = vmatpush1.bf16.msra.mxu0 %v3626
  %3728 = vmatprep.subr.bf16.mxu0 0
  %3729 = vmatpush1.bf16.msra.mxu0 %v3627
  %3730 = vmatprep.subr.bf16.mxu0 0
  %3731 = vmatpush1.bf16.msra.mxu0 %v3628
  %3732 = vmatprep.subr.bf16.mxu0 0
  %3733 = vmatpush1.bf16.msra.mxu0 %v3629
  %3734 = vmatprep.mubr.bf16.mxu0 %v3398
  %3735 = vmatmul.mubr.bf16.gmra.mrb[0].mxu0 %v3397
  %v3736 = vpop.f32.mrb[0].mxu0
  %v3737 = vadd.f32 %v3697, %v3736
  %v3738 = vpop.f32.mrb[0].mxu0
  %v3739 = vpop.f32.mrb[0].mxu0
  %v3740 = vpop.f32.mrb[0].mxu0
  %3741 = vdwg.mxu0
  %3742 = vst [vmem:[%s9] sm:$0xff] %v3737
  // Predicated region
  $region38: #{dqn_forward.3} parent=0 // pred_check
    _
  $region39: #{dqn_forward.3} parent=0 // pred_check_branch
    %3744 = sbr.rel (0) target = $region41
  $region40: #{dqn_forward.3} parent=0 // pred_region
    _
  $region41: #{dqn_forward.3} parent=0 // pred_fallthru
    _
  // Predicated region
  $region42: #{dqn_forward.3} parent=0 // pred_check
    _
  $region43: #{dqn_forward.3} parent=0 // pred_check_branch
    %3746 = sbr.rel (0) target = $region45
  $region44: #{dqn_forward.3} parent=0 // pred_region
    _
  $region45: #{dqn_forward.3} parent=0 // pred_fallthru
    _

</llo_original>
